<compile_context>
chip_gen: v7x
topology: tpu7x:2x2x1
jax: 0.10.0
libtpu: 0.0.40
codegen_flags: <defaults>
</compile_context>

<pallas_src>
import functools

import numpy as np
import jax
import jax.numpy as jnp
from jax import lax
from jax.experimental import pallas as pl
from jax.experimental.pallas import tpu as pltpu

EPS = 1e-5


def _bn_rows(y, gamma, beta, inv_n):
    """Training-mode batchnorm, channel-major rows, single-pass biased stats.

    `inv_n` is 1 / (true N*H*W); pad columns (if any) are zero in `y`, so the
    sums are exact while the divisor excludes the padding."""
    s = jnp.sum(y, axis=1, keepdims=True)
    ss = jnp.sum(y * y, axis=1, keepdims=True)
    m = s * inv_n
    v = ss * inv_n - m * m
    return (y - m) * lax.rsqrt(v + EPS) * gamma + beta


def _split_bf16(a):
    """Split an f32 array into (hi, lo) bf16 parts with a ~= hi + lo."""
    hi = a.astype(jnp.bfloat16)
    lo = (a - hi.astype(jnp.float32)).astype(jnp.bfloat16)
    return hi, lo


def fused_kernel(x_ref, w1_ref, g1_ref, b1_ref, w2_hbm, g2_ref, b2_ref,
                 mask_ref, o_ref, w2_vmem, rhs_hi_ref, rhs_lo_ref, w2_sem,
                 *, W, M_pad, inv_n, padded):
    # Kick off the (largest) stage-2 weight DMA now so it overlaps with all of
    # the stage-1 compute instead of being exposed before the kernel starts.
    w2_copy = pltpu.make_async_copy(w2_hbm, w2_vmem, w2_sem)
    w2_copy.start()

    # ---- stage 1: relu -> 1x1 conv (channel-major matmul) -> BN -> relu ----
    # bf16x3: w*a ~= w_hi@a_hi + w_hi@a_lo + w_lo@a_hi, f32 accumulation.
    x = jnp.maximum(x_ref[...], 0.0)                              # (Cin, Mp)
    x_hi, x_lo = _split_bf16(x)
    w1_hi = w1_ref[0]
    w1_lo = w1_ref[1]
    y1 = (jnp.dot(w1_hi, x_hi, preferred_element_type=jnp.float32)
          + jnp.dot(w1_hi, x_lo, preferred_element_type=jnp.float32)
          + jnp.dot(w1_lo, x_hi, preferred_element_type=jnp.float32))
    a1 = jnp.maximum(_bn_rows(y1, g1_ref[...], b1_ref[...], inv_n), 0.0)
    C1 = a1.shape[0]

    # ---- stage 2: 3x3 conv, K-stacked over the column offsets ----
    # RHS block kw holds a1 shifted by ow = kw-1 and masked at the left/right
    # image borders; one matmul per kernel row kh with K = 3*C1; the two
    # off-center row partials are then shifted by +-W and masked at the
    # top/bottom borders (this reproduces zero padding exactly).
    mw_m1 = mask_ref[0:1, :]                                      # col w-1 valid
    mw_p1 = mask_ref[1:2, :]                                      # col w+1 valid
    tap_m1 = pltpu.roll(a1, shift=1, axis=1) * mw_m1              # tap[:, m] = a1[:, m-1]
    tap_p1 = pltpu.roll(a1, shift=M_pad - 1, axis=1) * mw_p1      # tap[:, m] = a1[:, m+1]

    def put(row0, piece):                                         # stash hi/lo in VMEM
        hi, lo = _split_bf16(piece)
        rhs_hi_ref[row0:row0 + C1, :] = hi
        rhs_lo_ref[row0:row0 + C1, :] = lo

    put(0, tap_m1)                                                # kw = 0 (ow = -1)
    put(C1, a1)                                                   # kw = 1 (ow =  0)
    put(2 * C1, tap_p1)                                           # kw = 2 (ow = +1)
    rhs_hi = rhs_hi_ref[...]                                      # (3*C1, Mp) bf16
    rhs_lo = rhs_lo_ref[...]

    w2_copy.wait()                                                # weights now in VMEM

    def row_dot(kh):
        w_hi = w2_vmem[0, kh]                                     # (C2, 3*C1) bf16
        w_lo = w2_vmem[1, kh]
        return (jnp.dot(w_hi, rhs_hi, preferred_element_type=jnp.float32)
                + jnp.dot(w_hi, rhs_lo, preferred_element_type=jnp.float32)
                + jnp.dot(w_lo, rhs_hi, preferred_element_type=jnp.float32))

    p_top = row_dot(0)                                            # source row h-1
    p_mid = row_dot(1)                                            # source row h
    p_bot = row_dot(2)                                            # source row h+1

    mh_m1 = mask_ref[2:3, :]                                      # row h-1 valid
    mh_p1 = mask_ref[3:4, :]                                      # row h+1 valid
    y2 = (p_mid
          + pltpu.roll(p_top, shift=W, axis=1) * mh_m1
          + pltpu.roll(p_bot, shift=M_pad - W, axis=1) * mh_p1)
    if padded:
        y2 = y2 * mask_ref[4:5, :]                                # zero pad cols for BN
    o_ref[...] = _bn_rows(y2, g2_ref[...], b2_ref[...], inv_n)


def _make_masks(N, H, W, M_pad):
    """Static per-offset validity masks over the (padded) flat pixel index."""
    Mt = N * H * W
    m = np.arange(M_pad)
    w = m % W
    h = (m // W) % H
    in_range = m < Mt
    rows = np.stack([
        (w >= 1) & in_range,         # source col w-1 in image
        (w <= W - 2) & in_range,     # source col w+1 in image
        (h >= 1) & in_range,         # source row h-1 in image
        (h <= H - 2) & in_range,     # source row h+1 in image
        in_range,                    # true (non-pad) columns
    ]).astype(np.float32)
    return rows                      # (5, M_pad)


def prepare_params(w1, g1, b1, w2, g2, b2):
    """One-time weight/layout prep (hoisted out of the per-call path)."""
    C1, Cin = w1.shape[0], w1.shape[1]
    C2 = w2.shape[0]
    w1_cm = w1.reshape(C1, Cin)                                   # 1x1 conv -> (C1, Cin)
    # (C2, C1, kh, kw) -> (kh, C2, kw*C1 + c1): one (C2, 3*C1) slab per kernel row.
    w2_rows = jnp.transpose(w2, (2, 0, 3, 1)).reshape(3, C2, 3 * C1)
    w1s = jnp.stack(_split_bf16(w1_cm))                           # (2, C1, Cin) bf16
    w2s = jnp.stack(_split_bf16(w2_rows))                         # (2, 3, C2, 3*C1) bf16
    return (w1s, g1.reshape(C1, 1), b1.reshape(C1, 1),
            w2s, g2.reshape(C2, 1), b2.reshape(C2, 1))


@jax.jit
def forward(x_nchw, params):
    w1s, g1, b1, w2s, g2, b2 = params
    N, Cin, H, W = x_nchw.shape
    C1 = w1s.shape[1]
    C2 = w2s.shape[2]
    Mt = N * H * W
    Mp = max(128, ((Mt + 127) // 128) * 128)          # lane-dense padded length

    # Channel-major flatten: free reshape for the module's N == 1 input.
    if N == 1:
        x_cm = x_nchw.reshape(Cin, Mt)
    else:
        x_cm = jnp.transpose(x_nchw, (1, 0, 2, 3)).reshape(Cin, Mt)
    if Mp != Mt:
        x_cm = jnp.pad(x_cm, ((0, 0), (0, Mp - Mt)))

    masks = jnp.asarray(_make_masks(N, H, W, Mp))     # (5, Mp) compile-time constant

    flops = 2 * Mt * (Cin * C1 + 9 * C1 * C2)
    bytes_accessed = (x_cm.size * 4 + w1s.size * 2 + w2s.size * 2 + masks.size * 4
                      + (g1.size + b1.size + g2.size + b2.size) * 4 + C2 * Mp * 4)

    y_cm = pl.pallas_call(
        functools.partial(fused_kernel, W=W, M_pad=Mp, inv_n=1.0 / Mt,
                          padded=(Mp != Mt)),
        out_shape=jax.ShapeDtypeStruct((C2, Mp), jnp.float32),
        in_specs=[
            pl.BlockSpec(memory_space=pltpu.MemorySpace.VMEM),    # x (channel-major)
            pl.BlockSpec(memory_space=pltpu.MemorySpace.VMEM),    # w1 hi/lo
            pl.BlockSpec(memory_space=pltpu.MemorySpace.VMEM),    # gamma1
            pl.BlockSpec(memory_space=pltpu.MemorySpace.VMEM),    # beta1
            pl.BlockSpec(memory_space=pl.ANY),                    # w2 hi/lo (manual DMA)
            pl.BlockSpec(memory_space=pltpu.MemorySpace.VMEM),    # gamma2
            pl.BlockSpec(memory_space=pltpu.MemorySpace.VMEM),    # beta2
            pl.BlockSpec(memory_space=pltpu.MemorySpace.VMEM),    # border masks
        ],
        out_specs=pl.BlockSpec(memory_space=pltpu.MemorySpace.VMEM),
        scratch_shapes=[
            pltpu.VMEM(w2s.shape, jnp.bfloat16),                  # w2 landing buffer
            pltpu.VMEM((3 * C1, Mp), jnp.bfloat16),               # K-stacked RHS (hi)
            pltpu.VMEM((3 * C1, Mp), jnp.bfloat16),               # K-stacked RHS (lo)
            pltpu.SemaphoreType.DMA,
        ],
        compiler_params=pltpu.CompilerParams(vmem_limit_bytes=32 * 1024 * 1024),
        cost_estimate=pl.CostEstimate(flops=flops, transcendentals=0,
                                      bytes_accessed=bytes_accessed),
    )(x_cm, w1s, g1, b1, w2s, g2, b2, masks)

    y_cm = y_cm[:, :Mt]
    if N == 1:
        return y_cm.reshape(1, C2, H, W)               # free reshape back to NCHW
    return jnp.transpose(y_cm.reshape(C2, N, H, W), (1, 0, 2, 3))


def reference(x_nchw, w1, g1, b1, w2, g2, b2):
    # Plain-JAX reference mirroring PyTorch training-mode forward (HIGHEST
    # precision so the reference itself is true f32 on the TPU MXU).
    dn = ("NCHW", "OIHW", "NCHW")
    hp = lax.Precision.HIGHEST

    def bn(y, g, b):
        m = jnp.mean(y, axis=(0, 2, 3), keepdims=True)
        v = jnp.mean((y - m) ** 2, axis=(0, 2, 3), keepdims=True)
        return (y - m) * lax.rsqrt(v + EPS) * g.reshape(1, -1, 1, 1) + b.reshape(1, -1, 1, 1)

    a = jnp.maximum(x_nchw, 0.0)
    y1 = lax.conv_general_dilated(a, w1, (1, 1), "VALID",
                                  dimension_numbers=dn, precision=hp)
    z1 = jnp.maximum(bn(y1, g1, b1), 0.0)
    y2 = lax.conv_general_dilated(z1, w2, (1, 1), ((1, 1), (1, 1)),
                                  dimension_numbers=dn, precision=hp)
    return bn(y2, g2, b2)


if __name__ == "__main__":
    # Small shapes consistent with the module (batch-1 NCHW input, 1x1 conv
    # Cin->C1, 3x3 pad-1 conv C1->C2). Original: (1, 1024, 14, 14), 1024->256->256.
    # 14x14 keeps the real spatial size so the lane-padding path (196 -> 256)
    # is exercised.
    N, Cin, C1, C2, H, W = 1, 128, 64, 64, 14, 14

    key = jax.random.PRNGKey(0)
    kx, kw1, kw2, kg1, kb1, kg2, kb2 = jax.random.split(key, 7)

    x = jax.random.normal(kx, (N, Cin, H, W), dtype=jnp.float32)
    w1 = 0.1 * jax.random.normal(kw1, (C1, Cin, 1, 1), dtype=jnp.float32)   # conv2d118
    w2 = 0.1 * jax.random.normal(kw2, (C2, C1, 3, 3), dtype=jnp.float32)    # conv2d119
    g1 = 1.0 + 0.01 * jax.random.normal(kg1, (C1,), dtype=jnp.float32)      # bn118 gamma
    b1 = 0.01 * jax.random.normal(kb1, (C1,), dtype=jnp.float32)            # bn118 beta
    g2 = 1.0 + 0.01 * jax.random.normal(kg2, (C2,), dtype=jnp.float32)      # bn119 gamma
    b2 = 0.01 * jax.random.normal(kb2, (C2,), dtype=jnp.float32)            # bn119 beta

    # TODO(synk): running_mean/running_var momentum updates are not produced
    # (they do not affect the training-mode forward output).
    params = prepare_params(w1, g1, b1, w2, g2, b2)   # one-time weight prep
    out = forward(x, params)
    jax.block_until_ready(out)

    ref = reference(x, w1, g1, b1, w2, g2, b2)
    assert out.shape == (N, C2, H, W), out.shape
    err = float(jnp.max(jnp.abs(out - ref)))
    assert jnp.allclose(out, ref, rtol=1e-3, atol=1e-3), err

    print("KERNEL_OK")
</pallas_src>

<mosaic_0001>
module attributes {stable_mosaic.version = 11 : i64} {
  func.func @fused_kernel(%arg0: memref<128x256xf32, #tpu.memory_space<vmem>>, %arg1: memref<2x64x128xbf16, #tpu.memory_space<vmem>>, %arg2: memref<64x1xf32, #tpu.memory_space<vmem>>, %arg3: memref<64x1xf32, #tpu.memory_space<vmem>>, %arg4: memref<2x3x64x192xbf16, #tpu.memory_space<any>>, %arg5: memref<64x1xf32, #tpu.memory_space<vmem>>, %arg6: memref<64x1xf32, #tpu.memory_space<vmem>>, %arg7: memref<5x256xf32, #tpu.memory_space<vmem>>, %arg8: memref<64x256xf32, #tpu.memory_space<vmem>>, %arg9: memref<2x3x64x192xbf16, #tpu.memory_space<vmem>>, %arg10: memref<192x256xbf16, #tpu.memory_space<vmem>>, %arg11: memref<192x256xbf16, #tpu.memory_space<vmem>>, %arg12: memref<!tpu.dma_semaphore, #tpu.memory_space<semaphore_mem>>) attributes {dimension_semantics = [], scalar_prefetch = 0 : i64, scratch_operands = 4 : i64, tpu.core_type = #tpu.core_type<tc>} {
    tpu.enqueue_dma source(%arg4 : memref<2x3x64x192xbf16, #tpu.memory_space<any>>) target(%arg9 : memref<2x3x64x192xbf16, #tpu.memory_space<vmem>>) target_semaphore(%arg12 : memref<!tpu.dma_semaphore, #tpu.memory_space<semaphore_mem>>)
    %c0 = arith.constant 0 : index
    %c0_0 = arith.constant 0 : index
    %0 = vector.load %arg0[%c0, %c0_0] : memref<128x256xf32, #tpu.memory_space<vmem>>, vector<128x256xf32>
    %cst = arith.constant 0.000000e+00 : f32
    %1 = vector.broadcast %cst : f32 to vector<128x256xf32>
    %2 = arith.maximumf %0, %1 : vector<128x256xf32>
    %3 = arith.truncf %2 : vector<128x256xf32> to vector<128x256xbf16>
    %4 = arith.extf %3 : vector<128x256xbf16> to vector<128x256xf32>
    %5 = arith.subf %2, %4 : vector<128x256xf32>
    %6 = arith.truncf %5 : vector<128x256xf32> to vector<128x256xbf16>
    %c0_1 = arith.constant 0 : index
    %c0_2 = arith.constant 0 : index
    %c0_3 = arith.constant 0 : index
    %7 = vector.load %arg1[%c0_1, %c0_2, %c0_3] : memref<2x64x128xbf16, #tpu.memory_space<vmem>>, vector<1x64x128xbf16>
    %8 = vector.shape_cast %7 : vector<1x64x128xbf16> to vector<64x128xbf16>
    %c1 = arith.constant 1 : index
    %c0_4 = arith.constant 0 : index
    %c0_5 = arith.constant 0 : index
    %9 = vector.load %arg1[%c1, %c0_4, %c0_5] : memref<2x64x128xbf16, #tpu.memory_space<vmem>>, vector<1x64x128xbf16>
    %10 = vector.shape_cast %9 : vector<1x64x128xbf16> to vector<64x128xbf16>
    %cst_6 = arith.constant dense<0.000000e+00> : vector<64x256xf32>
    %11 = tpu.matmul %8, %3, %cst_6 {dimension_numbers = #tpu.dot_dimension_numbers<[1], [0], [0], [1], [0, 0, 1, 1], [], []>} : vector<64x128xbf16>, vector<128x256xbf16>, vector<64x256xf32> -> vector<64x256xf32>
    %cst_7 = arith.constant dense<0.000000e+00> : vector<64x256xf32>
    %12 = tpu.matmul %8, %6, %cst_7 {dimension_numbers = #tpu.dot_dimension_numbers<[1], [0], [0], [1], [0, 0, 1, 1], [], []>} : vector<64x128xbf16>, vector<128x256xbf16>, vector<64x256xf32> -> vector<64x256xf32>
    %13 = arith.addf %11, %12 : vector<64x256xf32>
    %cst_8 = arith.constant dense<0.000000e+00> : vector<64x256xf32>
    %14 = tpu.matmul %10, %3, %cst_8 {dimension_numbers = #tpu.dot_dimension_numbers<[1], [0], [0], [1], [0, 0, 1, 1], [], []>} : vector<64x128xbf16>, vector<128x256xbf16>, vector<64x256xf32> -> vector<64x256xf32>
    %15 = arith.addf %13, %14 : vector<64x256xf32>
    %c0_9 = arith.constant 0 : index
    %c0_10 = arith.constant 0 : index
    %16 = vector.load %arg2[%c0_9, %c0_10] : memref<64x1xf32, #tpu.memory_space<vmem>>, vector<64x1xf32>
    %c0_11 = arith.constant 0 : index
    %c0_12 = arith.constant 0 : index
    %17 = vector.load %arg3[%c0_11, %c0_12] : memref<64x1xf32, #tpu.memory_space<vmem>>, vector<64x1xf32>
    %cst_13 = arith.constant dense<0.000000e+00> : vector<64xf32>
    %18 = vector.multi_reduction <add>, %15, %cst_13 [1] : vector<64x256xf32> to vector<64xf32>
    %19 = vector.shape_cast %18 : vector<64xf32> to vector<64x1xf32>
    %20 = arith.mulf %15, %15 : vector<64x256xf32>
    %cst_14 = arith.constant dense<0.000000e+00> : vector<64xf32>
    %21 = vector.multi_reduction <add>, %20, %cst_14 [1] : vector<64x256xf32> to vector<64xf32>
    %22 = vector.shape_cast %21 : vector<64xf32> to vector<64x1xf32>
    %cst_15 = arith.constant 0.00510204071 : f32
    %23 = vector.broadcast %cst_15 : f32 to vector<64x1xf32>
    %24 = arith.mulf %19, %23 : vector<64x1xf32>
    %cst_16 = arith.constant 0.00510204071 : f32
    %25 = vector.broadcast %cst_16 : f32 to vector<64x1xf32>
    %26 = arith.mulf %22, %25 : vector<64x1xf32>
    %27 = arith.mulf %24, %24 : vector<64x1xf32>
    %28 = arith.subf %26, %27 : vector<64x1xf32>
    %29 = vector.broadcast %24 : vector<64x1xf32> to vector<64x256xf32>
    %30 = arith.subf %15, %29 : vector<64x256xf32>
    %cst_17 = arith.constant 9.99999974E-6 : f32
    %31 = vector.broadcast %cst_17 : f32 to vector<64x1xf32>
    %32 = arith.addf %28, %31 : vector<64x1xf32>
    %33 = math.rsqrt %32 : vector<64x1xf32>
    %34 = vector.broadcast %33 : vector<64x1xf32> to vector<64x256xf32>
    %35 = arith.mulf %30, %34 : vector<64x256xf32>
    %36 = vector.broadcast %16 : vector<64x1xf32> to vector<64x256xf32>
    %37 = arith.mulf %35, %36 : vector<64x256xf32>
    %38 = vector.broadcast %17 : vector<64x1xf32> to vector<64x256xf32>
    %39 = arith.addf %37, %38 : vector<64x256xf32>
    %cst_18 = arith.constant 0.000000e+00 : f32
    %40 = vector.broadcast %cst_18 : f32 to vector<64x256xf32>
    %41 = arith.maximumf %39, %40 : vector<64x256xf32>
    %c0_19 = arith.constant 0 : index
    %c0_20 = arith.constant 0 : index
    %42 = vector.load %arg7[%c0_19, %c0_20] : memref<5x256xf32, #tpu.memory_space<vmem>>, vector<1x256xf32>
    %c1_21 = arith.constant 1 : index
    %c0_22 = arith.constant 0 : index
    %43 = vector.load %arg7[%c1_21, %c0_22] : memref<5x256xf32, #tpu.memory_space<vmem>>, vector<1x256xf32>
    %c1_i32 = arith.constant 1 : i32
    %44 = tpu.dynamic_rotate %41 by %c1_i32 dim 1 : vector<64x256xf32>, i32 -> vector<64x256xf32>
    %45 = vector.broadcast %42 : vector<1x256xf32> to vector<64x256xf32>
    %46 = arith.mulf %44, %45 : vector<64x256xf32>
    %c255_i32 = arith.constant 255 : i32
    %47 = tpu.dynamic_rotate %41 by %c255_i32 dim 1 : vector<64x256xf32>, i32 -> vector<64x256xf32>
    %48 = vector.broadcast %43 : vector<1x256xf32> to vector<64x256xf32>
    %49 = arith.mulf %47, %48 : vector<64x256xf32>
    %50 = arith.truncf %46 : vector<64x256xf32> to vector<64x256xbf16>
    %51 = arith.extf %50 : vector<64x256xbf16> to vector<64x256xf32>
    %52 = arith.subf %46, %51 : vector<64x256xf32>
    %53 = arith.truncf %52 : vector<64x256xf32> to vector<64x256xbf16>
    %c0_23 = arith.constant 0 : index
    %c0_24 = arith.constant 0 : index
    %54 = vector.load %arg10[%c0_23, %c0_24] : memref<192x256xbf16, #tpu.memory_space<vmem>>, vector<64x256xbf16>
    tpu.vector_store %arg10[%c0_23, %c0_24], %50 {strides = array<i32>} : memref<192x256xbf16, #tpu.memory_space<vmem>>, vector<64x256xbf16>,
    %c0_25 = arith.constant 0 : index
    %c0_26 = arith.constant 0 : index
    %55 = vector.load %arg11[%c0_25, %c0_26] : memref<192x256xbf16, #tpu.memory_space<vmem>>, vector<64x256xbf16>
    tpu.vector_store %arg11[%c0_25, %c0_26], %53 {strides = array<i32>} : memref<192x256xbf16, #tpu.memory_space<vmem>>, vector<64x256xbf16>,
    %56 = arith.truncf %41 : vector<64x256xf32> to vector<64x256xbf16>
    %57 = arith.extf %56 : vector<64x256xbf16> to vector<64x256xf32>
    %58 = arith.subf %41, %57 : vector<64x256xf32>
    %59 = arith.truncf %58 : vector<64x256xf32> to vector<64x256xbf16>
    %c64 = arith.constant 64 : index
    %c0_27 = arith.constant 0 : index
    %60 = vector.load %arg10[%c64, %c0_27] : memref<192x256xbf16, #tpu.memory_space<vmem>>, vector<64x256xbf16>
    tpu.vector_store %arg10[%c64, %c0_27], %56 {strides = array<i32>} : memref<192x256xbf16, #tpu.memory_space<vmem>>, vector<64x256xbf16>,
    %c64_28 = arith.constant 64 : index
    %c0_29 = arith.constant 0 : index
    %61 = vector.load %arg11[%c64_28, %c0_29] : memref<192x256xbf16, #tpu.memory_space<vmem>>, vector<64x256xbf16>
    tpu.vector_store %arg11[%c64_28, %c0_29], %59 {strides = array<i32>} : memref<192x256xbf16, #tpu.memory_space<vmem>>, vector<64x256xbf16>,
    %62 = arith.truncf %49 : vector<64x256xf32> to vector<64x256xbf16>
    %63 = arith.extf %62 : vector<64x256xbf16> to vector<64x256xf32>
    %64 = arith.subf %49, %63 : vector<64x256xf32>
    %65 = arith.truncf %64 : vector<64x256xf32> to vector<64x256xbf16>
    %c128 = arith.constant 128 : index
    %c0_30 = arith.constant 0 : index
    %66 = vector.load %arg10[%c128, %c0_30] : memref<192x256xbf16, #tpu.memory_space<vmem>>, vector<64x256xbf16>
    tpu.vector_store %arg10[%c128, %c0_30], %62 {strides = array<i32>} : memref<192x256xbf16, #tpu.memory_space<vmem>>, vector<64x256xbf16>,
    %c128_31 = arith.constant 128 : index
    %c0_32 = arith.constant 0 : index
    %67 = vector.load %arg11[%c128_31, %c0_32] : memref<192x256xbf16, #tpu.memory_space<vmem>>, vector<64x256xbf16>
    tpu.vector_store %arg11[%c128_31, %c0_32], %65 {strides = array<i32>} : memref<192x256xbf16, #tpu.memory_space<vmem>>, vector<64x256xbf16>,
    %c0_33 = arith.constant 0 : index
    %c0_34 = arith.constant 0 : index
    %68 = vector.load %arg10[%c0_33, %c0_34] : memref<192x256xbf16, #tpu.memory_space<vmem>>, vector<192x256xbf16>
    %c0_35 = arith.constant 0 : index
    %c0_36 = arith.constant 0 : index
    %69 = vector.load %arg11[%c0_35, %c0_36] : memref<192x256xbf16, #tpu.memory_space<vmem>>, vector<192x256xbf16>
    tpu.wait_dma2 semaphore(%arg12 : memref<!tpu.dma_semaphore, #tpu.memory_space<semaphore_mem>>) src(%arg4 : memref<2x3x64x192xbf16, #tpu.memory_space<any>>) dst(%arg9 : memref<2x3x64x192xbf16, #tpu.memory_space<vmem>>)
    %c0_37 = arith.constant 0 : index
    %c0_38 = arith.constant 0 : index
    %c0_39 = arith.constant 0 : index
    %c0_40 = arith.constant 0 : index
    %70 = vector.load %arg9[%c0_37, %c0_38, %c0_39, %c0_40] : memref<2x3x64x192xbf16, #tpu.memory_space<vmem>>, vector<1x1x64x192xbf16>
    %71 = vector.shape_cast %70 : vector<1x1x64x192xbf16> to vector<64x192xbf16>
    %c1_41 = arith.constant 1 : index
    %c0_42 = arith.constant 0 : index
    %c0_43 = arith.constant 0 : index
    %c0_44 = arith.constant 0 : index
    %72 = vector.load %arg9[%c1_41, %c0_42, %c0_43, %c0_44] : memref<2x3x64x192xbf16, #tpu.memory_space<vmem>>, vector<1x1x64x192xbf16>
    %73 = vector.shape_cast %72 : vector<1x1x64x192xbf16> to vector<64x192xbf16>
    %cst_45 = arith.constant dense<0.000000e+00> : vector<64x256xf32>
    %74 = tpu.matmul %71, %68, %cst_45 {dimension_numbers = #tpu.dot_dimension_numbers<[1], [0], [0], [1], [0, 0, 1, 1], [], []>} : vector<64x192xbf16>, vector<192x256xbf16>, vector<64x256xf32> -> vector<64x256xf32>
    %cst_46 = arith.constant dense<0.000000e+00> : vector<64x256xf32>
    %75 = tpu.matmul %71, %69, %cst_46 {dimension_numbers = #tpu.dot_dimension_numbers<[1], [0], [0], [1], [0, 0, 1, 1], [], []>} : vector<64x192xbf16>, vector<192x256xbf16>, vector<64x256xf32> -> vector<64x256xf32>
    %76 = arith.addf %74, %75 : vector<64x256xf32>
    %cst_47 = arith.constant dense<0.000000e+00> : vector<64x256xf32>
    %77 = tpu.matmul %73, %68, %cst_47 {dimension_numbers = #tpu.dot_dimension_numbers<[1], [0], [0], [1], [0, 0, 1, 1], [], []>} : vector<64x192xbf16>, vector<192x256xbf16>, vector<64x256xf32> -> vector<64x256xf32>
    %78 = arith.addf %76, %77 : vector<64x256xf32>
    %c0_48 = arith.constant 0 : index
    %c1_49 = arith.constant 1 : index
    %c0_50 = arith.constant 0 : index
    %c0_51 = arith.constant 0 : index
    %79 = vector.load %arg9[%c0_48, %c1_49, %c0_50, %c0_51] : memref<2x3x64x192xbf16, #tpu.memory_space<vmem>>, vector<1x1x64x192xbf16>
    %80 = vector.shape_cast %79 : vector<1x1x64x192xbf16> to vector<64x192xbf16>
    %c1_52 = arith.constant 1 : index
    %c1_53 = arith.constant 1 : index
    %c0_54 = arith.constant 0 : index
    %c0_55 = arith.constant 0 : index
    %81 = vector.load %arg9[%c1_52, %c1_53, %c0_54, %c0_55] : memref<2x3x64x192xbf16, #tpu.memory_space<vmem>>, vector<1x1x64x192xbf16>
    %82 = vector.shape_cast %81 : vector<1x1x64x192xbf16> to vector<64x192xbf16>
    %cst_56 = arith.constant dense<0.000000e+00> : vector<64x256xf32>
    %83 = tpu.matmul %80, %68, %cst_56 {dimension_numbers = #tpu.dot_dimension_numbers<[1], [0], [0], [1], [0, 0, 1, 1], [], []>} : vector<64x192xbf16>, vector<192x256xbf16>, vector<64x256xf32> -> vector<64x256xf32>
    %cst_57 = arith.constant dense<0.000000e+00> : vector<64x256xf32>
    %84 = tpu.matmul %80, %69, %cst_57 {dimension_numbers = #tpu.dot_dimension_numbers<[1], [0], [0], [1], [0, 0, 1, 1], [], []>} : vector<64x192xbf16>, vector<192x256xbf16>, vector<64x256xf32> -> vector<64x256xf32>
    %85 = arith.addf %83, %84 : vector<64x256xf32>
    %cst_58 = arith.constant dense<0.000000e+00> : vector<64x256xf32>
    %86 = tpu.matmul %82, %68, %cst_58 {dimension_numbers = #tpu.dot_dimension_numbers<[1], [0], [0], [1], [0, 0, 1, 1], [], []>} : vector<64x192xbf16>, vector<192x256xbf16>, vector<64x256xf32> -> vector<64x256xf32>
    %87 = arith.addf %85, %86 : vector<64x256xf32>
    %c0_59 = arith.constant 0 : index
    %c2 = arith.constant 2 : index
    %c0_60 = arith.constant 0 : index
    %c0_61 = arith.constant 0 : index
    %88 = vector.load %arg9[%c0_59, %c2, %c0_60, %c0_61] : memref<2x3x64x192xbf16, #tpu.memory_space<vmem>>, vector<1x1x64x192xbf16>
    %89 = vector.shape_cast %88 : vector<1x1x64x192xbf16> to vector<64x192xbf16>
    %c1_62 = arith.constant 1 : index
    %c2_63 = arith.constant 2 : index
    %c0_64 = arith.constant 0 : index
    %c0_65 = arith.constant 0 : index
    %90 = vector.load %arg9[%c1_62, %c2_63, %c0_64, %c0_65] : memref<2x3x64x192xbf16, #tpu.memory_space<vmem>>, vector<1x1x64x192xbf16>
    %91 = vector.shape_cast %90 : vector<1x1x64x192xbf16> to vector<64x192xbf16>
    %cst_66 = arith.constant dense<0.000000e+00> : vector<64x256xf32>
    %92 = tpu.matmul %89, %68, %cst_66 {dimension_numbers = #tpu.dot_dimension_numbers<[1], [0], [0], [1], [0, 0, 1, 1], [], []>} : vector<64x192xbf16>, vector<192x256xbf16>, vector<64x256xf32> -> vector<64x256xf32>
    %cst_67 = arith.constant dense<0.000000e+00> : vector<64x256xf32>
    %93 = tpu.matmul %89, %69, %cst_67 {dimension_numbers = #tpu.dot_dimension_numbers<[1], [0], [0], [1], [0, 0, 1, 1], [], []>} : vector<64x192xbf16>, vector<192x256xbf16>, vector<64x256xf32> -> vector<64x256xf32>
    %94 = arith.addf %92, %93 : vector<64x256xf32>
    %cst_68 = arith.constant dense<0.000000e+00> : vector<64x256xf32>
    %95 = tpu.matmul %91, %68, %cst_68 {dimension_numbers = #tpu.dot_dimension_numbers<[1], [0], [0], [1], [0, 0, 1, 1], [], []>} : vector<64x192xbf16>, vector<192x256xbf16>, vector<64x256xf32> -> vector<64x256xf32>
    %96 = arith.addf %94, %95 : vector<64x256xf32>
    %c2_69 = arith.constant 2 : index
    %c0_70 = arith.constant 0 : index
    %97 = vector.load %arg7[%c2_69, %c0_70] : memref<5x256xf32, #tpu.memory_space<vmem>>, vector<1x256xf32>
    %c3 = arith.constant 3 : index
    %c0_71 = arith.constant 0 : index
    %98 = vector.load %arg7[%c3, %c0_71] : memref<5x256xf32, #tpu.memory_space<vmem>>, vector<1x256xf32>
    %c14_i32 = arith.constant 14 : i32
    %99 = tpu.dynamic_rotate %78 by %c14_i32 dim 1 : vector<64x256xf32>, i32 -> vector<64x256xf32>
    %100 = vector.broadcast %97 : vector<1x256xf32> to vector<64x256xf32>
    %101 = arith.mulf %99, %100 : vector<64x256xf32>
    %102 = arith.addf %87, %101 : vector<64x256xf32>
    %c242_i32 = arith.constant 242 : i32
    %103 = tpu.dynamic_rotate %96 by %c242_i32 dim 1 : vector<64x256xf32>, i32 -> vector<64x256xf32>
    %104 = vector.broadcast %98 : vector<1x256xf32> to vector<64x256xf32>
    %105 = arith.mulf %103, %104 : vector<64x256xf32>
    %106 = arith.addf %102, %105 : vector<64x256xf32>
    %c4 = arith.constant 4 : index
    %c0_72 = arith.constant 0 : index
    %107 = vector.load %arg7[%c4, %c0_72] : memref<5x256xf32, #tpu.memory_space<vmem>>, vector<1x256xf32>
    %108 = vector.broadcast %107 : vector<1x256xf32> to vector<64x256xf32>
    %109 = arith.mulf %106, %108 : vector<64x256xf32>
    %c0_73 = arith.constant 0 : index
    %c0_74 = arith.constant 0 : index
    %110 = vector.load %arg5[%c0_73, %c0_74] : memref<64x1xf32, #tpu.memory_space<vmem>>, vector<64x1xf32>
    %c0_75 = arith.constant 0 : index
    %c0_76 = arith.constant 0 : index
    %111 = vector.load %arg6[%c0_75, %c0_76] : memref<64x1xf32, #tpu.memory_space<vmem>>, vector<64x1xf32>
    %cst_77 = arith.constant dense<0.000000e+00> : vector<64xf32>
    %112 = vector.multi_reduction <add>, %109, %cst_77 [1] : vector<64x256xf32> to vector<64xf32>
    %113 = vector.shape_cast %112 : vector<64xf32> to vector<64x1xf32>
    %114 = arith.mulf %109, %109 : vector<64x256xf32>
    %cst_78 = arith.constant dense<0.000000e+00> : vector<64xf32>
    %115 = vector.multi_reduction <add>, %114, %cst_78 [1] : vector<64x256xf32> to vector<64xf32>
    %116 = vector.shape_cast %115 : vector<64xf32> to vector<64x1xf32>
    %cst_79 = arith.constant 0.00510204071 : f32
    %117 = vector.broadcast %cst_79 : f32 to vector<64x1xf32>
    %118 = arith.mulf %113, %117 : vector<64x1xf32>
    %cst_80 = arith.constant 0.00510204071 : f32
    %119 = vector.broadcast %cst_80 : f32 to vector<64x1xf32>
    %120 = arith.mulf %116, %119 : vector<64x1xf32>
    %121 = arith.mulf %118, %118 : vector<64x1xf32>
    %122 = arith.subf %120, %121 : vector<64x1xf32>
    %123 = vector.broadcast %118 : vector<64x1xf32> to vector<64x256xf32>
    %124 = arith.subf %109, %123 : vector<64x256xf32>
    %cst_81 = arith.constant 9.99999974E-6 : f32
    %125 = vector.broadcast %cst_81 : f32 to vector<64x1xf32>
    %126 = arith.addf %122, %125 : vector<64x1xf32>
    %127 = math.rsqrt %126 : vector<64x1xf32>
    %128 = vector.broadcast %127 : vector<64x1xf32> to vector<64x256xf32>
    %129 = arith.mulf %124, %128 : vector<64x256xf32>
    %130 = vector.broadcast %110 : vector<64x1xf32> to vector<64x256xf32>
    %131 = arith.mulf %129, %130 : vector<64x256xf32>
    %132 = vector.broadcast %111 : vector<64x1xf32> to vector<64x256xf32>
    %133 = arith.addf %131, %132 : vector<64x256xf32>
    %c0_82 = arith.constant 0 : index
    %c0_83 = arith.constant 0 : index
    %134 = vector.load %arg8[%c0_82, %c0_83] : memref<64x256xf32, #tpu.memory_space<vmem>>, vector<64x256xf32>
    tpu.vector_store %arg8[%c0_82, %c0_83], %133 {strides = array<i32>} : memref<64x256xf32, #tpu.memory_space<vmem>>, vector<64x256xf32>,
    return
  }
}

</mosaic_0001>

<llo_original>
// kernel: forward.1
$region0: #{forward.1}
  #allocation0 [shape = 'u32[]', space=smem, size = 0x4, offset = 0x4, fixed_abs, tag = 'smem constant byte address 0x4 - core index']
  #allocation1 [shape = 'u32[144,128]{1,0:T(1,128)}', space=vmem, size = 0x12000, scoped, tag = 'internal scratch']
  #allocation2 [shape = 'bf16[2,3,64,192]{3,2,1,0:T(16,128)(2,1)}', space=vmem, size = 0x30000, scoped, tag = 'scratch operand']
  #allocation3 [shape = 'bf16[192,256]{1,0:T(16,128)(2,1)}', space=vmem, size = 0x18000, scoped, tag = 'scratch operand']
  #allocation4 [shape = 'bf16[192,256]{1,0:T(16,128)(2,1)}', space=vmem, size = 0x18000, scoped, tag = 'scratch operand']
  #allocation5 [shape = 's32[1]{0}', space=sflag, size = 0x4, scoped, tag = 'scratch operand']
  #allocation6 [shape = 's32[]', space=sflag, size = 0x4, offset = 0, fixed_abs, tag = 'sflag constant byte address 0x0 - dummy sync flag']
  %s0 = inlined_call_operand.vmem [shape: f32[128,256], index: 0, kind: input, shape index: {}]
  %s1 = inlined_call_operand.vmem [shape: bf16[2,64,128], index: 1, kind: input, shape index: {}]
  %s2 = inlined_call_operand.vmem [shape: f32[64,1], index: 2, kind: input, shape index: {}]
  %s3 = inlined_call_operand.vmem [shape: f32[64,1], index: 3, kind: input, shape index: {}]
  %s4 = inlined_call_operand.vmem [shape: bf16[2,3,64,192], index: 4, kind: input, shape index: {}]
  %s5 = inlined_call_operand.vmem [shape: f32[64,1], index: 5, kind: input, shape index: {}]
  %s6 = inlined_call_operand.vmem [shape: f32[64,1], index: 6, kind: input, shape index: {}]
  %s7 = inlined_call_operand.vmem [shape: f32[5,256], index: 7, kind: input, shape index: {}]
  %s8 = inlined_call_operand.vmem [shape: f32[64,256], index: 8, kind: output, shape index: {}]
  %s9 = sld [smem:[#allocation0]]
  $region75: #{forward.1} parent=0
    _
  %s11 = ssub.s32 1, %s9
  %s12 = scalar_select 0, %s11, %s9
  // Predicated region
  $region2: #{forward.1} parent=0 // pred_check
    _
  $region3: #{forward.1} parent=0 // pred_check_branch
    %14 = sbr.rel (0) target = $region5
  $region4: #{forward.1} parent=0 // pred_region
    _
  $region5: #{forward.1} parent=0 // pred_fallthru
    _
  // Predicated region
  $region6: #{forward.1} parent=0 // pred_check
    _
  $region7: #{forward.1} parent=0 // pred_check_branch
    %16 = sbr.rel (0) target = $region9
  $region8: #{forward.1} parent=0 // pred_region
    _
  $region9: #{forward.1} parent=0 // pred_fallthru
    _
  // Predicated region
  $region10: #{forward.1} parent=0 // pred_check
    _
  $region11: #{forward.1} parent=0 // pred_check_branch
    %18 = sbr.rel (0) target = $region13
  $region12: #{forward.1} parent=0 // pred_region
    _
  $region13: #{forward.1} parent=0 // pred_fallthru
    _
  // Predicated region
  $region14: #{forward.1} parent=0 // pred_check
    _
  $region15: #{forward.1} parent=0 // pred_check_branch
    %20 = sbr.rel (0) target = $region17
  $region16: #{forward.1} parent=0 // pred_region
    _
  $region17: #{forward.1} parent=0 // pred_fallthru
    _
  // Predicated region
  $region18: #{forward.1} parent=0 // pred_check
    _
  $region19: #{forward.1} parent=0 // pred_check_branch
    %22 = sbr.rel (0) target = $region21
  $region20: #{forward.1} parent=0 // pred_region
    _
  $region21: #{forward.1} parent=0 // pred_fallthru
    _
  // Predicated region
  $region22: #{forward.1} parent=0 // pred_check
    _
  $region23: #{forward.1} parent=0 // pred_check_branch
    %24 = sbr.rel (0) target = $region25
  $region24: #{forward.1} parent=0 // pred_region
    _
  $region25: #{forward.1} parent=0 // pred_fallthru
    _
  // Predicated region
  $region26: #{forward.1} parent=0 // pred_check
    _
  $region27: #{forward.1} parent=0 // pred_check_branch
    %26 = sbr.rel (0) target = $region29
  $region28: #{forward.1} parent=0 // pred_region
    _
  $region29: #{forward.1} parent=0 // pred_fallthru
    _
  %p29 = scmp.lt.u32.totalorder 4, 8
  %p30 = pneg %p29
  // Predicated region
  $region30: #{forward.1} parent=0 // pred_check
    _
  $region31: #{forward.1} parent=0 // pred_check_branch
    %32 = sbr.rel (%p29) target = $region33
  $region32: #{forward.1} parent=0 // pred_region
    %s237 = sand.u32 4, 7
    %p238 = scmp.eq.s32.totalorder %s237, 0
    %p239 = pneg %p238
    // Predicated region
    $region45: #{forward.1} parent=32 // pred_check
      _
    $region46: #{forward.1} parent=32 // pred_check_branch
      %241 = sbr.rel (%p238) target = $region48
    $region47: #{forward.1} parent=32 // pred_region
      %s242 = sand.u32 4, 7
      %s243 = ssub.s32 4, %s242
      %s244 = scalar_lea.vmem %s4, %s243
      %s245 = ssub.s32 4, %s242
      %s246 = scalar_lea.vmem [#allocation2], %s245
      loop: start=0, step=1, limit=1
      $region49: #{forward.1} parent=47 // loop_pre_header
        _
      $region50: #{forward.1} parent=47 // loop_header
        %s248 = sphi 0, %s252
        %p249 = scmp.ge.s32.totalorder %s248, 1
        %s253 = sphi %s4, %s4
        %s254 = sphi [#allocation2], [#allocation2]
      $region51: #{forward.1} parent=47 // loop_header_branch
        %251 = sbr.rel (%p249) target = $region55
      $region52: #{forward.1} parent=47 // loop_body
        _
      $region53: #{forward.1} parent=47 // loop_footer
        %s252 = sadd.s32 1, %s248
      $region54: #{forward.1} parent=47 // loop_footer_branch
        %247 = sbr.rel target = $region50
      $region55: #{forward.1} parent=47 // loop_exit
        _
      %s255 = sshllo.u32 0, %s242
      loop: start=0, step=1, limit=1
      $region56: #{forward.1} parent=47 // loop_pre_header
        _
      $region57: #{forward.1} parent=47 // loop_header
        %s257 = sphi 0, %s261
        %p258 = scmp.ge.s32.totalorder %s257, 1
        %s262 = sphi %s244, %s244
        %s263 = sphi %s246, %s246
      $region58: #{forward.1} parent=47 // loop_header_branch
        %260 = sbr.rel (%p258) target = $region62
      $region59: #{forward.1} parent=47 // loop_body
        %v264 = vld [vmem:[%s262] sm:%s255]
        %265 = vst [vmem:[%s263] sm:%s255] %v264
        %v266 = vld [vmem:[%s262 + $0x8] sm:%s255]
        %267 = vst [vmem:[%s263 + $0x4] sm:%s255] %v266
        %v268 = vld [vmem:[%s262 + $0x4] sm:%s255]
        %269 = vst [vmem:[%s263 + $0x8] sm:%s255] %v268
        %v270 = vld [vmem:[%s262 + $0xc] sm:%s255]
        %271 = vst [vmem:[%s263 + $0xc] sm:%s255] %v270
        %v272 = vld [vmem:[%s262 + $0x10] sm:%s255]
        %273 = vst [vmem:[%s263 + $0x10] sm:%s255] %v272
        %v274 = vld [vmem:[%s262 + $0x18] sm:%s255]
        %275 = vst [vmem:[%s263 + $0x14] sm:%s255] %v274
        %v276 = vld [vmem:[%s262 + $0x14] sm:%s255]
        %277 = vst [vmem:[%s263 + $0x18] sm:%s255] %v276
        %v278 = vld [vmem:[%s262 + $0x1c] sm:%s255]
        %279 = vst [vmem:[%s263 + $0x1c] sm:%s255] %v278
        %v280 = vld [vmem:[%s262 + $0x20] sm:%s255]
        %281 = vst [vmem:[%s263 + $0x20] sm:%s255] %v280
        %v282 = vld [vmem:[%s262 + $0x28] sm:%s255]
        %283 = vst [vmem:[%s263 + $0x24] sm:%s255] %v282
        %v284 = vld [vmem:[%s262 + $0x24] sm:%s255]
        %285 = vst [vmem:[%s263 + $0x28] sm:%s255] %v284
        %v286 = vld [vmem:[%s262 + $0x2c] sm:%s255]
        %287 = vst [vmem:[%s263 + $0x2c] sm:%s255] %v286
        %v288 = vld [vmem:[%s262 + $0x30] sm:%s255]
        %289 = vst [vmem:[%s263 + $0x30] sm:%s255] %v288
        %v290 = vld [vmem:[%s262 + $0x38] sm:%s255]
        %291 = vst [vmem:[%s263 + $0x34] sm:%s255] %v290
        %v292 = vld [vmem:[%s262 + $0x34] sm:%s255]
        %293 = vst [vmem:[%s263 + $0x38] sm:%s255] %v292
        %v294 = vld [vmem:[%s262 + $0x3c] sm:%s255]
        %295 = vst [vmem:[%s263 + $0x3c] sm:%s255] %v294
        %v296 = vld [vmem:[%s262 + $0x40] sm:%s255]
        %297 = vst [vmem:[%s263 + $0x40] sm:%s255] %v296
        %v298 = vld [vmem:[%s262 + $0x48] sm:%s255]
        %299 = vst [vmem:[%s263 + $0x44] sm:%s255] %v298
        %v300 = vld [vmem:[%s262 + $0x44] sm:%s255]
        %301 = vst [vmem:[%s263 + $0x48] sm:%s255] %v300
        %v302 = vld [vmem:[%s262 + $0x4c] sm:%s255]
        %303 = vst [vmem:[%s263 + $0x4c] sm:%s255] %v302
        %v304 = vld [vmem:[%s262 + $0x50] sm:%s255]
        %305 = vst [vmem:[%s263 + $0x50] sm:%s255] %v304
        %v306 = vld [vmem:[%s262 + $0x58] sm:%s255]
        %307 = vst [vmem:[%s263 + $0x54] sm:%s255] %v306
        %v308 = vld [vmem:[%s262 + $0x54] sm:%s255]
        %309 = vst [vmem:[%s263 + $0x58] sm:%s255] %v308
        %v310 = vld [vmem:[%s262 + $0x5c] sm:%s255]
        %311 = vst [vmem:[%s263 + $0x5c] sm:%s255] %v310
        %v312 = vld [vmem:[%s262 + $0x60] sm:%s255]
        %313 = vst [vmem:[%s263 + $0x60] sm:%s255] %v312
        %v314 = vld [vmem:[%s262 + $0x68] sm:%s255]
        %315 = vst [vmem:[%s263 + $0x64] sm:%s255] %v314
        %v316 = vld [vmem:[%s262 + $0x64] sm:%s255]
        %317 = vst [vmem:[%s263 + $0x68] sm:%s255] %v316
        %v318 = vld [vmem:[%s262 + $0x6c] sm:%s255]
        %319 = vst [vmem:[%s263 + $0x6c] sm:%s255] %v318
        %v320 = vld [vmem:[%s262 + $0x70] sm:%s255]
        %321 = vst [vmem:[%s263 + $0x70] sm:%s255] %v320
        %v322 = vld [vmem:[%s262 + $0x78] sm:%s255]
        %323 = vst [vmem:[%s263 + $0x74] sm:%s255] %v322
        %v324 = vld [vmem:[%s262 + $0x74] sm:%s255]
        %325 = vst [vmem:[%s263 + $0x78] sm:%s255] %v324
        %v326 = vld [vmem:[%s262 + $0x7c] sm:%s255]
        %327 = vst [vmem:[%s263 + $0x7c] sm:%s255] %v326
        %v328 = vld [vmem:[%s262 + $0x80] sm:%s255]
        %329 = vst [vmem:[%s263 + $0x80] sm:%s255] %v328
        %v330 = vld [vmem:[%s262 + $0x88] sm:%s255]
        %331 = vst [vmem:[%s263 + $0x84] sm:%s255] %v330
        %v332 = vld [vmem:[%s262 + $0x84] sm:%s255]
        %333 = vst [vmem:[%s263 + $0x88] sm:%s255] %v332
        %v334 = vld [vmem:[%s262 + $0x8c] sm:%s255]
        %335 = vst [vmem:[%s263 + $0x8c] sm:%s255] %v334
        %v336 = vld [vmem:[%s262 + $0x90] sm:%s255]
        %337 = vst [vmem:[%s263 + $0x90] sm:%s255] %v336
        %v338 = vld [vmem:[%s262 + $0x98] sm:%s255]
        %339 = vst [vmem:[%s263 + $0x94] sm:%s255] %v338
        %v340 = vld [vmem:[%s262 + $0x94] sm:%s255]
        %341 = vst [vmem:[%s263 + $0x98] sm:%s255] %v340
        %v342 = vld [vmem:[%s262 + $0x9c] sm:%s255]
        %343 = vst [vmem:[%s263 + $0x9c] sm:%s255] %v342
        %v344 = vld [vmem:[%s262 + $0xa0] sm:%s255]
        %345 = vst [vmem:[%s263 + $0xa0] sm:%s255] %v344
        %v346 = vld [vmem:[%s262 + $0xa8] sm:%s255]
        %347 = vst [vmem:[%s263 + $0xa4] sm:%s255] %v346
        %v348 = vld [vmem:[%s262 + $0xa4] sm:%s255]
        %349 = vst [vmem:[%s263 + $0xa8] sm:%s255] %v348
        %v350 = vld [vmem:[%s262 + $0xac] sm:%s255]
        %351 = vst [vmem:[%s263 + $0xac] sm:%s255] %v350
        %v352 = vld [vmem:[%s262 + $0xb0] sm:%s255]
        %353 = vst [vmem:[%s263 + $0xb0] sm:%s255] %v352
        %v354 = vld [vmem:[%s262 + $0xb8] sm:%s255]
        %355 = vst [vmem:[%s263 + $0xb4] sm:%s255] %v354
        %v356 = vld [vmem:[%s262 + $0xb4] sm:%s255]
        %357 = vst [vmem:[%s263 + $0xb8] sm:%s255] %v356
        %v358 = vld [vmem:[%s262 + $0xbc] sm:%s255]
        %359 = vst [vmem:[%s263 + $0xbc] sm:%s255] %v358
        %v360 = vld [vmem:[%s262 + $0xc0] sm:%s255]
        %361 = vst [vmem:[%s263 + $0xc0] sm:%s255] %v360
        %v362 = vld [vmem:[%s262 + $0xc8] sm:%s255]
        %363 = vst [vmem:[%s263 + $0xc4] sm:%s255] %v362
        %v364 = vld [vmem:[%s262 + $0xc4] sm:%s255]
        %365 = vst [vmem:[%s263 + $0xc8] sm:%s255] %v364
        %v366 = vld [vmem:[%s262 + $0xcc] sm:%s255]
        %367 = vst [vmem:[%s263 + $0xcc] sm:%s255] %v366
        %v368 = vld [vmem:[%s262 + $0xd0] sm:%s255]
        %369 = vst [vmem:[%s263 + $0xd0] sm:%s255] %v368
        %v370 = vld [vmem:[%s262 + $0xd8] sm:%s255]
        %371 = vst [vmem:[%s263 + $0xd4] sm:%s255] %v370
        %v372 = vld [vmem:[%s262 + $0xd4] sm:%s255]
        %373 = vst [vmem:[%s263 + $0xd8] sm:%s255] %v372
        %v374 = vld [vmem:[%s262 + $0xdc] sm:%s255]
        %375 = vst [vmem:[%s263 + $0xdc] sm:%s255] %v374
        %v376 = vld [vmem:[%s262 + $0xe0] sm:%s255]
        %377 = vst [vmem:[%s263 + $0xe0] sm:%s255] %v376
        %v378 = vld [vmem:[%s262 + $0xe8] sm:%s255]
        %379 = vst [vmem:[%s263 + $0xe4] sm:%s255] %v378
        %v380 = vld [vmem:[%s262 + $0xe4] sm:%s255]
        %381 = vst [vmem:[%s263 + $0xe8] sm:%s255] %v380
        %v382 = vld [vmem:[%s262 + $0xec] sm:%s255]
        %383 = vst [vmem:[%s263 + $0xec] sm:%s255] %v382
        %v384 = vld [vmem:[%s262 + $0xf0] sm:%s255]
        %385 = vst [vmem:[%s263 + $0xf0] sm:%s255] %v384
        %v386 = vld [vmem:[%s262 + $0xf8] sm:%s255]
        %387 = vst [vmem:[%s263 + $0xf4] sm:%s255] %v386
        %v388 = vld [vmem:[%s262 + $0xf4] sm:%s255]
        %389 = vst [vmem:[%s263 + $0xf8] sm:%s255] %v388
        %v390 = vld [vmem:[%s262 + $0xfc] sm:%s255]
        %391 = vst [vmem:[%s263 + $0xfc] sm:%s255] %v390
        %v392 = vld [vmem:[%s262 + $0x100] sm:%s255]
        %393 = vst [vmem:[%s263 + $0x100] sm:%s255] %v392
        %v394 = vld [vmem:[%s262 + $0x108] sm:%s255]
        %395 = vst [vmem:[%s263 + $0x104] sm:%s255] %v394
        %v396 = vld [vmem:[%s262 + $0x104] sm:%s255]
        %397 = vst [vmem:[%s263 + $0x108] sm:%s255] %v396
        %v398 = vld [vmem:[%s262 + $0x10c] sm:%s255]
        %399 = vst [vmem:[%s263 + $0x10c] sm:%s255] %v398
        %v400 = vld [vmem:[%s262 + $0x110] sm:%s255]
        %401 = vst [vmem:[%s263 + $0x110] sm:%s255] %v400
        %v402 = vld [vmem:[%s262 + $0x118] sm:%s255]
        %403 = vst [vmem:[%s263 + $0x114] sm:%s255] %v402
        %v404 = vld [vmem:[%s262 + $0x114] sm:%s255]
        %405 = vst [vmem:[%s263 + $0x118] sm:%s255] %v404
        %v406 = vld [vmem:[%s262 + $0x11c] sm:%s255]
        %407 = vst [vmem:[%s263 + $0x11c] sm:%s255] %v406
        %v408 = vld [vmem:[%s262 + $0x120] sm:%s255]
        %409 = vst [vmem:[%s263 + $0x120] sm:%s255] %v408
        %v410 = vld [vmem:[%s262 + $0x128] sm:%s255]
        %411 = vst [vmem:[%s263 + $0x124] sm:%s255] %v410
        %v412 = vld [vmem:[%s262 + $0x124] sm:%s255]
        %413 = vst [vmem:[%s263 + $0x128] sm:%s255] %v412
        %v414 = vld [vmem:[%s262 + $0x12c] sm:%s255]
        %415 = vst [vmem:[%s263 + $0x12c] sm:%s255] %v414
        %v416 = vld [vmem:[%s262 + $0x130] sm:%s255]
        %417 = vst [vmem:[%s263 + $0x130] sm:%s255] %v416
        %v418 = vld [vmem:[%s262 + $0x138] sm:%s255]
        %419 = vst [vmem:[%s263 + $0x134] sm:%s255] %v418
        %v420 = vld [vmem:[%s262 + $0x134] sm:%s255]
        %421 = vst [vmem:[%s263 + $0x138] sm:%s255] %v420
        %v422 = vld [vmem:[%s262 + $0x13c] sm:%s255]
        %423 = vst [vmem:[%s263 + $0x13c] sm:%s255] %v422
        %v424 = vld [vmem:[%s262 + $0x140] sm:%s255]
        %425 = vst [vmem:[%s263 + $0x140] sm:%s255] %v424
        %v426 = vld [vmem:[%s262 + $0x148] sm:%s255]
        %427 = vst [vmem:[%s263 + $0x144] sm:%s255] %v426
        %v428 = vld [vmem:[%s262 + $0x144] sm:%s255]
        %429 = vst [vmem:[%s263 + $0x148] sm:%s255] %v428
        %v430 = vld [vmem:[%s262 + $0x14c] sm:%s255]
        %431 = vst [vmem:[%s263 + $0x14c] sm:%s255] %v430
        %v432 = vld [vmem:[%s262 + $0x150] sm:%s255]
        %433 = vst [vmem:[%s263 + $0x150] sm:%s255] %v432
        %v434 = vld [vmem:[%s262 + $0x158] sm:%s255]
        %435 = vst [vmem:[%s263 + $0x154] sm:%s255] %v434
        %v436 = vld [vmem:[%s262 + $0x154] sm:%s255]
        %437 = vst [vmem:[%s263 + $0x158] sm:%s255] %v436
        %v438 = vld [vmem:[%s262 + $0x15c] sm:%s255]
        %439 = vst [vmem:[%s263 + $0x15c] sm:%s255] %v438
        %v440 = vld [vmem:[%s262 + $0x160] sm:%s255]
        %441 = vst [vmem:[%s263 + $0x160] sm:%s255] %v440
        %v442 = vld [vmem:[%s262 + $0x168] sm:%s255]
        %443 = vst [vmem:[%s263 + $0x164] sm:%s255] %v442
        %v444 = vld [vmem:[%s262 + $0x164] sm:%s255]
        %445 = vst [vmem:[%s263 + $0x168] sm:%s255] %v444
        %v446 = vld [vmem:[%s262 + $0x16c] sm:%s255]
        %447 = vst [vmem:[%s263 + $0x16c] sm:%s255] %v446
        %v448 = vld [vmem:[%s262 + $0x170] sm:%s255]
        %449 = vst [vmem:[%s263 + $0x170] sm:%s255] %v448
        %v450 = vld [vmem:[%s262 + $0x178] sm:%s255]
        %451 = vst [vmem:[%s263 + $0x174] sm:%s255] %v450
        %v452 = vld [vmem:[%s262 + $0x174] sm:%s255]
        %453 = vst [vmem:[%s263 + $0x178] sm:%s255] %v452
        %v454 = vld [vmem:[%s262 + $0x17c] sm:%s255]
        %455 = vst [vmem:[%s263 + $0x17c] sm:%s255] %v454
      $region60: #{forward.1} parent=47 // loop_footer
        %s261 = sadd.s32 1, %s257
      $region61: #{forward.1} parent=47 // loop_footer_branch
        %256 = sbr.rel target = $region57
      $region62: #{forward.1} parent=47 // loop_exit
        _
    $region48: #{forward.1} parent=32 // pred_fallthru
      _
  $region33: #{forward.1} parent=0 // pred_fallthru
    _
  // Predicated region
  $region34: #{forward.1} parent=0 // pred_check
    %p33 = pneg %p29
  $region35: #{forward.1} parent=0 // pred_check_branch
    %35 = sbr.rel (%p33) target = $region37
  $region36: #{forward.1} parent=0 // pred_region
    %s36 = sshllo.u32 0, 4
    loop: start=0, step=1, limit=1
    $region38: #{forward.1} parent=36 // loop_pre_header
      _
    $region39: #{forward.1} parent=36 // loop_header
      %s38 = sphi 0, %s42
      %p39 = scmp.ge.s32.totalorder %s38, 1
      %s43 = sphi %s4, %s4
      %s44 = sphi [#allocation2], [#allocation2]
    $region40: #{forward.1} parent=36 // loop_header_branch
      %41 = sbr.rel (%p39) target = $region44
    $region41: #{forward.1} parent=36 // loop_body
      %v45 = vld [vmem:[%s43] sm:%s36]
      %46 = vst [vmem:[%s44] sm:%s36] %v45
      %v47 = vld [vmem:[%s43 + $0x8] sm:%s36]
      %48 = vst [vmem:[%s44 + $0x4] sm:%s36] %v47
      %v49 = vld [vmem:[%s43 + $0x4] sm:%s36]
      %50 = vst [vmem:[%s44 + $0x8] sm:%s36] %v49
      %v51 = vld [vmem:[%s43 + $0xc] sm:%s36]
      %52 = vst [vmem:[%s44 + $0xc] sm:%s36] %v51
      %v53 = vld [vmem:[%s43 + $0x10] sm:%s36]
      %54 = vst [vmem:[%s44 + $0x10] sm:%s36] %v53
      %v55 = vld [vmem:[%s43 + $0x18] sm:%s36]
      %56 = vst [vmem:[%s44 + $0x14] sm:%s36] %v55
      %v57 = vld [vmem:[%s43 + $0x14] sm:%s36]
      %58 = vst [vmem:[%s44 + $0x18] sm:%s36] %v57
      %v59 = vld [vmem:[%s43 + $0x1c] sm:%s36]
      %60 = vst [vmem:[%s44 + $0x1c] sm:%s36] %v59
      %v61 = vld [vmem:[%s43 + $0x20] sm:%s36]
      %62 = vst [vmem:[%s44 + $0x20] sm:%s36] %v61
      %v63 = vld [vmem:[%s43 + $0x28] sm:%s36]
      %64 = vst [vmem:[%s44 + $0x24] sm:%s36] %v63
      %v65 = vld [vmem:[%s43 + $0x24] sm:%s36]
      %66 = vst [vmem:[%s44 + $0x28] sm:%s36] %v65
      %v67 = vld [vmem:[%s43 + $0x2c] sm:%s36]
      %68 = vst [vmem:[%s44 + $0x2c] sm:%s36] %v67
      %v69 = vld [vmem:[%s43 + $0x30] sm:%s36]
      %70 = vst [vmem:[%s44 + $0x30] sm:%s36] %v69
      %v71 = vld [vmem:[%s43 + $0x38] sm:%s36]
      %72 = vst [vmem:[%s44 + $0x34] sm:%s36] %v71
      %v73 = vld [vmem:[%s43 + $0x34] sm:%s36]
      %74 = vst [vmem:[%s44 + $0x38] sm:%s36] %v73
      %v75 = vld [vmem:[%s43 + $0x3c] sm:%s36]
      %76 = vst [vmem:[%s44 + $0x3c] sm:%s36] %v75
      %v77 = vld [vmem:[%s43 + $0x40] sm:%s36]
      %78 = vst [vmem:[%s44 + $0x40] sm:%s36] %v77
      %v79 = vld [vmem:[%s43 + $0x48] sm:%s36]
      %80 = vst [vmem:[%s44 + $0x44] sm:%s36] %v79
      %v81 = vld [vmem:[%s43 + $0x44] sm:%s36]
      %82 = vst [vmem:[%s44 + $0x48] sm:%s36] %v81
      %v83 = vld [vmem:[%s43 + $0x4c] sm:%s36]
      %84 = vst [vmem:[%s44 + $0x4c] sm:%s36] %v83
      %v85 = vld [vmem:[%s43 + $0x50] sm:%s36]
      %86 = vst [vmem:[%s44 + $0x50] sm:%s36] %v85
      %v87 = vld [vmem:[%s43 + $0x58] sm:%s36]
      %88 = vst [vmem:[%s44 + $0x54] sm:%s36] %v87
      %v89 = vld [vmem:[%s43 + $0x54] sm:%s36]
      %90 = vst [vmem:[%s44 + $0x58] sm:%s36] %v89
      %v91 = vld [vmem:[%s43 + $0x5c] sm:%s36]
      %92 = vst [vmem:[%s44 + $0x5c] sm:%s36] %v91
      %v93 = vld [vmem:[%s43 + $0x60] sm:%s36]
      %94 = vst [vmem:[%s44 + $0x60] sm:%s36] %v93
      %v95 = vld [vmem:[%s43 + $0x68] sm:%s36]
      %96 = vst [vmem:[%s44 + $0x64] sm:%s36] %v95
      %v97 = vld [vmem:[%s43 + $0x64] sm:%s36]
      %98 = vst [vmem:[%s44 + $0x68] sm:%s36] %v97
      %v99 = vld [vmem:[%s43 + $0x6c] sm:%s36]
      %100 = vst [vmem:[%s44 + $0x6c] sm:%s36] %v99
      %v101 = vld [vmem:[%s43 + $0x70] sm:%s36]
      %102 = vst [vmem:[%s44 + $0x70] sm:%s36] %v101
      %v103 = vld [vmem:[%s43 + $0x78] sm:%s36]
      %104 = vst [vmem:[%s44 + $0x74] sm:%s36] %v103
      %v105 = vld [vmem:[%s43 + $0x74] sm:%s36]
      %106 = vst [vmem:[%s44 + $0x78] sm:%s36] %v105
      %v107 = vld [vmem:[%s43 + $0x7c] sm:%s36]
      %108 = vst [vmem:[%s44 + $0x7c] sm:%s36] %v107
      %v109 = vld [vmem:[%s43 + $0x80] sm:%s36]
      %110 = vst [vmem:[%s44 + $0x80] sm:%s36] %v109
      %v111 = vld [vmem:[%s43 + $0x88] sm:%s36]
      %112 = vst [vmem:[%s44 + $0x84] sm:%s36] %v111
      %v113 = vld [vmem:[%s43 + $0x84] sm:%s36]
      %114 = vst [vmem:[%s44 + $0x88] sm:%s36] %v113
      %v115 = vld [vmem:[%s43 + $0x8c] sm:%s36]
      %116 = vst [vmem:[%s44 + $0x8c] sm:%s36] %v115
      %v117 = vld [vmem:[%s43 + $0x90] sm:%s36]
      %118 = vst [vmem:[%s44 + $0x90] sm:%s36] %v117
      %v119 = vld [vmem:[%s43 + $0x98] sm:%s36]
      %120 = vst [vmem:[%s44 + $0x94] sm:%s36] %v119
      %v121 = vld [vmem:[%s43 + $0x94] sm:%s36]
      %122 = vst [vmem:[%s44 + $0x98] sm:%s36] %v121
      %v123 = vld [vmem:[%s43 + $0x9c] sm:%s36]
      %124 = vst [vmem:[%s44 + $0x9c] sm:%s36] %v123
      %v125 = vld [vmem:[%s43 + $0xa0] sm:%s36]
      %126 = vst [vmem:[%s44 + $0xa0] sm:%s36] %v125
      %v127 = vld [vmem:[%s43 + $0xa8] sm:%s36]
      %128 = vst [vmem:[%s44 + $0xa4] sm:%s36] %v127
      %v129 = vld [vmem:[%s43 + $0xa4] sm:%s36]
      %130 = vst [vmem:[%s44 + $0xa8] sm:%s36] %v129
      %v131 = vld [vmem:[%s43 + $0xac] sm:%s36]
      %132 = vst [vmem:[%s44 + $0xac] sm:%s36] %v131
      %v133 = vld [vmem:[%s43 + $0xb0] sm:%s36]
      %134 = vst [vmem:[%s44 + $0xb0] sm:%s36] %v133
      %v135 = vld [vmem:[%s43 + $0xb8] sm:%s36]
      %136 = vst [vmem:[%s44 + $0xb4] sm:%s36] %v135
      %v137 = vld [vmem:[%s43 + $0xb4] sm:%s36]
      %138 = vst [vmem:[%s44 + $0xb8] sm:%s36] %v137
      %v139 = vld [vmem:[%s43 + $0xbc] sm:%s36]
      %140 = vst [vmem:[%s44 + $0xbc] sm:%s36] %v139
      %v141 = vld [vmem:[%s43 + $0xc0] sm:%s36]
      %142 = vst [vmem:[%s44 + $0xc0] sm:%s36] %v141
      %v143 = vld [vmem:[%s43 + $0xc8] sm:%s36]
      %144 = vst [vmem:[%s44 + $0xc4] sm:%s36] %v143
      %v145 = vld [vmem:[%s43 + $0xc4] sm:%s36]
      %146 = vst [vmem:[%s44 + $0xc8] sm:%s36] %v145
      %v147 = vld [vmem:[%s43 + $0xcc] sm:%s36]
      %148 = vst [vmem:[%s44 + $0xcc] sm:%s36] %v147
      %v149 = vld [vmem:[%s43 + $0xd0] sm:%s36]
      %150 = vst [vmem:[%s44 + $0xd0] sm:%s36] %v149
      %v151 = vld [vmem:[%s43 + $0xd8] sm:%s36]
      %152 = vst [vmem:[%s44 + $0xd4] sm:%s36] %v151
      %v153 = vld [vmem:[%s43 + $0xd4] sm:%s36]
      %154 = vst [vmem:[%s44 + $0xd8] sm:%s36] %v153
      %v155 = vld [vmem:[%s43 + $0xdc] sm:%s36]
      %156 = vst [vmem:[%s44 + $0xdc] sm:%s36] %v155
      %v157 = vld [vmem:[%s43 + $0xe0] sm:%s36]
      %158 = vst [vmem:[%s44 + $0xe0] sm:%s36] %v157
      %v159 = vld [vmem:[%s43 + $0xe8] sm:%s36]
      %160 = vst [vmem:[%s44 + $0xe4] sm:%s36] %v159
      %v161 = vld [vmem:[%s43 + $0xe4] sm:%s36]
      %162 = vst [vmem:[%s44 + $0xe8] sm:%s36] %v161
      %v163 = vld [vmem:[%s43 + $0xec] sm:%s36]
      %164 = vst [vmem:[%s44 + $0xec] sm:%s36] %v163
      %v165 = vld [vmem:[%s43 + $0xf0] sm:%s36]
      %166 = vst [vmem:[%s44 + $0xf0] sm:%s36] %v165
      %v167 = vld [vmem:[%s43 + $0xf8] sm:%s36]
      %168 = vst [vmem:[%s44 + $0xf4] sm:%s36] %v167
      %v169 = vld [vmem:[%s43 + $0xf4] sm:%s36]
      %170 = vst [vmem:[%s44 + $0xf8] sm:%s36] %v169
      %v171 = vld [vmem:[%s43 + $0xfc] sm:%s36]
      %172 = vst [vmem:[%s44 + $0xfc] sm:%s36] %v171
      %v173 = vld [vmem:[%s43 + $0x100] sm:%s36]
      %174 = vst [vmem:[%s44 + $0x100] sm:%s36] %v173
      %v175 = vld [vmem:[%s43 + $0x108] sm:%s36]
      %176 = vst [vmem:[%s44 + $0x104] sm:%s36] %v175
      %v177 = vld [vmem:[%s43 + $0x104] sm:%s36]
      %178 = vst [vmem:[%s44 + $0x108] sm:%s36] %v177
      %v179 = vld [vmem:[%s43 + $0x10c] sm:%s36]
      %180 = vst [vmem:[%s44 + $0x10c] sm:%s36] %v179
      %v181 = vld [vmem:[%s43 + $0x110] sm:%s36]
      %182 = vst [vmem:[%s44 + $0x110] sm:%s36] %v181
      %v183 = vld [vmem:[%s43 + $0x118] sm:%s36]
      %184 = vst [vmem:[%s44 + $0x114] sm:%s36] %v183
      %v185 = vld [vmem:[%s43 + $0x114] sm:%s36]
      %186 = vst [vmem:[%s44 + $0x118] sm:%s36] %v185
      %v187 = vld [vmem:[%s43 + $0x11c] sm:%s36]
      %188 = vst [vmem:[%s44 + $0x11c] sm:%s36] %v187
      %v189 = vld [vmem:[%s43 + $0x120] sm:%s36]
      %190 = vst [vmem:[%s44 + $0x120] sm:%s36] %v189
      %v191 = vld [vmem:[%s43 + $0x128] sm:%s36]
      %192 = vst [vmem:[%s44 + $0x124] sm:%s36] %v191
      %v193 = vld [vmem:[%s43 + $0x124] sm:%s36]
      %194 = vst [vmem:[%s44 + $0x128] sm:%s36] %v193
      %v195 = vld [vmem:[%s43 + $0x12c] sm:%s36]
      %196 = vst [vmem:[%s44 + $0x12c] sm:%s36] %v195
      %v197 = vld [vmem:[%s43 + $0x130] sm:%s36]
      %198 = vst [vmem:[%s44 + $0x130] sm:%s36] %v197
      %v199 = vld [vmem:[%s43 + $0x138] sm:%s36]
      %200 = vst [vmem:[%s44 + $0x134] sm:%s36] %v199
      %v201 = vld [vmem:[%s43 + $0x134] sm:%s36]
      %202 = vst [vmem:[%s44 + $0x138] sm:%s36] %v201
      %v203 = vld [vmem:[%s43 + $0x13c] sm:%s36]
      %204 = vst [vmem:[%s44 + $0x13c] sm:%s36] %v203
      %v205 = vld [vmem:[%s43 + $0x140] sm:%s36]
      %206 = vst [vmem:[%s44 + $0x140] sm:%s36] %v205
      %v207 = vld [vmem:[%s43 + $0x148] sm:%s36]
      %208 = vst [vmem:[%s44 + $0x144] sm:%s36] %v207
      %v209 = vld [vmem:[%s43 + $0x144] sm:%s36]
      %210 = vst [vmem:[%s44 + $0x148] sm:%s36] %v209
      %v211 = vld [vmem:[%s43 + $0x14c] sm:%s36]
      %212 = vst [vmem:[%s44 + $0x14c] sm:%s36] %v211
      %v213 = vld [vmem:[%s43 + $0x150] sm:%s36]
      %214 = vst [vmem:[%s44 + $0x150] sm:%s36] %v213
      %v215 = vld [vmem:[%s43 + $0x158] sm:%s36]
      %216 = vst [vmem:[%s44 + $0x154] sm:%s36] %v215
      %v217 = vld [vmem:[%s43 + $0x154] sm:%s36]
      %218 = vst [vmem:[%s44 + $0x158] sm:%s36] %v217
      %v219 = vld [vmem:[%s43 + $0x15c] sm:%s36]
      %220 = vst [vmem:[%s44 + $0x15c] sm:%s36] %v219
      %v221 = vld [vmem:[%s43 + $0x160] sm:%s36]
      %222 = vst [vmem:[%s44 + $0x160] sm:%s36] %v221
      %v223 = vld [vmem:[%s43 + $0x168] sm:%s36]
      %224 = vst [vmem:[%s44 + $0x164] sm:%s36] %v223
      %v225 = vld [vmem:[%s43 + $0x164] sm:%s36]
      %226 = vst [vmem:[%s44 + $0x168] sm:%s36] %v225
      %v227 = vld [vmem:[%s43 + $0x16c] sm:%s36]
      %228 = vst [vmem:[%s44 + $0x16c] sm:%s36] %v227
      %v229 = vld [vmem:[%s43 + $0x170] sm:%s36]
      %230 = vst [vmem:[%s44 + $0x170] sm:%s36] %v229
      %v231 = vld [vmem:[%s43 + $0x178] sm:%s36]
      %232 = vst [vmem:[%s44 + $0x174] sm:%s36] %v231
      %v233 = vld [vmem:[%s43 + $0x174] sm:%s36]
      %234 = vst [vmem:[%s44 + $0x178] sm:%s36] %v233
      %v235 = vld [vmem:[%s43 + $0x17c] sm:%s36]
      %236 = vst [vmem:[%s44 + $0x17c] sm:%s36] %v235
    $region42: #{forward.1} parent=36 // loop_footer
      %s42 = sadd.s32 1, %s38
    $region43: #{forward.1} parent=36 // loop_footer_branch
      %37 = sbr.rel target = $region39
    $region44: #{forward.1} parent=36 // loop_exit
      _
  $region37: #{forward.1} parent=0 // pred_fallthru
    _
  // Predicated region
  $region63: #{forward.1} parent=0 // pred_check
    _
  $region64: #{forward.1} parent=0 // pred_check_branch
    %458 = sbr.rel (0) target = $region66
  $region65: #{forward.1} parent=0 // pred_region
    %459 = vsyncadd [#allocation5], 6144
  $region66: #{forward.1} parent=0 // pred_fallthru
    _
  %v460 = vld [vmem:[%s0] sm:$0xff]
  %v461 = vld [vmem:[%s0 + $0x8] sm:$0xff]
  %v462 = vld [vmem:[%s0 + $0x10] sm:$0xff]
  %v463 = vld [vmem:[%s0 + $0x18] sm:$0xff]
  %v464 = vld [vmem:[%s0 + $0x20] sm:$0xff]
  %v465 = vld [vmem:[%s0 + $0x28] sm:$0xff]
  %v466 = vld [vmem:[%s0 + $0x30] sm:$0xff]
  %v467 = vld [vmem:[%s0 + $0x38] sm:$0xff]
  %v468 = vld [vmem:[%s0 + $0x40] sm:$0xff]
  %v469 = vld [vmem:[%s0 + $0x48] sm:$0xff]
  %v470 = vld [vmem:[%s0 + $0x50] sm:$0xff]
  %v471 = vld [vmem:[%s0 + $0x58] sm:$0xff]
  %v472 = vld [vmem:[%s0 + $0x60] sm:$0xff]
  %v473 = vld [vmem:[%s0 + $0x68] sm:$0xff]
  %v474 = vld [vmem:[%s0 + $0x70] sm:$0xff]
  %v475 = vld [vmem:[%s0 + $0x78] sm:$0xff]
  %v476 = vld [vmem:[%s0 + $0x80] sm:$0xff]
  %v477 = vld [vmem:[%s0 + $0x88] sm:$0xff]
  %v478 = vld [vmem:[%s0 + $0x90] sm:$0xff]
  %v479 = vld [vmem:[%s0 + $0x98] sm:$0xff]
  %v480 = vld [vmem:[%s0 + $0xa0] sm:$0xff]
  %v481 = vld [vmem:[%s0 + $0xa8] sm:$0xff]
  %v482 = vld [vmem:[%s0 + $0xb0] sm:$0xff]
  %v483 = vld [vmem:[%s0 + $0xb8] sm:$0xff]
  %v484 = vld [vmem:[%s0 + $0xc0] sm:$0xff]
  %v485 = vld [vmem:[%s0 + $0xc8] sm:$0xff]
  %v486 = vld [vmem:[%s0 + $0xd0] sm:$0xff]
  %v487 = vld [vmem:[%s0 + $0xd8] sm:$0xff]
  %v488 = vld [vmem:[%s0 + $0xe0] sm:$0xff]
  %v489 = vld [vmem:[%s0 + $0xe8] sm:$0xff]
  %v490 = vld [vmem:[%s0 + $0xf0] sm:$0xff]
  %v491 = vld [vmem:[%s0 + $0xf8] sm:$0xff]
  %v492 = vmax.f32 %v460, 0.0
  %v493 = vmax.f32 %v461, 0.0
  %v494 = vmax.f32 %v462, 0.0
  %v495 = vmax.f32 %v463, 0.0
  %v496 = vmax.f32 %v464, 0.0
  %v497 = vmax.f32 %v465, 0.0
  %v498 = vmax.f32 %v466, 0.0
  %v499 = vmax.f32 %v467, 0.0
  %v500 = vmax.f32 %v468, 0.0
  %v501 = vmax.f32 %v469, 0.0
  %v502 = vmax.f32 %v470, 0.0
  %v503 = vmax.f32 %v471, 0.0
  %v504 = vmax.f32 %v472, 0.0
  %v505 = vmax.f32 %v473, 0.0
  %v506 = vmax.f32 %v474, 0.0
  %v507 = vmax.f32 %v475, 0.0
  %v508 = vmax.f32 %v476, 0.0
  %v509 = vmax.f32 %v477, 0.0
  %v510 = vmax.f32 %v478, 0.0
  %v511 = vmax.f32 %v479, 0.0
  %v512 = vmax.f32 %v480, 0.0
  %v513 = vmax.f32 %v481, 0.0
  %v514 = vmax.f32 %v482, 0.0
  %v515 = vmax.f32 %v483, 0.0
  %v516 = vmax.f32 %v484, 0.0
  %v517 = vmax.f32 %v485, 0.0
  %v518 = vmax.f32 %v486, 0.0
  %v519 = vmax.f32 %v487, 0.0
  %v520 = vmax.f32 %v488, 0.0
  %v521 = vmax.f32 %v489, 0.0
  %v522 = vmax.f32 %v490, 0.0
  %v523 = vmax.f32 %v491, 0.0
  %v524 = vpack.c.bf16 %v494, %v492
  %v525 = vpack.c.bf16 %v495, %v493
  %v526 = vpack.c.bf16 %v498, %v496
  %v527 = vpack.c.bf16 %v499, %v497
  %v528 = vpack.c.bf16 %v502, %v500
  %v529 = vpack.c.bf16 %v503, %v501
  %v530 = vpack.c.bf16 %v506, %v504
  %v531 = vpack.c.bf16 %v507, %v505
  %v532 = vpack.c.bf16 %v510, %v508
  %v533 = vpack.c.bf16 %v511, %v509
  %v534 = vpack.c.bf16 %v514, %v512
  %v535 = vpack.c.bf16 %v515, %v513
  %v536 = vpack.c.bf16 %v518, %v516
  %v537 = vpack.c.bf16 %v519, %v517
  %v538 = vpack.c.bf16 %v522, %v520
  %v539 = vpack.c.bf16 %v523, %v521
  %v540 = vunpack.c.l.bf16 %v524
  %v541 = vunpack.c.l.bf16 %v525
  %v542 = vunpack.c.h.bf16 %v524
  %v543 = vunpack.c.h.bf16 %v525
  %v544 = vunpack.c.l.bf16 %v526
  %v545 = vunpack.c.l.bf16 %v527
  %v546 = vunpack.c.h.bf16 %v526
  %v547 = vunpack.c.h.bf16 %v527
  %v548 = vunpack.c.l.bf16 %v528
  %v549 = vunpack.c.l.bf16 %v529
  %v550 = vunpack.c.h.bf16 %v528
  %v551 = vunpack.c.h.bf16 %v529
  %v552 = vunpack.c.l.bf16 %v530
  %v553 = vunpack.c.l.bf16 %v531
  %v554 = vunpack.c.h.bf16 %v530
  %v555 = vunpack.c.h.bf16 %v531
  %v556 = vunpack.c.l.bf16 %v532
  %v557 = vunpack.c.l.bf16 %v533
  %v558 = vunpack.c.h.bf16 %v532
  %v559 = vunpack.c.h.bf16 %v533
  %v560 = vunpack.c.l.bf16 %v534
  %v561 = vunpack.c.l.bf16 %v535
  %v562 = vunpack.c.h.bf16 %v534
  %v563 = vunpack.c.h.bf16 %v535
  %v564 = vunpack.c.l.bf16 %v536
  %v565 = vunpack.c.l.bf16 %v537
  %v566 = vunpack.c.h.bf16 %v536
  %v567 = vunpack.c.h.bf16 %v537
  %v568 = vunpack.c.l.bf16 %v538
  %v569 = vunpack.c.l.bf16 %v539
  %v570 = vunpack.c.h.bf16 %v538
  %v571 = vunpack.c.h.bf16 %v539
  %v572 = vsub.f32 %v492, %v540
  %v573 = vsub.f32 %v493, %v541
  %v574 = vsub.f32 %v494, %v542
  %v575 = vsub.f32 %v495, %v543
  %v576 = vsub.f32 %v496, %v544
  %v577 = vsub.f32 %v497, %v545
  %v578 = vsub.f32 %v498, %v546
  %v579 = vsub.f32 %v499, %v547
  %v580 = vsub.f32 %v500, %v548
  %v581 = vsub.f32 %v501, %v549
  %v582 = vsub.f32 %v502, %v550
  %v583 = vsub.f32 %v503, %v551
  %v584 = vsub.f32 %v504, %v552
  %v585 = vsub.f32 %v505, %v553
  %v586 = vsub.f32 %v506, %v554
  %v587 = vsub.f32 %v507, %v555
  %v588 = vsub.f32 %v508, %v556
  %v589 = vsub.f32 %v509, %v557
  %v590 = vsub.f32 %v510, %v558
  %v591 = vsub.f32 %v511, %v559
  %v592 = vsub.f32 %v512, %v560
  %v593 = vsub.f32 %v513, %v561
  %v594 = vsub.f32 %v514, %v562
  %v595 = vsub.f32 %v515, %v563
  %v596 = vsub.f32 %v516, %v564
  %v597 = vsub.f32 %v517, %v565
  %v598 = vsub.f32 %v518, %v566
  %v599 = vsub.f32 %v519, %v567
  %v600 = vsub.f32 %v520, %v568
  %v601 = vsub.f32 %v521, %v569
  %v602 = vsub.f32 %v522, %v570
  %v603 = vsub.f32 %v523, %v571
  %v604 = vpack.c.bf16 %v574, %v572
  %v605 = vpack.c.bf16 %v575, %v573
  %v606 = vpack.c.bf16 %v578, %v576
  %v607 = vpack.c.bf16 %v579, %v577
  %v608 = vpack.c.bf16 %v582, %v580
  %v609 = vpack.c.bf16 %v583, %v581
  %v610 = vpack.c.bf16 %v586, %v584
  %v611 = vpack.c.bf16 %v587, %v585
  %v612 = vpack.c.bf16 %v590, %v588
  %v613 = vpack.c.bf16 %v591, %v589
  %v614 = vpack.c.bf16 %v594, %v592
  %v615 = vpack.c.bf16 %v595, %v593
  %v616 = vpack.c.bf16 %v598, %v596
  %v617 = vpack.c.bf16 %v599, %v597
  %v618 = vpack.c.bf16 %v602, %v600
  %v619 = vpack.c.bf16 %v603, %v601
  %v620 = vld [vmem:[%s1] sm:$0xf]
  %v621 = vld [vmem:[%s1 + $0x4] sm:$0xf]
  %v622 = vld [vmem:[%s1 + $0x8] sm:$0xf]
  %v623 = vld [vmem:[%s1 + $0xc] sm:$0xf]
  %v624 = vld [vmem:[%s1 + $0x10] sm:$0xf]
  %v625 = vld [vmem:[%s1 + $0x14] sm:$0xf]
  %v626 = vld [vmem:[%s1 + $0x18] sm:$0xf]
  %v627 = vld [vmem:[%s1 + $0x1c] sm:$0xf]
  %s628 = scalar_lea.vmem %s1, 32
  %v629 = vld [vmem:[%s628] sm:$0xf]
  %v630 = vld [vmem:[%s628 + $0x4] sm:$0xf]
  %v631 = vld [vmem:[%s628 + $0x8] sm:$0xf]
  %v632 = vld [vmem:[%s628 + $0xc] sm:$0xf]
  %v633 = vld [vmem:[%s628 + $0x10] sm:$0xf]
  %v634 = vld [vmem:[%s628 + $0x14] sm:$0xf]
  %v635 = vld [vmem:[%s628 + $0x18] sm:$0xf]
  %v636 = vld [vmem:[%s628 + $0x1c] sm:$0xf]
  %v645 = vunpack.c.l.b16 %v620
  %v646 = vunpack.c.l.b16 %v621
  %v647 = vunpack.c.l.b16 %v622
  %v648 = vunpack.c.l.b16 %v623
  %v649 = vunpack.c.l.b16 %v624
  %v650 = vunpack.c.l.b16 %v625
  %v651 = vunpack.c.l.b16 %v626
  %v652 = vunpack.c.l.b16 %v627
  %v653 = vpack.c.b16 %v646, %v645
  %v654 = vpack.c.b16 %v648, %v647
  %v655 = vpack.c.b16 %v650, %v649
  %v656 = vpack.c.b16 %v652, %v651
  %661 = vmatprep.subr.bf16.mxu0 %v605
  %662 = vmatpush1.bf16.msra.mxu0 %v604
  %663 = vmatprep.subr.bf16.mxu0 %v607
  %664 = vmatpush1.bf16.msra.mxu0 %v606
  %665 = vmatprep.subr.bf16.mxu0 %v609
  %666 = vmatpush1.bf16.msra.mxu0 %v608
  %667 = vmatprep.subr.bf16.mxu0 %v611
  %668 = vmatpush1.bf16.msra.mxu0 %v610
  %669 = vmatprep.subr.bf16.mxu0 %v613
  %670 = vmatpush1.bf16.msra.mxu0 %v612
  %671 = vmatprep.subr.bf16.mxu0 %v615
  %672 = vmatpush1.bf16.msra.mxu0 %v614
  %673 = vmatprep.subr.bf16.mxu0 %v617
  %674 = vmatpush1.bf16.msra.mxu0 %v616
  %675 = vmatprep.subr.bf16.mxu0 %v619
  %676 = vmatpush1.bf16.msra.mxu0 %v618
  %677 = vmatprep.subr.bf16.mxu0 0
  %678 = vmatpush1.bf16.msra.mxu0 0
  %679 = vmatprep.subr.bf16.mxu0 0
  %680 = vmatpush1.bf16.msra.mxu0 0
  %681 = vmatprep.subr.bf16.mxu0 0
  %682 = vmatpush1.bf16.msra.mxu0 0
  %683 = vmatprep.subr.bf16.mxu0 0
  %684 = vmatpush1.bf16.msra.mxu0 0
  %685 = vmatprep.subr.bf16.mxu0 0
  %686 = vmatpush1.bf16.msra.mxu0 0
  %687 = vmatprep.subr.bf16.mxu0 0
  %688 = vmatpush1.bf16.msra.mxu0 0
  %689 = vmatprep.subr.bf16.mxu0 0
  %690 = vmatpush1.bf16.msra.mxu0 0
  %691 = vmatprep.subr.bf16.mxu0 0
  %692 = vmatpush1.bf16.msra.mxu0 0
  %693 = vmatprep.mubr.bf16.mxu0 0
  %694 = vmatmul.mubr.bf16.gmra.mrb[0].mxu0 %v653
  %v695 = vpop.f32.mrb[0].mxu0
  %v696 = vadd.f32 0.0, %v695
  %v697 = vpop.f32.mrb[0].mxu0
  %v698 = vadd.f32 0.0, %v697
  %v699 = vpop.f32.mrb[0].mxu0
  %v700 = vadd.f32 0.0, %v699
  %v701 = vpop.f32.mrb[0].mxu0
  %v702 = vadd.f32 0.0, %v701
  %703 = vmatprep.mubr.bf16.mxu0 0
  %704 = vmatmul.mubr.bf16.gmra.mrb[0].mxu0 %v654
  %v705 = vpop.f32.mrb[0].mxu0
  %v706 = vadd.f32 0.0, %v705
  %v707 = vpop.f32.mrb[0].mxu0
  %v708 = vadd.f32 0.0, %v707
  %v709 = vpop.f32.mrb[0].mxu0
  %v710 = vadd.f32 0.0, %v709
  %v711 = vpop.f32.mrb[0].mxu0
  %v712 = vadd.f32 0.0, %v711
  %713 = vmatprep.mubr.bf16.mxu0 0
  %714 = vmatmul.mubr.bf16.gmra.mrb[0].mxu0 %v655
  %v715 = vpop.f32.mrb[0].mxu0
  %v716 = vadd.f32 0.0, %v715
  %v717 = vpop.f32.mrb[0].mxu0
  %v718 = vadd.f32 0.0, %v717
  %v719 = vpop.f32.mrb[0].mxu0
  %v720 = vadd.f32 0.0, %v719
  %v721 = vpop.f32.mrb[0].mxu0
  %v722 = vadd.f32 0.0, %v721
  %723 = vmatprep.mubr.bf16.mxu0 0
  %724 = vmatmul.mubr.bf16.gmra.mrb[0].mxu0 %v656
  %v725 = vpop.f32.mrb[0].mxu0
  %v726 = vadd.f32 0.0, %v725
  %v727 = vpop.f32.mrb[0].mxu0
  %v728 = vadd.f32 0.0, %v727
  %v729 = vpop.f32.mrb[0].mxu0
  %v730 = vadd.f32 0.0, %v729
  %v731 = vpop.f32.mrb[0].mxu0
  %v732 = vadd.f32 0.0, %v731
  %733 = vdwg.mxu0
  %734 = vmatprep.subr.bf16.mxu0 %v525
  %735 = vmatpush1.bf16.msra.mxu0 %v524
  %736 = vmatprep.subr.bf16.mxu0 %v527
  %737 = vmatpush1.bf16.msra.mxu0 %v526
  %738 = vmatprep.subr.bf16.mxu0 %v529
  %739 = vmatpush1.bf16.msra.mxu0 %v528
  %740 = vmatprep.subr.bf16.mxu0 %v531
  %741 = vmatpush1.bf16.msra.mxu0 %v530
  %742 = vmatprep.subr.bf16.mxu0 %v533
  %743 = vmatpush1.bf16.msra.mxu0 %v532
  %744 = vmatprep.subr.bf16.mxu0 %v535
  %745 = vmatpush1.bf16.msra.mxu0 %v534
  %746 = vmatprep.subr.bf16.mxu0 %v537
  %747 = vmatpush1.bf16.msra.mxu0 %v536
  %748 = vmatprep.subr.bf16.mxu0 %v539
  %749 = vmatpush1.bf16.msra.mxu0 %v538
  %750 = vmatprep.subr.bf16.mxu0 0
  %751 = vmatpush1.bf16.msra.mxu0 0
  %752 = vmatprep.subr.bf16.mxu0 0
  %753 = vmatpush1.bf16.msra.mxu0 0
  %754 = vmatprep.subr.bf16.mxu0 0
  %755 = vmatpush1.bf16.msra.mxu0 0
  %756 = vmatprep.subr.bf16.mxu0 0
  %757 = vmatpush1.bf16.msra.mxu0 0
  %758 = vmatprep.subr.bf16.mxu0 0
  %759 = vmatpush1.bf16.msra.mxu0 0
  %760 = vmatprep.subr.bf16.mxu0 0
  %761 = vmatpush1.bf16.msra.mxu0 0
  %762 = vmatprep.subr.bf16.mxu0 0
  %763 = vmatpush1.bf16.msra.mxu0 0
  %764 = vmatprep.subr.bf16.mxu0 0
  %765 = vmatpush1.bf16.msra.mxu0 0
  %766 = vmatprep.mubr.bf16.mxu0 0
  %767 = vmatmul.mubr.bf16.gmra.mrb[0].mxu0 %v653
  %v768 = vpop.f32.mrb[0].mxu0
  %v769 = vadd.f32 %v696, %v768
  %v770 = vpop.f32.mrb[0].mxu0
  %v771 = vadd.f32 %v698, %v770
  %v772 = vpop.f32.mrb[0].mxu0
  %v773 = vadd.f32 %v700, %v772
  %v774 = vpop.f32.mrb[0].mxu0
  %v775 = vadd.f32 %v702, %v774
  %776 = vmatprep.mubr.bf16.mxu0 0
  %777 = vmatmul.mubr.bf16.gmra.mrb[0].mxu0 %v654
  %v778 = vpop.f32.mrb[0].mxu0
  %v779 = vadd.f32 %v706, %v778
  %v780 = vpop.f32.mrb[0].mxu0
  %v781 = vadd.f32 %v708, %v780
  %v782 = vpop.f32.mrb[0].mxu0
  %v783 = vadd.f32 %v710, %v782
  %v784 = vpop.f32.mrb[0].mxu0
  %v785 = vadd.f32 %v712, %v784
  %786 = vmatprep.mubr.bf16.mxu0 0
  %787 = vmatmul.mubr.bf16.gmra.mrb[0].mxu0 %v655
  %v788 = vpop.f32.mrb[0].mxu0
  %v789 = vadd.f32 %v716, %v788
  %v790 = vpop.f32.mrb[0].mxu0
  %v791 = vadd.f32 %v718, %v790
  %v792 = vpop.f32.mrb[0].mxu0
  %v793 = vadd.f32 %v720, %v792
  %v794 = vpop.f32.mrb[0].mxu0
  %v795 = vadd.f32 %v722, %v794
  %796 = vmatprep.mubr.bf16.mxu0 0
  %797 = vmatmul.mubr.bf16.gmra.mrb[0].mxu0 %v656
  %v798 = vpop.f32.mrb[0].mxu0
  %v799 = vadd.f32 %v726, %v798
  %v800 = vpop.f32.mrb[0].mxu0
  %v801 = vadd.f32 %v728, %v800
  %v802 = vpop.f32.mrb[0].mxu0
  %v803 = vadd.f32 %v730, %v802
  %v804 = vpop.f32.mrb[0].mxu0
  %v805 = vadd.f32 %v732, %v804
  %806 = vdwg.mxu0
  %v815 = vunpack.c.l.b16 %v629
  %v816 = vunpack.c.l.b16 %v630
  %v817 = vunpack.c.l.b16 %v631
  %v818 = vunpack.c.l.b16 %v632
  %v819 = vunpack.c.l.b16 %v633
  %v820 = vunpack.c.l.b16 %v634
  %v821 = vunpack.c.l.b16 %v635
  %v822 = vunpack.c.l.b16 %v636
  %v823 = vpack.c.b16 %v816, %v815
  %v824 = vpack.c.b16 %v818, %v817
  %v825 = vpack.c.b16 %v820, %v819
  %v826 = vpack.c.b16 %v822, %v821
  %831 = vmatprep.subr.bf16.mxu0 %v525
  %832 = vmatpush1.bf16.msra.mxu0 %v524
  %833 = vmatprep.subr.bf16.mxu0 %v527
  %834 = vmatpush1.bf16.msra.mxu0 %v526
  %835 = vmatprep.subr.bf16.mxu0 %v529
  %836 = vmatpush1.bf16.msra.mxu0 %v528
  %837 = vmatprep.subr.bf16.mxu0 %v531
  %838 = vmatpush1.bf16.msra.mxu0 %v530
  %839 = vmatprep.subr.bf16.mxu0 %v533
  %840 = vmatpush1.bf16.msra.mxu0 %v532
  %841 = vmatprep.subr.bf16.mxu0 %v535
  %842 = vmatpush1.bf16.msra.mxu0 %v534
  %843 = vmatprep.subr.bf16.mxu0 %v537
  %844 = vmatpush1.bf16.msra.mxu0 %v536
  %845 = vmatprep.subr.bf16.mxu0 %v539
  %846 = vmatpush1.bf16.msra.mxu0 %v538
  %847 = vmatprep.subr.bf16.mxu0 0
  %848 = vmatpush1.bf16.msra.mxu0 0
  %849 = vmatprep.subr.bf16.mxu0 0
  %850 = vmatpush1.bf16.msra.mxu0 0
  %851 = vmatprep.subr.bf16.mxu0 0
  %852 = vmatpush1.bf16.msra.mxu0 0
  %853 = vmatprep.subr.bf16.mxu0 0
  %854 = vmatpush1.bf16.msra.mxu0 0
  %855 = vmatprep.subr.bf16.mxu0 0
  %856 = vmatpush1.bf16.msra.mxu0 0
  %857 = vmatprep.subr.bf16.mxu0 0
  %858 = vmatpush1.bf16.msra.mxu0 0
  %859 = vmatprep.subr.bf16.mxu0 0
  %860 = vmatpush1.bf16.msra.mxu0 0
  %861 = vmatprep.subr.bf16.mxu0 0
  %862 = vmatpush1.bf16.msra.mxu0 0
  %863 = vmatprep.mubr.bf16.mxu0 0
  %864 = vmatmul.mubr.bf16.gmra.mrb[0].mxu0 %v823
  %v865 = vpop.f32.mrb[0].mxu0
  %v866 = vadd.f32 0.0, %v865
  %v867 = vpop.f32.mrb[0].mxu0
  %v868 = vadd.f32 0.0, %v867
  %v869 = vpop.f32.mrb[0].mxu0
  %v870 = vadd.f32 0.0, %v869
  %v871 = vpop.f32.mrb[0].mxu0
  %v872 = vadd.f32 0.0, %v871
  %873 = vmatprep.mubr.bf16.mxu0 0
  %874 = vmatmul.mubr.bf16.gmra.mrb[0].mxu0 %v824
  %v875 = vpop.f32.mrb[0].mxu0
  %v876 = vadd.f32 0.0, %v875
  %v877 = vpop.f32.mrb[0].mxu0
  %v878 = vadd.f32 0.0, %v877
  %v879 = vpop.f32.mrb[0].mxu0
  %v880 = vadd.f32 0.0, %v879
  %v881 = vpop.f32.mrb[0].mxu0
  %v882 = vadd.f32 0.0, %v881
  %883 = vmatprep.mubr.bf16.mxu0 0
  %884 = vmatmul.mubr.bf16.gmra.mrb[0].mxu0 %v825
  %v885 = vpop.f32.mrb[0].mxu0
  %v886 = vadd.f32 0.0, %v885
  %v887 = vpop.f32.mrb[0].mxu0
  %v888 = vadd.f32 0.0, %v887
  %v889 = vpop.f32.mrb[0].mxu0
  %v890 = vadd.f32 0.0, %v889
  %v891 = vpop.f32.mrb[0].mxu0
  %v892 = vadd.f32 0.0, %v891
  %893 = vmatprep.mubr.bf16.mxu0 0
  %894 = vmatmul.mubr.bf16.gmra.mrb[0].mxu0 %v826
  %v895 = vpop.f32.mrb[0].mxu0
  %v896 = vadd.f32 0.0, %v895
  %v897 = vpop.f32.mrb[0].mxu0
  %v898 = vadd.f32 0.0, %v897
  %v899 = vpop.f32.mrb[0].mxu0
  %v900 = vadd.f32 0.0, %v899
  %v901 = vpop.f32.mrb[0].mxu0
  %v902 = vadd.f32 0.0, %v901
  %903 = vdwg.mxu0
  %v904 = vadd.f32 %v769, %v866
  %v905 = vadd.f32 %v771, %v868
  %v906 = vadd.f32 %v773, %v870
  %v907 = vadd.f32 %v775, %v872
  %v908 = vadd.f32 %v779, %v876
  %v909 = vadd.f32 %v781, %v878
  %v910 = vadd.f32 %v783, %v880
  %v911 = vadd.f32 %v785, %v882
  %v912 = vadd.f32 %v789, %v886
  %v913 = vadd.f32 %v791, %v888
  %v914 = vadd.f32 %v793, %v890
  %v915 = vadd.f32 %v795, %v892
  %v916 = vadd.f32 %v799, %v896
  %v917 = vadd.f32 %v801, %v898
  %v918 = vadd.f32 %v803, %v900
  %v919 = vadd.f32 %v805, %v902
  %v920 = vld [vmem:[%s2] sm:$0xff]
  %v921 = vld [vmem:[%s2 + $0x8] sm:$0xff]
  %v922 = vld [vmem:[%s2 + $0x10] sm:$0xff]
  %v923 = vld [vmem:[%s2 + $0x18] sm:$0xff]
  %v924 = vld [vmem:[%s2 + $0x20] sm:$0xff]
  %v925 = vld [vmem:[%s2 + $0x28] sm:$0xff]
  %v926 = vld [vmem:[%s2 + $0x30] sm:$0xff]
  %v927 = vld [vmem:[%s2 + $0x38] sm:$0xff]
  %v928 = vld [vmem:[%s3] sm:$0xff]
  %v929 = vld [vmem:[%s3 + $0x8] sm:$0xff]
  %v930 = vld [vmem:[%s3 + $0x10] sm:$0xff]
  %v931 = vld [vmem:[%s3 + $0x18] sm:$0xff]
  %v932 = vld [vmem:[%s3 + $0x20] sm:$0xff]
  %v933 = vld [vmem:[%s3 + $0x28] sm:$0xff]
  %v934 = vld [vmem:[%s3 + $0x30] sm:$0xff]
  %v935 = vld [vmem:[%s3 + $0x38] sm:$0xff]
  %v936 = vadd.f32 %v904, %v905
  %937 = vadd.xlane.f32.xlu0 %v936
  %v938 = vpop.xlane.xlu0 %937
  %v939 = vadd.f32 %v906, %v907
  %940 = vadd.xlane.f32.xlu0 %v939
  %v941 = vpop.xlane.xlu0 %940
  %v942 = vadd.f32 %v908, %v909
  %943 = vadd.xlane.f32.xlu0 %v942
  %v944 = vpop.xlane.xlu0 %943
  %v945 = vadd.f32 %v910, %v911
  %946 = vadd.xlane.f32.xlu0 %v945
  %v947 = vpop.xlane.xlu0 %946
  %v948 = vadd.f32 %v912, %v913
  %949 = vadd.xlane.f32.xlu0 %v948
  %v950 = vpop.xlane.xlu0 %949
  %v951 = vadd.f32 %v914, %v915
  %952 = vadd.xlane.f32.xlu0 %v951
  %v953 = vpop.xlane.xlu0 %952
  %v954 = vadd.f32 %v916, %v917
  %955 = vadd.xlane.f32.xlu0 %v954
  %v956 = vpop.xlane.xlu0 %955
  %v957 = vadd.f32 %v918, %v919
  %958 = vadd.xlane.f32.xlu0 %v957
  %v959 = vpop.xlane.xlu0 %958
  %v960 = vmul.f32 %v904, %v904
  %v961 = vmul.f32 %v905, %v905
  %v962 = vmul.f32 %v906, %v906
  %v963 = vmul.f32 %v907, %v907
  %v964 = vmul.f32 %v908, %v908
  %v965 = vmul.f32 %v909, %v909
  %v966 = vmul.f32 %v910, %v910
  %v967 = vmul.f32 %v911, %v911
  %v968 = vmul.f32 %v912, %v912
  %v969 = vmul.f32 %v913, %v913
  %v970 = vmul.f32 %v914, %v914
  %v971 = vmul.f32 %v915, %v915
  %v972 = vmul.f32 %v916, %v916
  %v973 = vmul.f32 %v917, %v917
  %v974 = vmul.f32 %v918, %v918
  %v975 = vmul.f32 %v919, %v919
  %v976 = vadd.f32 %v960, %v961
  %977 = vadd.xlane.f32.xlu0 %v976
  %v978 = vpop.xlane.xlu0 %977
  %v979 = vadd.f32 %v962, %v963
  %980 = vadd.xlane.f32.xlu0 %v979
  %v981 = vpop.xlane.xlu0 %980
  %v982 = vadd.f32 %v964, %v965
  %983 = vadd.xlane.f32.xlu0 %v982
  %v984 = vpop.xlane.xlu0 %983
  %v985 = vadd.f32 %v966, %v967
  %986 = vadd.xlane.f32.xlu0 %v985
  %v987 = vpop.xlane.xlu0 %986
  %v988 = vadd.f32 %v968, %v969
  %989 = vadd.xlane.f32.xlu0 %v988
  %v990 = vpop.xlane.xlu0 %989
  %v991 = vadd.f32 %v970, %v971
  %992 = vadd.xlane.f32.xlu0 %v991
  %v993 = vpop.xlane.xlu0 %992
  %v994 = vadd.f32 %v972, %v973
  %995 = vadd.xlane.f32.xlu0 %v994
  %v996 = vpop.xlane.xlu0 %995
  %v997 = vadd.f32 %v974, %v975
  %998 = vadd.xlane.f32.xlu0 %v997
  %v999 = vpop.xlane.xlu0 %998
  %v1000 = vmul.f32 %v938, 0.0051020407
  %v1001 = vmul.f32 %v941, 0.0051020407
  %v1002 = vmul.f32 %v944, 0.0051020407
  %v1003 = vmul.f32 %v947, 0.0051020407
  %v1004 = vmul.f32 %v950, 0.0051020407
  %v1005 = vmul.f32 %v953, 0.0051020407
  %v1006 = vmul.f32 %v956, 0.0051020407
  %v1007 = vmul.f32 %v959, 0.0051020407
  %v1008 = vmul.f32 %v978, 0.0051020407
  %v1009 = vmul.f32 %v981, 0.0051020407
  %v1010 = vmul.f32 %v984, 0.0051020407
  %v1011 = vmul.f32 %v987, 0.0051020407
  %v1012 = vmul.f32 %v990, 0.0051020407
  %v1013 = vmul.f32 %v993, 0.0051020407
  %v1014 = vmul.f32 %v996, 0.0051020407
  %v1015 = vmul.f32 %v999, 0.0051020407
  %v1016 = vmul.f32 %v1000, %v1000
  %v1017 = vmul.f32 %v1001, %v1001
  %v1018 = vmul.f32 %v1002, %v1002
  %v1019 = vmul.f32 %v1003, %v1003
  %v1020 = vmul.f32 %v1004, %v1004
  %v1021 = vmul.f32 %v1005, %v1005
  %v1022 = vmul.f32 %v1006, %v1006
  %v1023 = vmul.f32 %v1007, %v1007
  %v1024 = vsub.f32 %v1008, %v1016
  %v1025 = vsub.f32 %v1009, %v1017
  %v1026 = vsub.f32 %v1010, %v1018
  %v1027 = vsub.f32 %v1011, %v1019
  %v1028 = vsub.f32 %v1012, %v1020
  %v1029 = vsub.f32 %v1013, %v1021
  %v1030 = vsub.f32 %v1014, %v1022
  %v1031 = vsub.f32 %v1015, %v1023
  %v1032 = vsub.f32 %v904, %v1000
  %v1033 = vsub.f32 %v905, %v1000
  %v1034 = vsub.f32 %v906, %v1001
  %v1035 = vsub.f32 %v907, %v1001
  %v1036 = vsub.f32 %v908, %v1002
  %v1037 = vsub.f32 %v909, %v1002
  %v1038 = vsub.f32 %v910, %v1003
  %v1039 = vsub.f32 %v911, %v1003
  %v1040 = vsub.f32 %v912, %v1004
  %v1041 = vsub.f32 %v913, %v1004
  %v1042 = vsub.f32 %v914, %v1005
  %v1043 = vsub.f32 %v915, %v1005
  %v1044 = vsub.f32 %v916, %v1006
  %v1045 = vsub.f32 %v917, %v1006
  %v1046 = vsub.f32 %v918, %v1007
  %v1047 = vsub.f32 %v919, %v1007
  %v1048 = vadd.f32 %v1024, 1e-05
  %v1049 = vadd.f32 %v1025, 1e-05
  %v1050 = vadd.f32 %v1026, 1e-05
  %v1051 = vadd.f32 %v1027, 1e-05
  %v1052 = vadd.f32 %v1028, 1e-05
  %v1053 = vadd.f32 %v1029, 1e-05
  %v1054 = vadd.f32 %v1030, 1e-05
  %v1055 = vadd.f32 %v1031, 1e-05
  %v1056 = vrsqrt.pop %v1048
  %v1057 = vrsqrt.pop %v1049
  %v1058 = vrsqrt.pop %v1050
  %v1059 = vrsqrt.pop %v1051
  %v1060 = vrsqrt.pop %v1052
  %v1061 = vrsqrt.pop %v1053
  %v1062 = vrsqrt.pop %v1054
  %v1063 = vrsqrt.pop %v1055
  %v1064 = vmul.f32 %v1032, %v1056
  %v1065 = vmul.f32 %v1033, %v1056
  %v1066 = vmul.f32 %v1034, %v1057
  %v1067 = vmul.f32 %v1035, %v1057
  %v1068 = vmul.f32 %v1036, %v1058
  %v1069 = vmul.f32 %v1037, %v1058
  %v1070 = vmul.f32 %v1038, %v1059
  %v1071 = vmul.f32 %v1039, %v1059
  %v1072 = vmul.f32 %v1040, %v1060
  %v1073 = vmul.f32 %v1041, %v1060
  %v1074 = vmul.f32 %v1042, %v1061
  %v1075 = vmul.f32 %v1043, %v1061
  %v1076 = vmul.f32 %v1044, %v1062
  %v1077 = vmul.f32 %v1045, %v1062
  %v1078 = vmul.f32 %v1046, %v1063
  %v1079 = vmul.f32 %v1047, %v1063
  %1081 = vset.pattern.permute.xlu0 0
  %1082 = vperm.xlu0 %1081, %v920
  %v1083 = vpop.permute.xlu0 %1082
  %1086 = vset.pattern.permute.xlu0 0
  %1087 = vperm.xlu0 %1086, %v921
  %v1088 = vpop.permute.xlu0 %1087
  %1091 = vset.pattern.permute.xlu0 0
  %1092 = vperm.xlu0 %1091, %v922
  %v1093 = vpop.permute.xlu0 %1092
  %1096 = vset.pattern.permute.xlu0 0
  %1097 = vperm.xlu0 %1096, %v923
  %v1098 = vpop.permute.xlu0 %1097
  %1101 = vset.pattern.permute.xlu0 0
  %1102 = vperm.xlu0 %1101, %v924
  %v1103 = vpop.permute.xlu0 %1102
  %1106 = vset.pattern.permute.xlu0 0
  %1107 = vperm.xlu0 %1106, %v925
  %v1108 = vpop.permute.xlu0 %1107
  %1111 = vset.pattern.permute.xlu0 0
  %1112 = vperm.xlu0 %1111, %v926
  %v1113 = vpop.permute.xlu0 %1112
  %1116 = vset.pattern.permute.xlu0 0
  %1117 = vperm.xlu0 %1116, %v927
  %v1118 = vpop.permute.xlu0 %1117
  %v1120 = vmul.f32 %v1064, %v1083
  %v1121 = vmul.f32 %v1065, %v1083
  %v1122 = vmul.f32 %v1066, %v1088
  %v1123 = vmul.f32 %v1067, %v1088
  %v1124 = vmul.f32 %v1068, %v1093
  %v1125 = vmul.f32 %v1069, %v1093
  %v1126 = vmul.f32 %v1070, %v1098
  %v1127 = vmul.f32 %v1071, %v1098
  %v1128 = vmul.f32 %v1072, %v1103
  %v1129 = vmul.f32 %v1073, %v1103
  %v1130 = vmul.f32 %v1074, %v1108
  %v1131 = vmul.f32 %v1075, %v1108
  %v1132 = vmul.f32 %v1076, %v1113
  %v1133 = vmul.f32 %v1077, %v1113
  %v1134 = vmul.f32 %v1078, %v1118
  %v1135 = vmul.f32 %v1079, %v1118
  %1137 = vset.pattern.permute.xlu0 0
  %1138 = vperm.xlu0 %1137, %v928
  %v1139 = vpop.permute.xlu0 %1138
  %1142 = vset.pattern.permute.xlu0 0
  %1143 = vperm.xlu0 %1142, %v929
  %v1144 = vpop.permute.xlu0 %1143
  %1147 = vset.pattern.permute.xlu0 0
  %1148 = vperm.xlu0 %1147, %v930
  %v1149 = vpop.permute.xlu0 %1148
  %1152 = vset.pattern.permute.xlu0 0
  %1153 = vperm.xlu0 %1152, %v931
  %v1154 = vpop.permute.xlu0 %1153
  %1157 = vset.pattern.permute.xlu0 0
  %1158 = vperm.xlu0 %1157, %v932
  %v1159 = vpop.permute.xlu0 %1158
  %1162 = vset.pattern.permute.xlu0 0
  %1163 = vperm.xlu0 %1162, %v933
  %v1164 = vpop.permute.xlu0 %1163
  %1167 = vset.pattern.permute.xlu0 0
  %1168 = vperm.xlu0 %1167, %v934
  %v1169 = vpop.permute.xlu0 %1168
  %1172 = vset.pattern.permute.xlu0 0
  %1173 = vperm.xlu0 %1172, %v935
  %v1174 = vpop.permute.xlu0 %1173
  %v1176 = vadd.f32 %v1120, %v1139
  %v1177 = vadd.f32 %v1121, %v1139
  %v1178 = vadd.f32 %v1122, %v1144
  %v1179 = vadd.f32 %v1123, %v1144
  %v1180 = vadd.f32 %v1124, %v1149
  %v1181 = vadd.f32 %v1125, %v1149
  %v1182 = vadd.f32 %v1126, %v1154
  %v1183 = vadd.f32 %v1127, %v1154
  %v1184 = vadd.f32 %v1128, %v1159
  %v1185 = vadd.f32 %v1129, %v1159
  %v1186 = vadd.f32 %v1130, %v1164
  %v1187 = vadd.f32 %v1131, %v1164
  %v1188 = vadd.f32 %v1132, %v1169
  %v1189 = vadd.f32 %v1133, %v1169
  %v1190 = vadd.f32 %v1134, %v1174
  %v1191 = vadd.f32 %v1135, %v1174
  %v1192 = vmax.f32 %v1176, 0.0
  %v1193 = vmax.f32 %v1177, 0.0
  %v1194 = vmax.f32 %v1178, 0.0
  %v1195 = vmax.f32 %v1179, 0.0
  %v1196 = vmax.f32 %v1180, 0.0
  %v1197 = vmax.f32 %v1181, 0.0
  %v1198 = vmax.f32 %v1182, 0.0
  %v1199 = vmax.f32 %v1183, 0.0
  %v1200 = vmax.f32 %v1184, 0.0
  %v1201 = vmax.f32 %v1185, 0.0
  %v1202 = vmax.f32 %v1186, 0.0
  %v1203 = vmax.f32 %v1187, 0.0
  %v1204 = vmax.f32 %v1188, 0.0
  %v1205 = vmax.f32 %v1189, 0.0
  %v1206 = vmax.f32 %v1190, 0.0
  %v1207 = vmax.f32 %v1191, 0.0
  %v1208 = vld [vmem:[%s7] ss:$8 sm:$0x3]
  %s1209 = scalar_lea.vmem %s7, 1
  %v1210 = vld [vmem:[%s1209] ss:$8 sm:$0x3]
  %1211 = vrot.lane.b32.xlu0 %v1192, 1
  %v1212 = vpop.permute.xlu0 %1211
  %1213 = vrot.lane.b32.xlu0 %v1194, 1
  %v1214 = vpop.permute.xlu0 %1213
  %1215 = vrot.lane.b32.xlu0 %v1196, 1
  %v1216 = vpop.permute.xlu0 %1215
  %1217 = vrot.lane.b32.xlu0 %v1198, 1
  %v1218 = vpop.permute.xlu0 %1217
  %1219 = vrot.lane.b32.xlu0 %v1200, 1
  %v1220 = vpop.permute.xlu0 %1219
  %1221 = vrot.lane.b32.xlu0 %v1202, 1
  %v1222 = vpop.permute.xlu0 %1221
  %1223 = vrot.lane.b32.xlu0 %v1204, 1
  %v1224 = vpop.permute.xlu0 %1223
  %1225 = vrot.lane.b32.xlu0 %v1206, 1
  %v1226 = vpop.permute.xlu0 %1225
  %1227 = vrot.lane.b32.xlu0 %v1193, 1
  %v1228 = vpop.permute.xlu0 %1227
  %1229 = vrot.lane.b32.xlu0 %v1195, 1
  %v1230 = vpop.permute.xlu0 %1229
  %1231 = vrot.lane.b32.xlu0 %v1197, 1
  %v1232 = vpop.permute.xlu0 %1231
  %1233 = vrot.lane.b32.xlu0 %v1199, 1
  %v1234 = vpop.permute.xlu0 %1233
  %1235 = vrot.lane.b32.xlu0 %v1201, 1
  %v1236 = vpop.permute.xlu0 %1235
  %1237 = vrot.lane.b32.xlu0 %v1203, 1
  %v1238 = vpop.permute.xlu0 %1237
  %1239 = vrot.lane.b32.xlu0 %v1205, 1
  %v1240 = vpop.permute.xlu0 %1239
  %1241 = vrot.lane.b32.xlu0 %v1207, 1
  %v1242 = vpop.permute.xlu0 %1241
  %v1243 = vlaneseq
  %v1244 = vand.u32 %v1243, 127
  %vm1245 = vcmp.lt.s32.totalorder %v1244, 1
  %v1246 = vsel %vm1245, %v1212, %v1228
  %v1247 = vsel %vm1245, %v1214, %v1230
  %v1248 = vsel %vm1245, %v1216, %v1232
  %v1249 = vsel %vm1245, %v1218, %v1234
  %v1250 = vsel %vm1245, %v1220, %v1236
  %v1251 = vsel %vm1245, %v1222, %v1238
  %v1252 = vsel %vm1245, %v1224, %v1240
  %v1253 = vsel %vm1245, %v1226, %v1242
  %v1254 = vsel %vm1245, %v1228, %v1212
  %v1255 = vsel %vm1245, %v1230, %v1214
  %v1256 = vsel %vm1245, %v1232, %v1216
  %v1257 = vsel %vm1245, %v1234, %v1218
  %v1258 = vsel %vm1245, %v1236, %v1220
  %v1259 = vsel %vm1245, %v1238, %v1222
  %v1260 = vsel %vm1245, %v1240, %v1224
  %v1261 = vsel %vm1245, %v1242, %v1226
  %v1263 = vlaneseq
  %v1264 = vshrl.u32 %v1263, 7
  %v1265 = vsub.s32 0, %v1264
  %v1266 = vrot.slane %v1208, %v1265
  %v1267 = vlaneseq
  %v1268 = vshrl.u32 %v1267, 7
  %v1269 = vsub.s32 1, %v1268
  %v1270 = vrot.slane %v1208, %v1269
  %v1273 = vmul.f32 %v1254, %v1266
  %v1274 = vmul.f32 %v1246, %v1270
  %v1275 = vmul.f32 %v1255, %v1266
  %v1276 = vmul.f32 %v1247, %v1270
  %v1277 = vmul.f32 %v1256, %v1266
  %v1278 = vmul.f32 %v1248, %v1270
  %v1279 = vmul.f32 %v1257, %v1266
  %v1280 = vmul.f32 %v1249, %v1270
  %v1281 = vmul.f32 %v1258, %v1266
  %v1282 = vmul.f32 %v1250, %v1270
  %v1283 = vmul.f32 %v1259, %v1266
  %v1284 = vmul.f32 %v1251, %v1270
  %v1285 = vmul.f32 %v1260, %v1266
  %v1286 = vmul.f32 %v1252, %v1270
  %v1287 = vmul.f32 %v1261, %v1266
  %v1288 = vmul.f32 %v1253, %v1270
  %1289 = vrot.lane.b32.xlu0 %v1192, 127
  %v1290 = vpop.permute.xlu0 %1289
  %1291 = vrot.lane.b32.xlu0 %v1194, 127
  %v1292 = vpop.permute.xlu0 %1291
  %1293 = vrot.lane.b32.xlu0 %v1196, 127
  %v1294 = vpop.permute.xlu0 %1293
  %1295 = vrot.lane.b32.xlu0 %v1198, 127
  %v1296 = vpop.permute.xlu0 %1295
  %1297 = vrot.lane.b32.xlu0 %v1200, 127
  %v1298 = vpop.permute.xlu0 %1297
  %1299 = vrot.lane.b32.xlu0 %v1202, 127
  %v1300 = vpop.permute.xlu0 %1299
  %1301 = vrot.lane.b32.xlu0 %v1204, 127
  %v1302 = vpop.permute.xlu0 %1301
  %1303 = vrot.lane.b32.xlu0 %v1206, 127
  %v1304 = vpop.permute.xlu0 %1303
  %1305 = vrot.lane.b32.xlu0 %v1193, 127
  %v1306 = vpop.permute.xlu0 %1305
  %1307 = vrot.lane.b32.xlu0 %v1195, 127
  %v1308 = vpop.permute.xlu0 %1307
  %1309 = vrot.lane.b32.xlu0 %v1197, 127
  %v1310 = vpop.permute.xlu0 %1309
  %1311 = vrot.lane.b32.xlu0 %v1199, 127
  %v1312 = vpop.permute.xlu0 %1311
  %1313 = vrot.lane.b32.xlu0 %v1201, 127
  %v1314 = vpop.permute.xlu0 %1313
  %1315 = vrot.lane.b32.xlu0 %v1203, 127
  %v1316 = vpop.permute.xlu0 %1315
  %1317 = vrot.lane.b32.xlu0 %v1205, 127
  %v1318 = vpop.permute.xlu0 %1317
  %1319 = vrot.lane.b32.xlu0 %v1207, 127
  %v1320 = vpop.permute.xlu0 %1319
  %vm1321 = vcmp.lt.s32.totalorder %v1244, 127
  %v1322 = vsel %vm1321, %v1290, %v1306
  %v1323 = vsel %vm1321, %v1292, %v1308
  %v1324 = vsel %vm1321, %v1294, %v1310
  %v1325 = vsel %vm1321, %v1296, %v1312
  %v1326 = vsel %vm1321, %v1298, %v1314
  %v1327 = vsel %vm1321, %v1300, %v1316
  %v1328 = vsel %vm1321, %v1302, %v1318
  %v1329 = vsel %vm1321, %v1304, %v1320
  %v1330 = vsel %vm1321, %v1306, %v1290
  %v1331 = vsel %vm1321, %v1308, %v1292
  %v1332 = vsel %vm1321, %v1310, %v1294
  %v1333 = vsel %vm1321, %v1312, %v1296
  %v1334 = vsel %vm1321, %v1314, %v1298
  %v1335 = vsel %vm1321, %v1316, %v1300
  %v1336 = vsel %vm1321, %v1318, %v1302
  %v1337 = vsel %vm1321, %v1320, %v1304
  %v1339 = vlaneseq
  %v1340 = vshrl.u32 %v1339, 7
  %v1341 = vsub.s32 0, %v1340
  %v1342 = vrot.slane %v1210, %v1341
  %v1343 = vlaneseq
  %v1344 = vshrl.u32 %v1343, 7
  %v1345 = vsub.s32 1, %v1344
  %v1346 = vrot.slane %v1210, %v1345
  %v1349 = vmul.f32 %v1322, %v1342
  %v1350 = vmul.f32 %v1330, %v1346
  %v1351 = vmul.f32 %v1323, %v1342
  %v1352 = vmul.f32 %v1331, %v1346
  %v1353 = vmul.f32 %v1324, %v1342
  %v1354 = vmul.f32 %v1332, %v1346
  %v1355 = vmul.f32 %v1325, %v1342
  %v1356 = vmul.f32 %v1333, %v1346
  %v1357 = vmul.f32 %v1326, %v1342
  %v1358 = vmul.f32 %v1334, %v1346
  %v1359 = vmul.f32 %v1327, %v1342
  %v1360 = vmul.f32 %v1335, %v1346
  %v1361 = vmul.f32 %v1328, %v1342
  %v1362 = vmul.f32 %v1336, %v1346
  %v1363 = vmul.f32 %v1329, %v1342
  %v1364 = vmul.f32 %v1337, %v1346
  %v1365 = vpack.c.bf16 %v1275, %v1273
  %v1366 = vpack.c.bf16 %v1276, %v1274
  %v1367 = vpack.c.bf16 %v1279, %v1277
  %v1368 = vpack.c.bf16 %v1280, %v1278
  %v1369 = vpack.c.bf16 %v1283, %v1281
  %v1370 = vpack.c.bf16 %v1284, %v1282
  %v1371 = vpack.c.bf16 %v1287, %v1285
  %v1372 = vpack.c.bf16 %v1288, %v1286
  %v1373 = vunpack.c.l.bf16 %v1365
  %v1374 = vunpack.c.l.bf16 %v1366
  %v1375 = vunpack.c.h.bf16 %v1365
  %v1376 = vunpack.c.h.bf16 %v1366
  %v1377 = vunpack.c.l.bf16 %v1367
  %v1378 = vunpack.c.l.bf16 %v1368
  %v1379 = vunpack.c.h.bf16 %v1367
  %v1380 = vunpack.c.h.bf16 %v1368
  %v1381 = vunpack.c.l.bf16 %v1369
  %v1382 = vunpack.c.l.bf16 %v1370
  %v1383 = vunpack.c.h.bf16 %v1369
  %v1384 = vunpack.c.h.bf16 %v1370
  %v1385 = vunpack.c.l.bf16 %v1371
  %v1386 = vunpack.c.l.bf16 %v1372
  %v1387 = vunpack.c.h.bf16 %v1371
  %v1388 = vunpack.c.h.bf16 %v1372
  %v1389 = vsub.f32 %v1273, %v1373
  %v1390 = vsub.f32 %v1274, %v1374
  %v1391 = vsub.f32 %v1275, %v1375
  %v1392 = vsub.f32 %v1276, %v1376
  %v1393 = vsub.f32 %v1277, %v1377
  %v1394 = vsub.f32 %v1278, %v1378
  %v1395 = vsub.f32 %v1279, %v1379
  %v1396 = vsub.f32 %v1280, %v1380
  %v1397 = vsub.f32 %v1281, %v1381
  %v1398 = vsub.f32 %v1282, %v1382
  %v1399 = vsub.f32 %v1283, %v1383
  %v1400 = vsub.f32 %v1284, %v1384
  %v1401 = vsub.f32 %v1285, %v1385
  %v1402 = vsub.f32 %v1286, %v1386
  %v1403 = vsub.f32 %v1287, %v1387
  %v1404 = vsub.f32 %v1288, %v1388
  %v1405 = vpack.c.bf16 %v1391, %v1389
  %v1406 = vpack.c.bf16 %v1392, %v1390
  %v1407 = vpack.c.bf16 %v1395, %v1393
  %v1408 = vpack.c.bf16 %v1396, %v1394
  %v1409 = vpack.c.bf16 %v1399, %v1397
  %v1410 = vpack.c.bf16 %v1400, %v1398
  %v1411 = vpack.c.bf16 %v1403, %v1401
  %v1412 = vpack.c.bf16 %v1404, %v1402
  %1413 = vst [vmem:[#allocation3] sm:$0xff] %v1365
  %1414 = vst [vmem:[#allocation3 + $0x8] sm:$0xff] %v1366
  %1415 = vst [vmem:[#allocation3 + $0x10] sm:$0xff] %v1367
  %1416 = vst [vmem:[#allocation3 + $0x18] sm:$0xff] %v1368
  %1417 = vst [vmem:[#allocation3 + $0x20] sm:$0xff] %v1369
  %1418 = vst [vmem:[#allocation3 + $0x28] sm:$0xff] %v1370
  %1419 = vst [vmem:[#allocation3 + $0x30] sm:$0xff] %v1371
  %1420 = vst [vmem:[#allocation3 + $0x38] sm:$0xff] %v1372
  %1421 = vst [vmem:[#allocation4] sm:$0xff] %v1405
  %1422 = vst [vmem:[#allocation4 + $0x8] sm:$0xff] %v1406
  %1423 = vst [vmem:[#allocation4 + $0x10] sm:$0xff] %v1407
  %1424 = vst [vmem:[#allocation4 + $0x18] sm:$0xff] %v1408
  %1425 = vst [vmem:[#allocation4 + $0x20] sm:$0xff] %v1409
  %1426 = vst [vmem:[#allocation4 + $0x28] sm:$0xff] %v1410
  %1427 = vst [vmem:[#allocation4 + $0x30] sm:$0xff] %v1411
  %1428 = vst [vmem:[#allocation4 + $0x38] sm:$0xff] %v1412
  %v1429 = vpack.c.bf16 %v1194, %v1192
  %v1430 = vpack.c.bf16 %v1195, %v1193
  %v1431 = vpack.c.bf16 %v1198, %v1196
  %v1432 = vpack.c.bf16 %v1199, %v1197
  %v1433 = vpack.c.bf16 %v1202, %v1200
  %v1434 = vpack.c.bf16 %v1203, %v1201
  %v1435 = vpack.c.bf16 %v1206, %v1204
  %v1436 = vpack.c.bf16 %v1207, %v1205
  %v1437 = vunpack.c.l.bf16 %v1429
  %v1438 = vunpack.c.l.bf16 %v1430
  %v1439 = vunpack.c.h.bf16 %v1429
  %v1440 = vunpack.c.h.bf16 %v1430
  %v1441 = vunpack.c.l.bf16 %v1431
  %v1442 = vunpack.c.l.bf16 %v1432
  %v1443 = vunpack.c.h.bf16 %v1431
  %v1444 = vunpack.c.h.bf16 %v1432
  %v1445 = vunpack.c.l.bf16 %v1433
  %v1446 = vunpack.c.l.bf16 %v1434
  %v1447 = vunpack.c.h.bf16 %v1433
  %v1448 = vunpack.c.h.bf16 %v1434
  %v1449 = vunpack.c.l.bf16 %v1435
  %v1450 = vunpack.c.l.bf16 %v1436
  %v1451 = vunpack.c.h.bf16 %v1435
  %v1452 = vunpack.c.h.bf16 %v1436
  %v1453 = vsub.f32 %v1192, %v1437
  %v1454 = vsub.f32 %v1193, %v1438
  %v1455 = vsub.f32 %v1194, %v1439
  %v1456 = vsub.f32 %v1195, %v1440
  %v1457 = vsub.f32 %v1196, %v1441
  %v1458 = vsub.f32 %v1197, %v1442
  %v1459 = vsub.f32 %v1198, %v1443
  %v1460 = vsub.f32 %v1199, %v1444
  %v1461 = vsub.f32 %v1200, %v1445
  %v1462 = vsub.f32 %v1201, %v1446
  %v1463 = vsub.f32 %v1202, %v1447
  %v1464 = vsub.f32 %v1203, %v1448
  %v1465 = vsub.f32 %v1204, %v1449
  %v1466 = vsub.f32 %v1205, %v1450
  %v1467 = vsub.f32 %v1206, %v1451
  %v1468 = vsub.f32 %v1207, %v1452
  %v1469 = vpack.c.bf16 %v1455, %v1453
  %v1470 = vpack.c.bf16 %v1456, %v1454
  %v1471 = vpack.c.bf16 %v1459, %v1457
  %v1472 = vpack.c.bf16 %v1460, %v1458
  %v1473 = vpack.c.bf16 %v1463, %v1461
  %v1474 = vpack.c.bf16 %v1464, %v1462
  %v1475 = vpack.c.bf16 %v1467, %v1465
  %v1476 = vpack.c.bf16 %v1468, %v1466
  %1477 = vst [vmem:[#allocation3 + $0x40] sm:$0xff] %v1429
  %1478 = vst [vmem:[#allocation3 + $0x48] sm:$0xff] %v1430
  %1479 = vst [vmem:[#allocation3 + $0x50] sm:$0xff] %v1431
  %1480 = vst [vmem:[#allocation3 + $0x58] sm:$0xff] %v1432
  %1481 = vst [vmem:[#allocation3 + $0x60] sm:$0xff] %v1433
  %1482 = vst [vmem:[#allocation3 + $0x68] sm:$0xff] %v1434
  %1483 = vst [vmem:[#allocation3 + $0x70] sm:$0xff] %v1435
  %1484 = vst [vmem:[#allocation3 + $0x78] sm:$0xff] %v1436
  %1485 = vst [vmem:[#allocation4 + $0x40] sm:$0xff] %v1469
  %1486 = vst [vmem:[#allocation4 + $0x48] sm:$0xff] %v1470
  %1487 = vst [vmem:[#allocation4 + $0x50] sm:$0xff] %v1471
  %1488 = vst [vmem:[#allocation4 + $0x58] sm:$0xff] %v1472
  %1489 = vst [vmem:[#allocation4 + $0x60] sm:$0xff] %v1473
  %1490 = vst [vmem:[#allocation4 + $0x68] sm:$0xff] %v1474
  %1491 = vst [vmem:[#allocation4 + $0x70] sm:$0xff] %v1475
  %1492 = vst [vmem:[#allocation4 + $0x78] sm:$0xff] %v1476
  %v1493 = vpack.c.bf16 %v1351, %v1349
  %v1494 = vpack.c.bf16 %v1352, %v1350
  %v1495 = vpack.c.bf16 %v1355, %v1353
  %v1496 = vpack.c.bf16 %v1356, %v1354
  %v1497 = vpack.c.bf16 %v1359, %v1357
  %v1498 = vpack.c.bf16 %v1360, %v1358
  %v1499 = vpack.c.bf16 %v1363, %v1361
  %v1500 = vpack.c.bf16 %v1364, %v1362
  %v1501 = vunpack.c.l.bf16 %v1493
  %v1502 = vunpack.c.l.bf16 %v1494
  %v1503 = vunpack.c.h.bf16 %v1493
  %v1504 = vunpack.c.h.bf16 %v1494
  %v1505 = vunpack.c.l.bf16 %v1495
  %v1506 = vunpack.c.l.bf16 %v1496
  %v1507 = vunpack.c.h.bf16 %v1495
  %v1508 = vunpack.c.h.bf16 %v1496
  %v1509 = vunpack.c.l.bf16 %v1497
  %v1510 = vunpack.c.l.bf16 %v1498
  %v1511 = vunpack.c.h.bf16 %v1497
  %v1512 = vunpack.c.h.bf16 %v1498
  %v1513 = vunpack.c.l.bf16 %v1499
  %v1514 = vunpack.c.l.bf16 %v1500
  %v1515 = vunpack.c.h.bf16 %v1499
  %v1516 = vunpack.c.h.bf16 %v1500
  %v1517 = vsub.f32 %v1349, %v1501
  %v1518 = vsub.f32 %v1350, %v1502
  %v1519 = vsub.f32 %v1351, %v1503
  %v1520 = vsub.f32 %v1352, %v1504
  %v1521 = vsub.f32 %v1353, %v1505
  %v1522 = vsub.f32 %v1354, %v1506
  %v1523 = vsub.f32 %v1355, %v1507
  %v1524 = vsub.f32 %v1356, %v1508
  %v1525 = vsub.f32 %v1357, %v1509
  %v1526 = vsub.f32 %v1358, %v1510
  %v1527 = vsub.f32 %v1359, %v1511
  %v1528 = vsub.f32 %v1360, %v1512
  %v1529 = vsub.f32 %v1361, %v1513
  %v1530 = vsub.f32 %v1362, %v1514
  %v1531 = vsub.f32 %v1363, %v1515
  %v1532 = vsub.f32 %v1364, %v1516
  %v1533 = vpack.c.bf16 %v1519, %v1517
  %v1534 = vpack.c.bf16 %v1520, %v1518
  %v1535 = vpack.c.bf16 %v1523, %v1521
  %v1536 = vpack.c.bf16 %v1524, %v1522
  %v1537 = vpack.c.bf16 %v1527, %v1525
  %v1538 = vpack.c.bf16 %v1528, %v1526
  %v1539 = vpack.c.bf16 %v1531, %v1529
  %v1540 = vpack.c.bf16 %v1532, %v1530
  %1541 = vst [vmem:[#allocation3 + $0x80] sm:$0xff] %v1493
  %1542 = vst [vmem:[#allocation3 + $0x88] sm:$0xff] %v1494
  %1543 = vst [vmem:[#allocation3 + $0x90] sm:$0xff] %v1495
  %1544 = vst [vmem:[#allocation3 + $0x98] sm:$0xff] %v1496
  %1545 = vst [vmem:[#allocation3 + $0xa0] sm:$0xff] %v1497
  %1546 = vst [vmem:[#allocation3 + $0xa8] sm:$0xff] %v1498
  %1547 = vst [vmem:[#allocation3 + $0xb0] sm:$0xff] %v1499
  %1548 = vst [vmem:[#allocation3 + $0xb8] sm:$0xff] %v1500
  %1549 = vst [vmem:[#allocation4 + $0x80] sm:$0xff] %v1533
  %1550 = vst [vmem:[#allocation4 + $0x88] sm:$0xff] %v1534
  %1551 = vst [vmem:[#allocation4 + $0x90] sm:$0xff] %v1535
  %1552 = vst [vmem:[#allocation4 + $0x98] sm:$0xff] %v1536
  %1553 = vst [vmem:[#allocation4 + $0xa0] sm:$0xff] %v1537
  %1554 = vst [vmem:[#allocation4 + $0xa8] sm:$0xff] %v1538
  %1555 = vst [vmem:[#allocation4 + $0xb0] sm:$0xff] %v1539
  %1556 = vst [vmem:[#allocation4 + $0xb8] sm:$0xff] %v1540
  %v1557 = vld [vmem:[#allocation3] sm:$0xff]
  %v1558 = vld [vmem:[#allocation3 + $0x8] sm:$0xff]
  %v1559 = vld [vmem:[#allocation3 + $0x10] sm:$0xff]
  %v1560 = vld [vmem:[#allocation3 + $0x18] sm:$0xff]
  %v1561 = vld [vmem:[#allocation3 + $0x20] sm:$0xff]
  %v1562 = vld [vmem:[#allocation3 + $0x28] sm:$0xff]
  %v1563 = vld [vmem:[#allocation3 + $0x30] sm:$0xff]
  %v1564 = vld [vmem:[#allocation3 + $0x38] sm:$0xff]
  %v1565 = vld [vmem:[#allocation3 + $0x40] sm:$0xff]
  %v1566 = vld [vmem:[#allocation3 + $0x48] sm:$0xff]
  %v1567 = vld [vmem:[#allocation3 + $0x50] sm:$0xff]
  %v1568 = vld [vmem:[#allocation3 + $0x58] sm:$0xff]
  %v1569 = vld [vmem:[#allocation3 + $0x60] sm:$0xff]
  %v1570 = vld [vmem:[#allocation3 + $0x68] sm:$0xff]
  %v1571 = vld [vmem:[#allocation3 + $0x70] sm:$0xff]
  %v1572 = vld [vmem:[#allocation3 + $0x78] sm:$0xff]
  %v1573 = vld [vmem:[#allocation3 + $0x80] sm:$0xff]
  %v1574 = vld [vmem:[#allocation3 + $0x88] sm:$0xff]
  %v1575 = vld [vmem:[#allocation3 + $0x90] sm:$0xff]
  %v1576 = vld [vmem:[#allocation3 + $0x98] sm:$0xff]
  %v1577 = vld [vmem:[#allocation3 + $0xa0] sm:$0xff]
  %v1578 = vld [vmem:[#allocation3 + $0xa8] sm:$0xff]
  %v1579 = vld [vmem:[#allocation3 + $0xb0] sm:$0xff]
  %v1580 = vld [vmem:[#allocation3 + $0xb8] sm:$0xff]
  %v1581 = vld [vmem:[#allocation4] sm:$0xff]
  %v1582 = vld [vmem:[#allocation4 + $0x8] sm:$0xff]
  %v1583 = vld [vmem:[#allocation4 + $0x10] sm:$0xff]
  %v1584 = vld [vmem:[#allocation4 + $0x18] sm:$0xff]
  %v1585 = vld [vmem:[#allocation4 + $0x20] sm:$0xff]
  %v1586 = vld [vmem:[#allocation4 + $0x28] sm:$0xff]
  %v1587 = vld [vmem:[#allocation4 + $0x30] sm:$0xff]
  %v1588 = vld [vmem:[#allocation4 + $0x38] sm:$0xff]
  %v1589 = vld [vmem:[#allocation4 + $0x40] sm:$0xff]
  %v1590 = vld [vmem:[#allocation4 + $0x48] sm:$0xff]
  %v1591 = vld [vmem:[#allocation4 + $0x50] sm:$0xff]
  %v1592 = vld [vmem:[#allocation4 + $0x58] sm:$0xff]
  %v1593 = vld [vmem:[#allocation4 + $0x60] sm:$0xff]
  %v1594 = vld [vmem:[#allocation4 + $0x68] sm:$0xff]
  %v1595 = vld [vmem:[#allocation4 + $0x70] sm:$0xff]
  %v1596 = vld [vmem:[#allocation4 + $0x78] sm:$0xff]
  %v1597 = vld [vmem:[#allocation4 + $0x80] sm:$0xff]
  %v1598 = vld [vmem:[#allocation4 + $0x88] sm:$0xff]
  %v1599 = vld [vmem:[#allocation4 + $0x90] sm:$0xff]
  %v1600 = vld [vmem:[#allocation4 + $0x98] sm:$0xff]
  %v1601 = vld [vmem:[#allocation4 + $0xa0] sm:$0xff]
  %v1602 = vld [vmem:[#allocation4 + $0xa8] sm:$0xff]
  %v1603 = vld [vmem:[#allocation4 + $0xb0] sm:$0xff]
  %v1604 = vld [vmem:[#allocation4 + $0xb8] sm:$0xff]
  %s1605 = smul.u32 4, 2
  %s1606 = smul.u32 %s1605, 3
  %s1607 = smul.u32 %s1606, 8
  %s1608 = smul.u32 %s1607, 2
  %s1609 = sshll.u32 %s1608, 4
  %1610 = dma.done [#allocation5], %s1609
  %v1611 = vld [vmem:[#allocation2] sm:$0xff]
  %v1612 = vld [vmem:[#allocation2 + $0x8] sm:$0xff]
  %v1613 = vld [vmem:[#allocation2 + $0x10] sm:$0xff]
  %v1614 = vld [vmem:[#allocation2 + $0x18] sm:$0xff]
  %v1615 = vld [vmem:[#allocation2 + $0x20] sm:$0xff]
  %v1616 = vld [vmem:[#allocation2 + $0x28] sm:$0xff]
  %v1617 = vld [vmem:[#allocation2 + $0x30] sm:$0xff]
  %v1618 = vld [vmem:[#allocation2 + $0x38] sm:$0xff]
  %s1619 = scalar_lea.vmem [#allocation2], 192
  %v1620 = vld [vmem:[%s1619] sm:$0xff]
  %v1621 = vld [vmem:[%s1619 + $0x8] sm:$0xff]
  %v1622 = vld [vmem:[%s1619 + $0x10] sm:$0xff]
  %v1623 = vld [vmem:[%s1619 + $0x18] sm:$0xff]
  %v1624 = vld [vmem:[%s1619 + $0x20] sm:$0xff]
  %v1625 = vld [vmem:[%s1619 + $0x28] sm:$0xff]
  %v1626 = vld [vmem:[%s1619 + $0x30] sm:$0xff]
  %v1627 = vld [vmem:[%s1619 + $0x38] sm:$0xff]
  %vm1628 = vcmask 523264
  %v1630 = vsel %vm1628, %v1612, 0
  %v1633 = vsel %vm1628, %v1614, 0
  %v1636 = vsel %vm1628, %v1616, 0
  %v1639 = vsel %vm1628, %v1618, 0
  %1641 = vmatprep.subr.bf16.mxu0 %v1582
  %1642 = vmatpush1.bf16.msra.mxu0 %v1581
  %1643 = vmatprep.subr.bf16.mxu0 %v1584
  %1644 = vmatpush1.bf16.msra.mxu0 %v1583
  %1645 = vmatprep.subr.bf16.mxu0 %v1586
  %1646 = vmatpush1.bf16.msra.mxu0 %v1585
  %1647 = vmatprep.subr.bf16.mxu0 %v1588
  %1648 = vmatpush1.bf16.msra.mxu0 %v1587
  %1649 = vmatprep.subr.bf16.mxu0 %v1590
  %1650 = vmatpush1.bf16.msra.mxu0 %v1589
  %1651 = vmatprep.subr.bf16.mxu0 %v1592
  %1652 = vmatpush1.bf16.msra.mxu0 %v1591
  %1653 = vmatprep.subr.bf16.mxu0 %v1594
  %1654 = vmatpush1.bf16.msra.mxu0 %v1593
  %1655 = vmatprep.subr.bf16.mxu0 %v1596
  %1656 = vmatpush1.bf16.msra.mxu0 %v1595
  %1657 = vmatprep.subr.bf16.mxu0 %v1598
  %1658 = vmatpush1.bf16.msra.mxu0 %v1597
  %1659 = vmatprep.subr.bf16.mxu0 %v1600
  %1660 = vmatpush1.bf16.msra.mxu0 %v1599
  %1661 = vmatprep.subr.bf16.mxu0 %v1602
  %1662 = vmatpush1.bf16.msra.mxu0 %v1601
  %1663 = vmatprep.subr.bf16.mxu0 %v1604
  %1664 = vmatpush1.bf16.msra.mxu0 %v1603
  %1665 = vmatprep.subr.bf16.mxu0 0
  %1666 = vmatpush1.bf16.msra.mxu0 0
  %1667 = vmatprep.subr.bf16.mxu0 0
  %1668 = vmatpush1.bf16.msra.mxu0 0
  %1669 = vmatprep.subr.bf16.mxu0 0
  %1670 = vmatpush1.bf16.msra.mxu0 0
  %1671 = vmatprep.subr.bf16.mxu0 0
  %1672 = vmatpush1.bf16.msra.mxu0 0
  %1673 = vmatprep.mubr.bf16.mxu0 %v1630
  %1674 = vmatmul.mubr.bf16.gmra.mrb[0].mxu0 %v1611
  %v1675 = vpop.f32.mrb[0].mxu0
  %v1676 = vadd.f32 0.0, %v1675
  %v1677 = vpop.f32.mrb[0].mxu0
  %v1678 = vadd.f32 0.0, %v1677
  %v1679 = vpop.f32.mrb[0].mxu0
  %v1680 = vadd.f32 0.0, %v1679
  %v1681 = vpop.f32.mrb[0].mxu0
  %v1682 = vadd.f32 0.0, %v1681
  %1683 = vmatprep.mubr.bf16.mxu0 %v1633
  %1684 = vmatmul.mubr.bf16.gmra.mrb[0].mxu0 %v1613
  %v1685 = vpop.f32.mrb[0].mxu0
  %v1686 = vadd.f32 0.0, %v1685
  %v1687 = vpop.f32.mrb[0].mxu0
  %v1688 = vadd.f32 0.0, %v1687
  %v1689 = vpop.f32.mrb[0].mxu0
  %v1690 = vadd.f32 0.0, %v1689
  %v1691 = vpop.f32.mrb[0].mxu0
  %v1692 = vadd.f32 0.0, %v1691
  %1693 = vmatprep.mubr.bf16.mxu0 %v1636
  %1694 = vmatmul.mubr.bf16.gmra.mrb[0].mxu0 %v1615
  %v1695 = vpop.f32.mrb[0].mxu0
  %v1696 = vadd.f32 0.0, %v1695
  %v1697 = vpop.f32.mrb[0].mxu0
  %v1698 = vadd.f32 0.0, %v1697
  %v1699 = vpop.f32.mrb[0].mxu0
  %v1700 = vadd.f32 0.0, %v1699
  %v1701 = vpop.f32.mrb[0].mxu0
  %v1702 = vadd.f32 0.0, %v1701
  %1703 = vmatprep.mubr.bf16.mxu0 %v1639
  %1704 = vmatmul.mubr.bf16.gmra.mrb[0].mxu0 %v1617
  %v1705 = vpop.f32.mrb[0].mxu0
  %v1706 = vadd.f32 0.0, %v1705
  %v1707 = vpop.f32.mrb[0].mxu0
  %v1708 = vadd.f32 0.0, %v1707
  %v1709 = vpop.f32.mrb[0].mxu0
  %v1710 = vadd.f32 0.0, %v1709
  %v1711 = vpop.f32.mrb[0].mxu0
  %v1712 = vadd.f32 0.0, %v1711
  %1713 = vdwg.mxu0
  %1714 = vmatprep.subr.bf16.mxu0 %v1558
  %1715 = vmatpush1.bf16.msra.mxu0 %v1557
  %1716 = vmatprep.subr.bf16.mxu0 %v1560
  %1717 = vmatpush1.bf16.msra.mxu0 %v1559
  %1718 = vmatprep.subr.bf16.mxu0 %v1562
  %1719 = vmatpush1.bf16.msra.mxu0 %v1561
  %1720 = vmatprep.subr.bf16.mxu0 %v1564
  %1721 = vmatpush1.bf16.msra.mxu0 %v1563
  %1722 = vmatprep.subr.bf16.mxu0 %v1566
  %1723 = vmatpush1.bf16.msra.mxu0 %v1565
  %1724 = vmatprep.subr.bf16.mxu0 %v1568
  %1725 = vmatpush1.bf16.msra.mxu0 %v1567
  %1726 = vmatprep.subr.bf16.mxu0 %v1570
  %1727 = vmatpush1.bf16.msra.mxu0 %v1569
  %1728 = vmatprep.subr.bf16.mxu0 %v1572
  %1729 = vmatpush1.bf16.msra.mxu0 %v1571
  %1730 = vmatprep.subr.bf16.mxu0 %v1574
  %1731 = vmatpush1.bf16.msra.mxu0 %v1573
  %1732 = vmatprep.subr.bf16.mxu0 %v1576
  %1733 = vmatpush1.bf16.msra.mxu0 %v1575
  %1734 = vmatprep.subr.bf16.mxu0 %v1578
  %1735 = vmatpush1.bf16.msra.mxu0 %v1577
  %1736 = vmatprep.subr.bf16.mxu0 %v1580
  %1737 = vmatpush1.bf16.msra.mxu0 %v1579
  %1738 = vmatprep.subr.bf16.mxu0 0
  %1739 = vmatpush1.bf16.msra.mxu0 0
  %1740 = vmatprep.subr.bf16.mxu0 0
  %1741 = vmatpush1.bf16.msra.mxu0 0
  %1742 = vmatprep.subr.bf16.mxu0 0
  %1743 = vmatpush1.bf16.msra.mxu0 0
  %1744 = vmatprep.subr.bf16.mxu0 0
  %1745 = vmatpush1.bf16.msra.mxu0 0
  %1746 = vmatprep.mubr.bf16.mxu0 %v1630
  %1747 = vmatmul.mubr.bf16.gmra.mrb[0].mxu0 %v1611
  %v1748 = vpop.f32.mrb[0].mxu0
  %v1749 = vadd.f32 %v1676, %v1748
  %v1750 = vpop.f32.mrb[0].mxu0
  %v1751 = vadd.f32 %v1678, %v1750
  %v1752 = vpop.f32.mrb[0].mxu0
  %v1753 = vadd.f32 %v1680, %v1752
  %v1754 = vpop.f32.mrb[0].mxu0
  %v1755 = vadd.f32 %v1682, %v1754
  %1756 = vmatprep.mubr.bf16.mxu0 %v1633
  %1757 = vmatmul.mubr.bf16.gmra.mrb[0].mxu0 %v1613
  %v1758 = vpop.f32.mrb[0].mxu0
  %v1759 = vadd.f32 %v1686, %v1758
  %v1760 = vpop.f32.mrb[0].mxu0
  %v1761 = vadd.f32 %v1688, %v1760
  %v1762 = vpop.f32.mrb[0].mxu0
  %v1763 = vadd.f32 %v1690, %v1762
  %v1764 = vpop.f32.mrb[0].mxu0
  %v1765 = vadd.f32 %v1692, %v1764
  %1766 = vmatprep.mubr.bf16.mxu0 %v1636
  %1767 = vmatmul.mubr.bf16.gmra.mrb[0].mxu0 %v1615
  %v1768 = vpop.f32.mrb[0].mxu0
  %v1769 = vadd.f32 %v1696, %v1768
  %v1770 = vpop.f32.mrb[0].mxu0
  %v1771 = vadd.f32 %v1698, %v1770
  %v1772 = vpop.f32.mrb[0].mxu0
  %v1773 = vadd.f32 %v1700, %v1772
  %v1774 = vpop.f32.mrb[0].mxu0
  %v1775 = vadd.f32 %v1702, %v1774
  %1776 = vmatprep.mubr.bf16.mxu0 %v1639
  %1777 = vmatmul.mubr.bf16.gmra.mrb[0].mxu0 %v1617
  %v1778 = vpop.f32.mrb[0].mxu0
  %v1779 = vadd.f32 %v1706, %v1778
  %v1780 = vpop.f32.mrb[0].mxu0
  %v1781 = vadd.f32 %v1708, %v1780
  %v1782 = vpop.f32.mrb[0].mxu0
  %v1783 = vadd.f32 %v1710, %v1782
  %v1784 = vpop.f32.mrb[0].mxu0
  %v1785 = vadd.f32 %v1712, %v1784
  %1786 = vdwg.mxu0
  %v1788 = vsel %vm1628, %v1621, 0
  %v1791 = vsel %vm1628, %v1623, 0
  %v1794 = vsel %vm1628, %v1625, 0
  %v1797 = vsel %vm1628, %v1627, 0
  %1799 = vmatprep.subr.bf16.mxu0 %v1558
  %1800 = vmatpush1.bf16.msra.mxu0 %v1557
  %1801 = vmatprep.subr.bf16.mxu0 %v1560
  %1802 = vmatpush1.bf16.msra.mxu0 %v1559
  %1803 = vmatprep.subr.bf16.mxu0 %v1562
  %1804 = vmatpush1.bf16.msra.mxu0 %v1561
  %1805 = vmatprep.subr.bf16.mxu0 %v1564
  %1806 = vmatpush1.bf16.msra.mxu0 %v1563
  %1807 = vmatprep.subr.bf16.mxu0 %v1566
  %1808 = vmatpush1.bf16.msra.mxu0 %v1565
  %1809 = vmatprep.subr.bf16.mxu0 %v1568
  %1810 = vmatpush1.bf16.msra.mxu0 %v1567
  %1811 = vmatprep.subr.bf16.mxu0 %v1570
  %1812 = vmatpush1.bf16.msra.mxu0 %v1569
  %1813 = vmatprep.subr.bf16.mxu0 %v1572
  %1814 = vmatpush1.bf16.msra.mxu0 %v1571
  %1815 = vmatprep.subr.bf16.mxu0 %v1574
  %1816 = vmatpush1.bf16.msra.mxu0 %v1573
  %1817 = vmatprep.subr.bf16.mxu0 %v1576
  %1818 = vmatpush1.bf16.msra.mxu0 %v1575
  %1819 = vmatprep.subr.bf16.mxu0 %v1578
  %1820 = vmatpush1.bf16.msra.mxu0 %v1577
  %1821 = vmatprep.subr.bf16.mxu0 %v1580
  %1822 = vmatpush1.bf16.msra.mxu0 %v1579
  %1823 = vmatprep.subr.bf16.mxu0 0
  %1824 = vmatpush1.bf16.msra.mxu0 0
  %1825 = vmatprep.subr.bf16.mxu0 0
  %1826 = vmatpush1.bf16.msra.mxu0 0
  %1827 = vmatprep.subr.bf16.mxu0 0
  %1828 = vmatpush1.bf16.msra.mxu0 0
  %1829 = vmatprep.subr.bf16.mxu0 0
  %1830 = vmatpush1.bf16.msra.mxu0 0
  %1831 = vmatprep.mubr.bf16.mxu0 %v1788
  %1832 = vmatmul.mubr.bf16.gmra.mrb[0].mxu0 %v1620
  %v1833 = vpop.f32.mrb[0].mxu0
  %v1834 = vadd.f32 0.0, %v1833
  %v1835 = vpop.f32.mrb[0].mxu0
  %v1836 = vadd.f32 0.0, %v1835
  %v1837 = vpop.f32.mrb[0].mxu0
  %v1838 = vadd.f32 0.0, %v1837
  %v1839 = vpop.f32.mrb[0].mxu0
  %v1840 = vadd.f32 0.0, %v1839
  %1841 = vmatprep.mubr.bf16.mxu0 %v1791
  %1842 = vmatmul.mubr.bf16.gmra.mrb[0].mxu0 %v1622
  %v1843 = vpop.f32.mrb[0].mxu0
  %v1844 = vadd.f32 0.0, %v1843
  %v1845 = vpop.f32.mrb[0].mxu0
  %v1846 = vadd.f32 0.0, %v1845
  %v1847 = vpop.f32.mrb[0].mxu0
  %v1848 = vadd.f32 0.0, %v1847
  %v1849 = vpop.f32.mrb[0].mxu0
  %v1850 = vadd.f32 0.0, %v1849
  %1851 = vmatprep.mubr.bf16.mxu0 %v1794
  %1852 = vmatmul.mubr.bf16.gmra.mrb[0].mxu0 %v1624
  %v1853 = vpop.f32.mrb[0].mxu0
  %v1854 = vadd.f32 0.0, %v1853
  %v1855 = vpop.f32.mrb[0].mxu0
  %v1856 = vadd.f32 0.0, %v1855
  %v1857 = vpop.f32.mrb[0].mxu0
  %v1858 = vadd.f32 0.0, %v1857
  %v1859 = vpop.f32.mrb[0].mxu0
  %v1860 = vadd.f32 0.0, %v1859
  %1861 = vmatprep.mubr.bf16.mxu0 %v1797
  %1862 = vmatmul.mubr.bf16.gmra.mrb[0].mxu0 %v1626
  %v1863 = vpop.f32.mrb[0].mxu0
  %v1864 = vadd.f32 0.0, %v1863
  %v1865 = vpop.f32.mrb[0].mxu0
  %v1866 = vadd.f32 0.0, %v1865
  %v1867 = vpop.f32.mrb[0].mxu0
  %v1868 = vadd.f32 0.0, %v1867
  %v1869 = vpop.f32.mrb[0].mxu0
  %v1870 = vadd.f32 0.0, %v1869
  %1871 = vdwg.mxu0
  %v1872 = vadd.f32 %v1749, %v1834
  %v1873 = vadd.f32 %v1751, %v1836
  %v1874 = vadd.f32 %v1753, %v1838
  %v1875 = vadd.f32 %v1755, %v1840
  %v1876 = vadd.f32 %v1759, %v1844
  %v1877 = vadd.f32 %v1761, %v1846
  %v1878 = vadd.f32 %v1763, %v1848
  %v1879 = vadd.f32 %v1765, %v1850
  %v1880 = vadd.f32 %v1769, %v1854
  %v1881 = vadd.f32 %v1771, %v1856
  %v1882 = vadd.f32 %v1773, %v1858
  %v1883 = vadd.f32 %v1775, %v1860
  %v1884 = vadd.f32 %v1779, %v1864
  %v1885 = vadd.f32 %v1781, %v1866
  %v1886 = vadd.f32 %v1783, %v1868
  %v1887 = vadd.f32 %v1785, %v1870
  %s1888 = scalar_lea.vmem [#allocation2], 64
  %v1889 = vld [vmem:[%s1888] sm:$0xff]
  %v1890 = vld [vmem:[%s1888 + $0x8] sm:$0xff]
  %v1891 = vld [vmem:[%s1888 + $0x10] sm:$0xff]
  %v1892 = vld [vmem:[%s1888 + $0x18] sm:$0xff]
  %v1893 = vld [vmem:[%s1888 + $0x20] sm:$0xff]
  %v1894 = vld [vmem:[%s1888 + $0x28] sm:$0xff]
  %v1895 = vld [vmem:[%s1888 + $0x30] sm:$0xff]
  %v1896 = vld [vmem:[%s1888 + $0x38] sm:$0xff]
  %s1897 = scalar_lea.vmem [#allocation2], 256
  %v1898 = vld [vmem:[%s1897] sm:$0xff]
  %v1899 = vld [vmem:[%s1897 + $0x8] sm:$0xff]
  %v1900 = vld [vmem:[%s1897 + $0x10] sm:$0xff]
  %v1901 = vld [vmem:[%s1897 + $0x18] sm:$0xff]
  %v1902 = vld [vmem:[%s1897 + $0x20] sm:$0xff]
  %v1903 = vld [vmem:[%s1897 + $0x28] sm:$0xff]
  %v1904 = vld [vmem:[%s1897 + $0x30] sm:$0xff]
  %v1905 = vld [vmem:[%s1897 + $0x38] sm:$0xff]
  %v1907 = vsel %vm1628, %v1890, 0
  %v1910 = vsel %vm1628, %v1892, 0
  %v1913 = vsel %vm1628, %v1894, 0
  %v1916 = vsel %vm1628, %v1896, 0
  %1918 = vmatprep.subr.bf16.mxu0 %v1582
  %1919 = vmatpush1.bf16.msra.mxu0 %v1581
  %1920 = vmatprep.subr.bf16.mxu0 %v1584
  %1921 = vmatpush1.bf16.msra.mxu0 %v1583
  %1922 = vmatprep.subr.bf16.mxu0 %v1586
  %1923 = vmatpush1.bf16.msra.mxu0 %v1585
  %1924 = vmatprep.subr.bf16.mxu0 %v1588
  %1925 = vmatpush1.bf16.msra.mxu0 %v1587
  %1926 = vmatprep.subr.bf16.mxu0 %v1590
  %1927 = vmatpush1.bf16.msra.mxu0 %v1589
  %1928 = vmatprep.subr.bf16.mxu0 %v1592
  %1929 = vmatpush1.bf16.msra.mxu0 %v1591
  %1930 = vmatprep.subr.bf16.mxu0 %v1594
  %1931 = vmatpush1.bf16.msra.mxu0 %v1593
  %1932 = vmatprep.subr.bf16.mxu0 %v1596
  %1933 = vmatpush1.bf16.msra.mxu0 %v1595
  %1934 = vmatprep.subr.bf16.mxu0 %v1598
  %1935 = vmatpush1.bf16.msra.mxu0 %v1597
  %1936 = vmatprep.subr.bf16.mxu0 %v1600
  %1937 = vmatpush1.bf16.msra.mxu0 %v1599
  %1938 = vmatprep.subr.bf16.mxu0 %v1602
  %1939 = vmatpush1.bf16.msra.mxu0 %v1601
  %1940 = vmatprep.subr.bf16.mxu0 %v1604
  %1941 = vmatpush1.bf16.msra.mxu0 %v1603
  %1942 = vmatprep.subr.bf16.mxu0 0
  %1943 = vmatpush1.bf16.msra.mxu0 0
  %1944 = vmatprep.subr.bf16.mxu0 0
  %1945 = vmatpush1.bf16.msra.mxu0 0
  %1946 = vmatprep.subr.bf16.mxu0 0
  %1947 = vmatpush1.bf16.msra.mxu0 0
  %1948 = vmatprep.subr.bf16.mxu0 0
  %1949 = vmatpush1.bf16.msra.mxu0 0
  %1950 = vmatprep.mubr.bf16.mxu0 %v1907
  %1951 = vmatmul.mubr.bf16.gmra.mrb[0].mxu0 %v1889
  %v1952 = vpop.f32.mrb[0].mxu0
  %v1953 = vadd.f32 0.0, %v1952
  %v1954 = vpop.f32.mrb[0].mxu0
  %v1955 = vadd.f32 0.0, %v1954
  %v1956 = vpop.f32.mrb[0].mxu0
  %v1957 = vadd.f32 0.0, %v1956
  %v1958 = vpop.f32.mrb[0].mxu0
  %v1959 = vadd.f32 0.0, %v1958
  %1960 = vmatprep.mubr.bf16.mxu0 %v1910
  %1961 = vmatmul.mubr.bf16.gmra.mrb[0].mxu0 %v1891
  %v1962 = vpop.f32.mrb[0].mxu0
  %v1963 = vadd.f32 0.0, %v1962
  %v1964 = vpop.f32.mrb[0].mxu0
  %v1965 = vadd.f32 0.0, %v1964
  %v1966 = vpop.f32.mrb[0].mxu0
  %v1967 = vadd.f32 0.0, %v1966
  %v1968 = vpop.f32.mrb[0].mxu0
  %v1969 = vadd.f32 0.0, %v1968
  %1970 = vmatprep.mubr.bf16.mxu0 %v1913
  %1971 = vmatmul.mubr.bf16.gmra.mrb[0].mxu0 %v1893
  %v1972 = vpop.f32.mrb[0].mxu0
  %v1973 = vadd.f32 0.0, %v1972
  %v1974 = vpop.f32.mrb[0].mxu0
  %v1975 = vadd.f32 0.0, %v1974
  %v1976 = vpop.f32.mrb[0].mxu0
  %v1977 = vadd.f32 0.0, %v1976
  %v1978 = vpop.f32.mrb[0].mxu0
  %v1979 = vadd.f32 0.0, %v1978
  %1980 = vmatprep.mubr.bf16.mxu0 %v1916
  %1981 = vmatmul.mubr.bf16.gmra.mrb[0].mxu0 %v1895
  %v1982 = vpop.f32.mrb[0].mxu0
  %v1983 = vadd.f32 0.0, %v1982
  %v1984 = vpop.f32.mrb[0].mxu0
  %v1985 = vadd.f32 0.0, %v1984
  %v1986 = vpop.f32.mrb[0].mxu0
  %v1987 = vadd.f32 0.0, %v1986
  %v1988 = vpop.f32.mrb[0].mxu0
  %v1989 = vadd.f32 0.0, %v1988
  %1990 = vdwg.mxu0
  %1991 = vmatprep.subr.bf16.mxu0 %v1558
  %1992 = vmatpush1.bf16.msra.mxu0 %v1557
  %1993 = vmatprep.subr.bf16.mxu0 %v1560
  %1994 = vmatpush1.bf16.msra.mxu0 %v1559
  %1995 = vmatprep.subr.bf16.mxu0 %v1562
  %1996 = vmatpush1.bf16.msra.mxu0 %v1561
  %1997 = vmatprep.subr.bf16.mxu0 %v1564
  %1998 = vmatpush1.bf16.msra.mxu0 %v1563
  %1999 = vmatprep.subr.bf16.mxu0 %v1566
  %2000 = vmatpush1.bf16.msra.mxu0 %v1565
  %2001 = vmatprep.subr.bf16.mxu0 %v1568
  %2002 = vmatpush1.bf16.msra.mxu0 %v1567
  %2003 = vmatprep.subr.bf16.mxu0 %v1570
  %2004 = vmatpush1.bf16.msra.mxu0 %v1569
  %2005 = vmatprep.subr.bf16.mxu0 %v1572
  %2006 = vmatpush1.bf16.msra.mxu0 %v1571
  %2007 = vmatprep.subr.bf16.mxu0 %v1574
  %2008 = vmatpush1.bf16.msra.mxu0 %v1573
  %2009 = vmatprep.subr.bf16.mxu0 %v1576
  %2010 = vmatpush1.bf16.msra.mxu0 %v1575
  %2011 = vmatprep.subr.bf16.mxu0 %v1578
  %2012 = vmatpush1.bf16.msra.mxu0 %v1577
  %2013 = vmatprep.subr.bf16.mxu0 %v1580
  %2014 = vmatpush1.bf16.msra.mxu0 %v1579
  %2015 = vmatprep.subr.bf16.mxu0 0
  %2016 = vmatpush1.bf16.msra.mxu0 0
  %2017 = vmatprep.subr.bf16.mxu0 0
  %2018 = vmatpush1.bf16.msra.mxu0 0
  %2019 = vmatprep.subr.bf16.mxu0 0
  %2020 = vmatpush1.bf16.msra.mxu0 0
  %2021 = vmatprep.subr.bf16.mxu0 0
  %2022 = vmatpush1.bf16.msra.mxu0 0
  %2023 = vmatprep.mubr.bf16.mxu0 %v1907
  %2024 = vmatmul.mubr.bf16.gmra.mrb[0].mxu0 %v1889
  %v2025 = vpop.f32.mrb[0].mxu0
  %v2026 = vadd.f32 %v1953, %v2025
  %v2027 = vpop.f32.mrb[0].mxu0
  %v2028 = vadd.f32 %v1955, %v2027
  %v2029 = vpop.f32.mrb[0].mxu0
  %v2030 = vadd.f32 %v1957, %v2029
  %v2031 = vpop.f32.mrb[0].mxu0
  %v2032 = vadd.f32 %v1959, %v2031
  %2033 = vmatprep.mubr.bf16.mxu0 %v1910
  %2034 = vmatmul.mubr.bf16.gmra.mrb[0].mxu0 %v1891
  %v2035 = vpop.f32.mrb[0].mxu0
  %v2036 = vadd.f32 %v1963, %v2035
  %v2037 = vpop.f32.mrb[0].mxu0
  %v2038 = vadd.f32 %v1965, %v2037
  %v2039 = vpop.f32.mrb[0].mxu0
  %v2040 = vadd.f32 %v1967, %v2039
  %v2041 = vpop.f32.mrb[0].mxu0
  %v2042 = vadd.f32 %v1969, %v2041
  %2043 = vmatprep.mubr.bf16.mxu0 %v1913
  %2044 = vmatmul.mubr.bf16.gmra.mrb[0].mxu0 %v1893
  %v2045 = vpop.f32.mrb[0].mxu0
  %v2046 = vadd.f32 %v1973, %v2045
  %v2047 = vpop.f32.mrb[0].mxu0
  %v2048 = vadd.f32 %v1975, %v2047
  %v2049 = vpop.f32.mrb[0].mxu0
  %v2050 = vadd.f32 %v1977, %v2049
  %v2051 = vpop.f32.mrb[0].mxu0
  %v2052 = vadd.f32 %v1979, %v2051
  %2053 = vmatprep.mubr.bf16.mxu0 %v1916
  %2054 = vmatmul.mubr.bf16.gmra.mrb[0].mxu0 %v1895
  %v2055 = vpop.f32.mrb[0].mxu0
  %v2056 = vadd.f32 %v1983, %v2055
  %v2057 = vpop.f32.mrb[0].mxu0
  %v2058 = vadd.f32 %v1985, %v2057
  %v2059 = vpop.f32.mrb[0].mxu0
  %v2060 = vadd.f32 %v1987, %v2059
  %v2061 = vpop.f32.mrb[0].mxu0
  %v2062 = vadd.f32 %v1989, %v2061
  %2063 = vdwg.mxu0
  %v2065 = vsel %vm1628, %v1899, 0
  %v2068 = vsel %vm1628, %v1901, 0
  %v2071 = vsel %vm1628, %v1903, 0
  %v2074 = vsel %vm1628, %v1905, 0
  %2076 = vmatprep.subr.bf16.mxu0 %v1558
  %2077 = vmatpush1.bf16.msra.mxu0 %v1557
  %2078 = vmatprep.subr.bf16.mxu0 %v1560
  %2079 = vmatpush1.bf16.msra.mxu0 %v1559
  %2080 = vmatprep.subr.bf16.mxu0 %v1562
  %2081 = vmatpush1.bf16.msra.mxu0 %v1561
  %2082 = vmatprep.subr.bf16.mxu0 %v1564
  %2083 = vmatpush1.bf16.msra.mxu0 %v1563
  %2084 = vmatprep.subr.bf16.mxu0 %v1566
  %2085 = vmatpush1.bf16.msra.mxu0 %v1565
  %2086 = vmatprep.subr.bf16.mxu0 %v1568
  %2087 = vmatpush1.bf16.msra.mxu0 %v1567
  %2088 = vmatprep.subr.bf16.mxu0 %v1570
  %2089 = vmatpush1.bf16.msra.mxu0 %v1569
  %2090 = vmatprep.subr.bf16.mxu0 %v1572
  %2091 = vmatpush1.bf16.msra.mxu0 %v1571
  %2092 = vmatprep.subr.bf16.mxu0 %v1574
  %2093 = vmatpush1.bf16.msra.mxu0 %v1573
  %2094 = vmatprep.subr.bf16.mxu0 %v1576
  %2095 = vmatpush1.bf16.msra.mxu0 %v1575
  %2096 = vmatprep.subr.bf16.mxu0 %v1578
  %2097 = vmatpush1.bf16.msra.mxu0 %v1577
  %2098 = vmatprep.subr.bf16.mxu0 %v1580
  %2099 = vmatpush1.bf16.msra.mxu0 %v1579
  %2100 = vmatprep.subr.bf16.mxu0 0
  %2101 = vmatpush1.bf16.msra.mxu0 0
  %2102 = vmatprep.subr.bf16.mxu0 0
  %2103 = vmatpush1.bf16.msra.mxu0 0
  %2104 = vmatprep.subr.bf16.mxu0 0
  %2105 = vmatpush1.bf16.msra.mxu0 0
  %2106 = vmatprep.subr.bf16.mxu0 0
  %2107 = vmatpush1.bf16.msra.mxu0 0
  %2108 = vmatprep.mubr.bf16.mxu0 %v2065
  %2109 = vmatmul.mubr.bf16.gmra.mrb[0].mxu0 %v1898
  %v2110 = vpop.f32.mrb[0].mxu0
  %v2111 = vadd.f32 0.0, %v2110
  %v2112 = vpop.f32.mrb[0].mxu0
  %v2113 = vadd.f32 0.0, %v2112
  %v2114 = vpop.f32.mrb[0].mxu0
  %v2115 = vadd.f32 0.0, %v2114
  %v2116 = vpop.f32.mrb[0].mxu0
  %v2117 = vadd.f32 0.0, %v2116
  %2118 = vmatprep.mubr.bf16.mxu0 %v2068
  %2119 = vmatmul.mubr.bf16.gmra.mrb[0].mxu0 %v1900
  %v2120 = vpop.f32.mrb[0].mxu0
  %v2121 = vadd.f32 0.0, %v2120
  %v2122 = vpop.f32.mrb[0].mxu0
  %v2123 = vadd.f32 0.0, %v2122
  %v2124 = vpop.f32.mrb[0].mxu0
  %v2125 = vadd.f32 0.0, %v2124
  %v2126 = vpop.f32.mrb[0].mxu0
  %v2127 = vadd.f32 0.0, %v2126
  %2128 = vmatprep.mubr.bf16.mxu0 %v2071
  %2129 = vmatmul.mubr.bf16.gmra.mrb[0].mxu0 %v1902
  %v2130 = vpop.f32.mrb[0].mxu0
  %v2131 = vadd.f32 0.0, %v2130
  %v2132 = vpop.f32.mrb[0].mxu0
  %v2133 = vadd.f32 0.0, %v2132
  %v2134 = vpop.f32.mrb[0].mxu0
  %v2135 = vadd.f32 0.0, %v2134
  %v2136 = vpop.f32.mrb[0].mxu0
  %v2137 = vadd.f32 0.0, %v2136
  %2138 = vmatprep.mubr.bf16.mxu0 %v2074
  %2139 = vmatmul.mubr.bf16.gmra.mrb[0].mxu0 %v1904
  %v2140 = vpop.f32.mrb[0].mxu0
  %v2141 = vadd.f32 0.0, %v2140
  %v2142 = vpop.f32.mrb[0].mxu0
  %v2143 = vadd.f32 0.0, %v2142
  %v2144 = vpop.f32.mrb[0].mxu0
  %v2145 = vadd.f32 0.0, %v2144
  %v2146 = vpop.f32.mrb[0].mxu0
  %v2147 = vadd.f32 0.0, %v2146
  %2148 = vdwg.mxu0
  %v2149 = vadd.f32 %v2026, %v2111
  %v2150 = vadd.f32 %v2028, %v2113
  %v2151 = vadd.f32 %v2030, %v2115
  %v2152 = vadd.f32 %v2032, %v2117
  %v2153 = vadd.f32 %v2036, %v2121
  %v2154 = vadd.f32 %v2038, %v2123
  %v2155 = vadd.f32 %v2040, %v2125
  %v2156 = vadd.f32 %v2042, %v2127
  %v2157 = vadd.f32 %v2046, %v2131
  %v2158 = vadd.f32 %v2048, %v2133
  %v2159 = vadd.f32 %v2050, %v2135
  %v2160 = vadd.f32 %v2052, %v2137
  %v2161 = vadd.f32 %v2056, %v2141
  %v2162 = vadd.f32 %v2058, %v2143
  %v2163 = vadd.f32 %v2060, %v2145
  %v2164 = vadd.f32 %v2062, %v2147
  %s2165 = scalar_lea.vmem [#allocation2], 128
  %v2166 = vld [vmem:[%s2165] sm:$0xff]
  %v2167 = vld [vmem:[%s2165 + $0x8] sm:$0xff]
  %v2168 = vld [vmem:[%s2165 + $0x10] sm:$0xff]
  %v2169 = vld [vmem:[%s2165 + $0x18] sm:$0xff]
  %v2170 = vld [vmem:[%s2165 + $0x20] sm:$0xff]
  %v2171 = vld [vmem:[%s2165 + $0x28] sm:$0xff]
  %v2172 = vld [vmem:[%s2165 + $0x30] sm:$0xff]
  %v2173 = vld [vmem:[%s2165 + $0x38] sm:$0xff]
  %s2174 = scalar_lea.vmem [#allocation2], 320
  %v2175 = vld [vmem:[%s2174] sm:$0xff]
  %v2176 = vld [vmem:[%s2174 + $0x8] sm:$0xff]
  %v2177 = vld [vmem:[%s2174 + $0x10] sm:$0xff]
  %v2178 = vld [vmem:[%s2174 + $0x18] sm:$0xff]
  %v2179 = vld [vmem:[%s2174 + $0x20] sm:$0xff]
  %v2180 = vld [vmem:[%s2174 + $0x28] sm:$0xff]
  %v2181 = vld [vmem:[%s2174 + $0x30] sm:$0xff]
  %v2182 = vld [vmem:[%s2174 + $0x38] sm:$0xff]
  %v2184 = vsel %vm1628, %v2167, 0
  %v2187 = vsel %vm1628, %v2169, 0
  %v2190 = vsel %vm1628, %v2171, 0
  %v2193 = vsel %vm1628, %v2173, 0
  %2195 = vmatprep.subr.bf16.mxu0 %v1582
  %2196 = vmatpush1.bf16.msra.mxu0 %v1581
  %2197 = vmatprep.subr.bf16.mxu0 %v1584
  %2198 = vmatpush1.bf16.msra.mxu0 %v1583
  %2199 = vmatprep.subr.bf16.mxu0 %v1586
  %2200 = vmatpush1.bf16.msra.mxu0 %v1585
  %2201 = vmatprep.subr.bf16.mxu0 %v1588
  %2202 = vmatpush1.bf16.msra.mxu0 %v1587
  %2203 = vmatprep.subr.bf16.mxu0 %v1590
  %2204 = vmatpush1.bf16.msra.mxu0 %v1589
  %2205 = vmatprep.subr.bf16.mxu0 %v1592
  %2206 = vmatpush1.bf16.msra.mxu0 %v1591
  %2207 = vmatprep.subr.bf16.mxu0 %v1594
  %2208 = vmatpush1.bf16.msra.mxu0 %v1593
  %2209 = vmatprep.subr.bf16.mxu0 %v1596
  %2210 = vmatpush1.bf16.msra.mxu0 %v1595
  %2211 = vmatprep.subr.bf16.mxu0 %v1598
  %2212 = vmatpush1.bf16.msra.mxu0 %v1597
  %2213 = vmatprep.subr.bf16.mxu0 %v1600
  %2214 = vmatpush1.bf16.msra.mxu0 %v1599
  %2215 = vmatprep.subr.bf16.mxu0 %v1602
  %2216 = vmatpush1.bf16.msra.mxu0 %v1601
  %2217 = vmatprep.subr.bf16.mxu0 %v1604
  %2218 = vmatpush1.bf16.msra.mxu0 %v1603
  %2219 = vmatprep.subr.bf16.mxu0 0
  %2220 = vmatpush1.bf16.msra.mxu0 0
  %2221 = vmatprep.subr.bf16.mxu0 0
  %2222 = vmatpush1.bf16.msra.mxu0 0
  %2223 = vmatprep.subr.bf16.mxu0 0
  %2224 = vmatpush1.bf16.msra.mxu0 0
  %2225 = vmatprep.subr.bf16.mxu0 0
  %2226 = vmatpush1.bf16.msra.mxu0 0
  %2227 = vmatprep.mubr.bf16.mxu0 %v2184
  %2228 = vmatmul.mubr.bf16.gmra.mrb[0].mxu0 %v2166
  %v2229 = vpop.f32.mrb[0].mxu0
  %v2230 = vadd.f32 0.0, %v2229
  %v2231 = vpop.f32.mrb[0].mxu0
  %v2232 = vadd.f32 0.0, %v2231
  %v2233 = vpop.f32.mrb[0].mxu0
  %v2234 = vadd.f32 0.0, %v2233
  %v2235 = vpop.f32.mrb[0].mxu0
  %v2236 = vadd.f32 0.0, %v2235
  %2237 = vmatprep.mubr.bf16.mxu0 %v2187
  %2238 = vmatmul.mubr.bf16.gmra.mrb[0].mxu0 %v2168
  %v2239 = vpop.f32.mrb[0].mxu0
  %v2240 = vadd.f32 0.0, %v2239
  %v2241 = vpop.f32.mrb[0].mxu0
  %v2242 = vadd.f32 0.0, %v2241
  %v2243 = vpop.f32.mrb[0].mxu0
  %v2244 = vadd.f32 0.0, %v2243
  %v2245 = vpop.f32.mrb[0].mxu0
  %v2246 = vadd.f32 0.0, %v2245
  %2247 = vmatprep.mubr.bf16.mxu0 %v2190
  %2248 = vmatmul.mubr.bf16.gmra.mrb[0].mxu0 %v2170
  %v2249 = vpop.f32.mrb[0].mxu0
  %v2250 = vadd.f32 0.0, %v2249
  %v2251 = vpop.f32.mrb[0].mxu0
  %v2252 = vadd.f32 0.0, %v2251
  %v2253 = vpop.f32.mrb[0].mxu0
  %v2254 = vadd.f32 0.0, %v2253
  %v2255 = vpop.f32.mrb[0].mxu0
  %v2256 = vadd.f32 0.0, %v2255
  %2257 = vmatprep.mubr.bf16.mxu0 %v2193
  %2258 = vmatmul.mubr.bf16.gmra.mrb[0].mxu0 %v2172
  %v2259 = vpop.f32.mrb[0].mxu0
  %v2260 = vadd.f32 0.0, %v2259
  %v2261 = vpop.f32.mrb[0].mxu0
  %v2262 = vadd.f32 0.0, %v2261
  %v2263 = vpop.f32.mrb[0].mxu0
  %v2264 = vadd.f32 0.0, %v2263
  %v2265 = vpop.f32.mrb[0].mxu0
  %v2266 = vadd.f32 0.0, %v2265
  %2267 = vdwg.mxu0
  %2268 = vmatprep.subr.bf16.mxu0 %v1558
  %2269 = vmatpush1.bf16.msra.mxu0 %v1557
  %2270 = vmatprep.subr.bf16.mxu0 %v1560
  %2271 = vmatpush1.bf16.msra.mxu0 %v1559
  %2272 = vmatprep.subr.bf16.mxu0 %v1562
  %2273 = vmatpush1.bf16.msra.mxu0 %v1561
  %2274 = vmatprep.subr.bf16.mxu0 %v1564
  %2275 = vmatpush1.bf16.msra.mxu0 %v1563
  %2276 = vmatprep.subr.bf16.mxu0 %v1566
  %2277 = vmatpush1.bf16.msra.mxu0 %v1565
  %2278 = vmatprep.subr.bf16.mxu0 %v1568
  %2279 = vmatpush1.bf16.msra.mxu0 %v1567
  %2280 = vmatprep.subr.bf16.mxu0 %v1570
  %2281 = vmatpush1.bf16.msra.mxu0 %v1569
  %2282 = vmatprep.subr.bf16.mxu0 %v1572
  %2283 = vmatpush1.bf16.msra.mxu0 %v1571
  %2284 = vmatprep.subr.bf16.mxu0 %v1574
  %2285 = vmatpush1.bf16.msra.mxu0 %v1573
  %2286 = vmatprep.subr.bf16.mxu0 %v1576
  %2287 = vmatpush1.bf16.msra.mxu0 %v1575
  %2288 = vmatprep.subr.bf16.mxu0 %v1578
  %2289 = vmatpush1.bf16.msra.mxu0 %v1577
  %2290 = vmatprep.subr.bf16.mxu0 %v1580
  %2291 = vmatpush1.bf16.msra.mxu0 %v1579
  %2292 = vmatprep.subr.bf16.mxu0 0
  %2293 = vmatpush1.bf16.msra.mxu0 0
  %2294 = vmatprep.subr.bf16.mxu0 0
  %2295 = vmatpush1.bf16.msra.mxu0 0
  %2296 = vmatprep.subr.bf16.mxu0 0
  %2297 = vmatpush1.bf16.msra.mxu0 0
  %2298 = vmatprep.subr.bf16.mxu0 0
  %2299 = vmatpush1.bf16.msra.mxu0 0
  %2300 = vmatprep.mubr.bf16.mxu0 %v2184
  %2301 = vmatmul.mubr.bf16.gmra.mrb[0].mxu0 %v2166
  %v2302 = vpop.f32.mrb[0].mxu0
  %v2303 = vadd.f32 %v2230, %v2302
  %v2304 = vpop.f32.mrb[0].mxu0
  %v2305 = vadd.f32 %v2232, %v2304
  %v2306 = vpop.f32.mrb[0].mxu0
  %v2307 = vadd.f32 %v2234, %v2306
  %v2308 = vpop.f32.mrb[0].mxu0
  %v2309 = vadd.f32 %v2236, %v2308
  %2310 = vmatprep.mubr.bf16.mxu0 %v2187
  %2311 = vmatmul.mubr.bf16.gmra.mrb[0].mxu0 %v2168
  %v2312 = vpop.f32.mrb[0].mxu0
  %v2313 = vadd.f32 %v2240, %v2312
  %v2314 = vpop.f32.mrb[0].mxu0
  %v2315 = vadd.f32 %v2242, %v2314
  %v2316 = vpop.f32.mrb[0].mxu0
  %v2317 = vadd.f32 %v2244, %v2316
  %v2318 = vpop.f32.mrb[0].mxu0
  %v2319 = vadd.f32 %v2246, %v2318
  %2320 = vmatprep.mubr.bf16.mxu0 %v2190
  %2321 = vmatmul.mubr.bf16.gmra.mrb[0].mxu0 %v2170
  %v2322 = vpop.f32.mrb[0].mxu0
  %v2323 = vadd.f32 %v2250, %v2322
  %v2324 = vpop.f32.mrb[0].mxu0
  %v2325 = vadd.f32 %v2252, %v2324
  %v2326 = vpop.f32.mrb[0].mxu0
  %v2327 = vadd.f32 %v2254, %v2326
  %v2328 = vpop.f32.mrb[0].mxu0
  %v2329 = vadd.f32 %v2256, %v2328
  %2330 = vmatprep.mubr.bf16.mxu0 %v2193
  %2331 = vmatmul.mubr.bf16.gmra.mrb[0].mxu0 %v2172
  %v2332 = vpop.f32.mrb[0].mxu0
  %v2333 = vadd.f32 %v2260, %v2332
  %v2334 = vpop.f32.mrb[0].mxu0
  %v2335 = vadd.f32 %v2262, %v2334
  %v2336 = vpop.f32.mrb[0].mxu0
  %v2337 = vadd.f32 %v2264, %v2336
  %v2338 = vpop.f32.mrb[0].mxu0
  %v2339 = vadd.f32 %v2266, %v2338
  %2340 = vdwg.mxu0
  %v2342 = vsel %vm1628, %v2176, 0
  %v2345 = vsel %vm1628, %v2178, 0
  %v2348 = vsel %vm1628, %v2180, 0
  %v2351 = vsel %vm1628, %v2182, 0
  %2353 = vmatprep.subr.bf16.mxu0 %v1558
  %2354 = vmatpush1.bf16.msra.mxu0 %v1557
  %2355 = vmatprep.subr.bf16.mxu0 %v1560
  %2356 = vmatpush1.bf16.msra.mxu0 %v1559
  %2357 = vmatprep.subr.bf16.mxu0 %v1562
  %2358 = vmatpush1.bf16.msra.mxu0 %v1561
  %2359 = vmatprep.subr.bf16.mxu0 %v1564
  %2360 = vmatpush1.bf16.msra.mxu0 %v1563
  %2361 = vmatprep.subr.bf16.mxu0 %v1566
  %2362 = vmatpush1.bf16.msra.mxu0 %v1565
  %2363 = vmatprep.subr.bf16.mxu0 %v1568
  %2364 = vmatpush1.bf16.msra.mxu0 %v1567
  %2365 = vmatprep.subr.bf16.mxu0 %v1570
  %2366 = vmatpush1.bf16.msra.mxu0 %v1569
  %2367 = vmatprep.subr.bf16.mxu0 %v1572
  %2368 = vmatpush1.bf16.msra.mxu0 %v1571
  %2369 = vmatprep.subr.bf16.mxu0 %v1574
  %2370 = vmatpush1.bf16.msra.mxu0 %v1573
  %2371 = vmatprep.subr.bf16.mxu0 %v1576
  %2372 = vmatpush1.bf16.msra.mxu0 %v1575
  %2373 = vmatprep.subr.bf16.mxu0 %v1578
  %2374 = vmatpush1.bf16.msra.mxu0 %v1577
  %2375 = vmatprep.subr.bf16.mxu0 %v1580
  %2376 = vmatpush1.bf16.msra.mxu0 %v1579
  %2377 = vmatprep.subr.bf16.mxu0 0
  %2378 = vmatpush1.bf16.msra.mxu0 0
  %2379 = vmatprep.subr.bf16.mxu0 0
  %2380 = vmatpush1.bf16.msra.mxu0 0
  %2381 = vmatprep.subr.bf16.mxu0 0
  %2382 = vmatpush1.bf16.msra.mxu0 0
  %2383 = vmatprep.subr.bf16.mxu0 0
  %2384 = vmatpush1.bf16.msra.mxu0 0
  %2385 = vmatprep.mubr.bf16.mxu0 %v2342
  %2386 = vmatmul.mubr.bf16.gmra.mrb[0].mxu0 %v2175
  %v2387 = vpop.f32.mrb[0].mxu0
  %v2388 = vadd.f32 0.0, %v2387
  %v2389 = vpop.f32.mrb[0].mxu0
  %v2390 = vadd.f32 0.0, %v2389
  %v2391 = vpop.f32.mrb[0].mxu0
  %v2392 = vadd.f32 0.0, %v2391
  %v2393 = vpop.f32.mrb[0].mxu0
  %v2394 = vadd.f32 0.0, %v2393
  %2395 = vmatprep.mubr.bf16.mxu0 %v2345
  %2396 = vmatmul.mubr.bf16.gmra.mrb[0].mxu0 %v2177
  %v2397 = vpop.f32.mrb[0].mxu0
  %v2398 = vadd.f32 0.0, %v2397
  %v2399 = vpop.f32.mrb[0].mxu0
  %v2400 = vadd.f32 0.0, %v2399
  %v2401 = vpop.f32.mrb[0].mxu0
  %v2402 = vadd.f32 0.0, %v2401
  %v2403 = vpop.f32.mrb[0].mxu0
  %v2404 = vadd.f32 0.0, %v2403
  %2405 = vmatprep.mubr.bf16.mxu0 %v2348
  %2406 = vmatmul.mubr.bf16.gmra.mrb[0].mxu0 %v2179
  %v2407 = vpop.f32.mrb[0].mxu0
  %v2408 = vadd.f32 0.0, %v2407
  %v2409 = vpop.f32.mrb[0].mxu0
  %v2410 = vadd.f32 0.0, %v2409
  %v2411 = vpop.f32.mrb[0].mxu0
  %v2412 = vadd.f32 0.0, %v2411
  %v2413 = vpop.f32.mrb[0].mxu0
  %v2414 = vadd.f32 0.0, %v2413
  %2415 = vmatprep.mubr.bf16.mxu0 %v2351
  %2416 = vmatmul.mubr.bf16.gmra.mrb[0].mxu0 %v2181
  %v2417 = vpop.f32.mrb[0].mxu0
  %v2418 = vadd.f32 0.0, %v2417
  %v2419 = vpop.f32.mrb[0].mxu0
  %v2420 = vadd.f32 0.0, %v2419
  %v2421 = vpop.f32.mrb[0].mxu0
  %v2422 = vadd.f32 0.0, %v2421
  %v2423 = vpop.f32.mrb[0].mxu0
  %v2424 = vadd.f32 0.0, %v2423
  %2425 = vdwg.mxu0
  %v2426 = vadd.f32 %v2303, %v2388
  %v2427 = vadd.f32 %v2305, %v2390
  %v2428 = vadd.f32 %v2307, %v2392
  %v2429 = vadd.f32 %v2309, %v2394
  %v2430 = vadd.f32 %v2313, %v2398
  %v2431 = vadd.f32 %v2315, %v2400
  %v2432 = vadd.f32 %v2317, %v2402
  %v2433 = vadd.f32 %v2319, %v2404
  %v2434 = vadd.f32 %v2323, %v2408
  %v2435 = vadd.f32 %v2325, %v2410
  %v2436 = vadd.f32 %v2327, %v2412
  %v2437 = vadd.f32 %v2329, %v2414
  %v2438 = vadd.f32 %v2333, %v2418
  %v2439 = vadd.f32 %v2335, %v2420
  %v2440 = vadd.f32 %v2337, %v2422
  %v2441 = vadd.f32 %v2339, %v2424
  %s2442 = scalar_lea.vmem %s7, 2
  %v2443 = vld [vmem:[%s2442] ss:$8 sm:$0x3]
  %s2444 = scalar_lea.vmem %s7, 3
  %v2445 = vld [vmem:[%s2444] ss:$8 sm:$0x3]
  %2446 = vrot.lane.b32.xlu0 %v1872, 14
  %v2447 = vpop.permute.xlu0 %2446
  %2448 = vrot.lane.b32.xlu0 %v1874, 14
  %v2449 = vpop.permute.xlu0 %2448
  %2450 = vrot.lane.b32.xlu0 %v1876, 14
  %v2451 = vpop.permute.xlu0 %2450
  %2452 = vrot.lane.b32.xlu0 %v1878, 14
  %v2453 = vpop.permute.xlu0 %2452
  %2454 = vrot.lane.b32.xlu0 %v1880, 14
  %v2455 = vpop.permute.xlu0 %2454
  %2456 = vrot.lane.b32.xlu0 %v1882, 14
  %v2457 = vpop.permute.xlu0 %2456
  %2458 = vrot.lane.b32.xlu0 %v1884, 14
  %v2459 = vpop.permute.xlu0 %2458
  %2460 = vrot.lane.b32.xlu0 %v1886, 14
  %v2461 = vpop.permute.xlu0 %2460
  %2462 = vrot.lane.b32.xlu0 %v1873, 14
  %v2463 = vpop.permute.xlu0 %2462
  %2464 = vrot.lane.b32.xlu0 %v1875, 14
  %v2465 = vpop.permute.xlu0 %2464
  %2466 = vrot.lane.b32.xlu0 %v1877, 14
  %v2467 = vpop.permute.xlu0 %2466
  %2468 = vrot.lane.b32.xlu0 %v1879, 14
  %v2469 = vpop.permute.xlu0 %2468
  %2470 = vrot.lane.b32.xlu0 %v1881, 14
  %v2471 = vpop.permute.xlu0 %2470
  %2472 = vrot.lane.b32.xlu0 %v1883, 14
  %v2473 = vpop.permute.xlu0 %2472
  %2474 = vrot.lane.b32.xlu0 %v1885, 14
  %v2475 = vpop.permute.xlu0 %2474
  %2476 = vrot.lane.b32.xlu0 %v1887, 14
  %v2477 = vpop.permute.xlu0 %2476
  %vm2478 = vcmp.lt.s32.totalorder %v1244, 14
  %v2479 = vsel %vm2478, %v2447, %v2463
  %v2480 = vsel %vm2478, %v2449, %v2465
  %v2481 = vsel %vm2478, %v2451, %v2467
  %v2482 = vsel %vm2478, %v2453, %v2469
  %v2483 = vsel %vm2478, %v2455, %v2471
  %v2484 = vsel %vm2478, %v2457, %v2473
  %v2485 = vsel %vm2478, %v2459, %v2475
  %v2486 = vsel %vm2478, %v2461, %v2477
  %v2487 = vsel %vm2478, %v2463, %v2447
  %v2488 = vsel %vm2478, %v2465, %v2449
  %v2489 = vsel %vm2478, %v2467, %v2451
  %v2490 = vsel %vm2478, %v2469, %v2453
  %v2491 = vsel %vm2478, %v2471, %v2455
  %v2492 = vsel %vm2478, %v2473, %v2457
  %v2493 = vsel %vm2478, %v2475, %v2459
  %v2494 = vsel %vm2478, %v2477, %v2461
  %v2496 = vlaneseq
  %v2497 = vshrl.u32 %v2496, 7
  %v2498 = vsub.s32 0, %v2497
  %v2499 = vrot.slane %v2443, %v2498
  %v2500 = vlaneseq
  %v2501 = vshrl.u32 %v2500, 7
  %v2502 = vsub.s32 1, %v2501
  %v2503 = vrot.slane %v2443, %v2502
  %v2506 = vmul.f32 %v2487, %v2499
  %v2507 = vmul.f32 %v2479, %v2503
  %v2508 = vmul.f32 %v2488, %v2499
  %v2509 = vmul.f32 %v2480, %v2503
  %v2510 = vmul.f32 %v2489, %v2499
  %v2511 = vmul.f32 %v2481, %v2503
  %v2512 = vmul.f32 %v2490, %v2499
  %v2513 = vmul.f32 %v2482, %v2503
  %v2514 = vmul.f32 %v2491, %v2499
  %v2515 = vmul.f32 %v2483, %v2503
  %v2516 = vmul.f32 %v2492, %v2499
  %v2517 = vmul.f32 %v2484, %v2503
  %v2518 = vmul.f32 %v2493, %v2499
  %v2519 = vmul.f32 %v2485, %v2503
  %v2520 = vmul.f32 %v2494, %v2499
  %v2521 = vmul.f32 %v2486, %v2503
  %v2522 = vadd.f32 %v2149, %v2506
  %v2523 = vadd.f32 %v2150, %v2507
  %v2524 = vadd.f32 %v2151, %v2508
  %v2525 = vadd.f32 %v2152, %v2509
  %v2526 = vadd.f32 %v2153, %v2510
  %v2527 = vadd.f32 %v2154, %v2511
  %v2528 = vadd.f32 %v2155, %v2512
  %v2529 = vadd.f32 %v2156, %v2513
  %v2530 = vadd.f32 %v2157, %v2514
  %v2531 = vadd.f32 %v2158, %v2515
  %v2532 = vadd.f32 %v2159, %v2516
  %v2533 = vadd.f32 %v2160, %v2517
  %v2534 = vadd.f32 %v2161, %v2518
  %v2535 = vadd.f32 %v2162, %v2519
  %v2536 = vadd.f32 %v2163, %v2520
  %v2537 = vadd.f32 %v2164, %v2521
  %2538 = vrot.lane.b32.xlu0 %v2426, 114
  %v2539 = vpop.permute.xlu0 %2538
  %2540 = vrot.lane.b32.xlu0 %v2428, 114
  %v2541 = vpop.permute.xlu0 %2540
  %2542 = vrot.lane.b32.xlu0 %v2430, 114
  %v2543 = vpop.permute.xlu0 %2542
  %2544 = vrot.lane.b32.xlu0 %v2432, 114
  %v2545 = vpop.permute.xlu0 %2544
  %2546 = vrot.lane.b32.xlu0 %v2434, 114
  %v2547 = vpop.permute.xlu0 %2546
  %2548 = vrot.lane.b32.xlu0 %v2436, 114
  %v2549 = vpop.permute.xlu0 %2548
  %2550 = vrot.lane.b32.xlu0 %v2438, 114
  %v2551 = vpop.permute.xlu0 %2550
  %2552 = vrot.lane.b32.xlu0 %v2440, 114
  %v2553 = vpop.permute.xlu0 %2552
  %2554 = vrot.lane.b32.xlu0 %v2427, 114
  %v2555 = vpop.permute.xlu0 %2554
  %2556 = vrot.lane.b32.xlu0 %v2429, 114
  %v2557 = vpop.permute.xlu0 %2556
  %2558 = vrot.lane.b32.xlu0 %v2431, 114
  %v2559 = vpop.permute.xlu0 %2558
  %2560 = vrot.lane.b32.xlu0 %v2433, 114
  %v2561 = vpop.permute.xlu0 %2560
  %2562 = vrot.lane.b32.xlu0 %v2435, 114
  %v2563 = vpop.permute.xlu0 %2562
  %2564 = vrot.lane.b32.xlu0 %v2437, 114
  %v2565 = vpop.permute.xlu0 %2564
  %2566 = vrot.lane.b32.xlu0 %v2439, 114
  %v2567 = vpop.permute.xlu0 %2566
  %2568 = vrot.lane.b32.xlu0 %v2441, 114
  %v2569 = vpop.permute.xlu0 %2568
  %vm2570 = vcmp.lt.s32.totalorder %v1244, 114
  %v2571 = vsel %vm2570, %v2539, %v2555
  %v2572 = vsel %vm2570, %v2541, %v2557
  %v2573 = vsel %vm2570, %v2543, %v2559
  %v2574 = vsel %vm2570, %v2545, %v2561
  %v2575 = vsel %vm2570, %v2547, %v2563
  %v2576 = vsel %vm2570, %v2549, %v2565
  %v2577 = vsel %vm2570, %v2551, %v2567
  %v2578 = vsel %vm2570, %v2553, %v2569
  %v2579 = vsel %vm2570, %v2555, %v2539
  %v2580 = vsel %vm2570, %v2557, %v2541
  %v2581 = vsel %vm2570, %v2559, %v2543
  %v2582 = vsel %vm2570, %v2561, %v2545
  %v2583 = vsel %vm2570, %v2563, %v2547
  %v2584 = vsel %vm2570, %v2565, %v2549
  %v2585 = vsel %vm2570, %v2567, %v2551
  %v2586 = vsel %vm2570, %v2569, %v2553
  %v2588 = vlaneseq
  %v2589 = vshrl.u32 %v2588, 7
  %v2590 = vsub.s32 0, %v2589
  %v2591 = vrot.slane %v2445, %v2590
  %v2592 = vlaneseq
  %v2593 = vshrl.u32 %v2592, 7
  %v2594 = vsub.s32 1, %v2593
  %v2595 = vrot.slane %v2445, %v2594
  %v2598 = vmul.f32 %v2571, %v2591
  %v2599 = vmul.f32 %v2579, %v2595
  %v2600 = vmul.f32 %v2572, %v2591
  %v2601 = vmul.f32 %v2580, %v2595
  %v2602 = vmul.f32 %v2573, %v2591
  %v2603 = vmul.f32 %v2581, %v2595
  %v2604 = vmul.f32 %v2574, %v2591
  %v2605 = vmul.f32 %v2582, %v2595
  %v2606 = vmul.f32 %v2575, %v2591
  %v2607 = vmul.f32 %v2583, %v2595
  %v2608 = vmul.f32 %v2576, %v2591
  %v2609 = vmul.f32 %v2584, %v2595
  %v2610 = vmul.f32 %v2577, %v2591
  %v2611 = vmul.f32 %v2585, %v2595
  %v2612 = vmul.f32 %v2578, %v2591
  %v2613 = vmul.f32 %v2586, %v2595
  %v2614 = vadd.f32 %v2522, %v2598
  %v2615 = vadd.f32 %v2523, %v2599
  %v2616 = vadd.f32 %v2524, %v2600
  %v2617 = vadd.f32 %v2525, %v2601
  %v2618 = vadd.f32 %v2526, %v2602
  %v2619 = vadd.f32 %v2527, %v2603
  %v2620 = vadd.f32 %v2528, %v2604
  %v2621 = vadd.f32 %v2529, %v2605
  %v2622 = vadd.f32 %v2530, %v2606
  %v2623 = vadd.f32 %v2531, %v2607
  %v2624 = vadd.f32 %v2532, %v2608
  %v2625 = vadd.f32 %v2533, %v2609
  %v2626 = vadd.f32 %v2534, %v2610
  %v2627 = vadd.f32 %v2535, %v2611
  %v2628 = vadd.f32 %v2536, %v2612
  %v2629 = vadd.f32 %v2537, %v2613
  %s2630 = scalar_lea.vmem %s7, 4
  %v2631 = vld [vmem:[%s2630] ss:$8 sm:$0x3]
  %v2633 = vlaneseq
  %v2634 = vshrl.u32 %v2633, 7
  %v2635 = vsub.s32 0, %v2634
  %v2636 = vrot.slane %v2631, %v2635
  %v2637 = vlaneseq
  %v2638 = vshrl.u32 %v2637, 7
  %v2639 = vsub.s32 1, %v2638
  %v2640 = vrot.slane %v2631, %v2639
  %v2643 = vmul.f32 %v2614, %v2636
  %v2644 = vmul.f32 %v2615, %v2640
  %v2645 = vmul.f32 %v2616, %v2636
  %v2646 = vmul.f32 %v2617, %v2640
  %v2647 = vmul.f32 %v2618, %v2636
  %v2648 = vmul.f32 %v2619, %v2640
  %v2649 = vmul.f32 %v2620, %v2636
  %v2650 = vmul.f32 %v2621, %v2640
  %v2651 = vmul.f32 %v2622, %v2636
  %v2652 = vmul.f32 %v2623, %v2640
  %v2653 = vmul.f32 %v2624, %v2636
  %v2654 = vmul.f32 %v2625, %v2640
  %v2655 = vmul.f32 %v2626, %v2636
  %v2656 = vmul.f32 %v2627, %v2640
  %v2657 = vmul.f32 %v2628, %v2636
  %v2658 = vmul.f32 %v2629, %v2640
  %v2659 = vld [vmem:[%s5] sm:$0xff]
  %v2660 = vld [vmem:[%s5 + $0x8] sm:$0xff]
  %v2661 = vld [vmem:[%s5 + $0x10] sm:$0xff]
  %v2662 = vld [vmem:[%s5 + $0x18] sm:$0xff]
  %v2663 = vld [vmem:[%s5 + $0x20] sm:$0xff]
  %v2664 = vld [vmem:[%s5 + $0x28] sm:$0xff]
  %v2665 = vld [vmem:[%s5 + $0x30] sm:$0xff]
  %v2666 = vld [vmem:[%s5 + $0x38] sm:$0xff]
  %v2667 = vld [vmem:[%s6] sm:$0xff]
  %v2668 = vld [vmem:[%s6 + $0x8] sm:$0xff]
  %v2669 = vld [vmem:[%s6 + $0x10] sm:$0xff]
  %v2670 = vld [vmem:[%s6 + $0x18] sm:$0xff]
  %v2671 = vld [vmem:[%s6 + $0x20] sm:$0xff]
  %v2672 = vld [vmem:[%s6 + $0x28] sm:$0xff]
  %v2673 = vld [vmem:[%s6 + $0x30] sm:$0xff]
  %v2674 = vld [vmem:[%s6 + $0x38] sm:$0xff]
  %v2675 = vadd.f32 %v2643, %v2644
  %2676 = vadd.xlane.f32.xlu0 %v2675
  %v2677 = vpop.xlane.xlu0 %2676
  %v2678 = vadd.f32 %v2645, %v2646
  %2679 = vadd.xlane.f32.xlu0 %v2678
  %v2680 = vpop.xlane.xlu0 %2679
  %v2681 = vadd.f32 %v2647, %v2648
  %2682 = vadd.xlane.f32.xlu0 %v2681
  %v2683 = vpop.xlane.xlu0 %2682
  %v2684 = vadd.f32 %v2649, %v2650
  %2685 = vadd.xlane.f32.xlu0 %v2684
  %v2686 = vpop.xlane.xlu0 %2685
  %v2687 = vadd.f32 %v2651, %v2652
  %2688 = vadd.xlane.f32.xlu0 %v2687
  %v2689 = vpop.xlane.xlu0 %2688
  %v2690 = vadd.f32 %v2653, %v2654
  %2691 = vadd.xlane.f32.xlu0 %v2690
  %v2692 = vpop.xlane.xlu0 %2691
  %v2693 = vadd.f32 %v2655, %v2656
  %2694 = vadd.xlane.f32.xlu0 %v2693
  %v2695 = vpop.xlane.xlu0 %2694
  %v2696 = vadd.f32 %v2657, %v2658
  %2697 = vadd.xlane.f32.xlu0 %v2696
  %v2698 = vpop.xlane.xlu0 %2697
  %v2699 = vmul.f32 %v2643, %v2643
  %v2700 = vmul.f32 %v2644, %v2644
  %v2701 = vmul.f32 %v2645, %v2645
  %v2702 = vmul.f32 %v2646, %v2646
  %v2703 = vmul.f32 %v2647, %v2647
  %v2704 = vmul.f32 %v2648, %v2648
  %v2705 = vmul.f32 %v2649, %v2649
  %v2706 = vmul.f32 %v2650, %v2650
  %v2707 = vmul.f32 %v2651, %v2651
  %v2708 = vmul.f32 %v2652, %v2652
  %v2709 = vmul.f32 %v2653, %v2653
  %v2710 = vmul.f32 %v2654, %v2654
  %v2711 = vmul.f32 %v2655, %v2655
  %v2712 = vmul.f32 %v2656, %v2656
  %v2713 = vmul.f32 %v2657, %v2657
  %v2714 = vmul.f32 %v2658, %v2658
  %v2715 = vadd.f32 %v2699, %v2700
  %2716 = vadd.xlane.f32.xlu0 %v2715
  %v2717 = vpop.xlane.xlu0 %2716
  %v2718 = vadd.f32 %v2701, %v2702
  %2719 = vadd.xlane.f32.xlu0 %v2718
  %v2720 = vpop.xlane.xlu0 %2719
  %v2721 = vadd.f32 %v2703, %v2704
  %2722 = vadd.xlane.f32.xlu0 %v2721
  %v2723 = vpop.xlane.xlu0 %2722
  %v2724 = vadd.f32 %v2705, %v2706
  %2725 = vadd.xlane.f32.xlu0 %v2724
  %v2726 = vpop.xlane.xlu0 %2725
  %v2727 = vadd.f32 %v2707, %v2708
  %2728 = vadd.xlane.f32.xlu0 %v2727
  %v2729 = vpop.xlane.xlu0 %2728
  %v2730 = vadd.f32 %v2709, %v2710
  %2731 = vadd.xlane.f32.xlu0 %v2730
  %v2732 = vpop.xlane.xlu0 %2731
  %v2733 = vadd.f32 %v2711, %v2712
  %2734 = vadd.xlane.f32.xlu0 %v2733
  %v2735 = vpop.xlane.xlu0 %2734
  %v2736 = vadd.f32 %v2713, %v2714
  %2737 = vadd.xlane.f32.xlu0 %v2736
  %v2738 = vpop.xlane.xlu0 %2737
  %v2739 = vmul.f32 %v2677, 0.0051020407
  %v2740 = vmul.f32 %v2680, 0.0051020407
  %v2741 = vmul.f32 %v2683, 0.0051020407
  %v2742 = vmul.f32 %v2686, 0.0051020407
  %v2743 = vmul.f32 %v2689, 0.0051020407
  %v2744 = vmul.f32 %v2692, 0.0051020407
  %v2745 = vmul.f32 %v2695, 0.0051020407
  %v2746 = vmul.f32 %v2698, 0.0051020407
  %v2747 = vmul.f32 %v2717, 0.0051020407
  %v2748 = vmul.f32 %v2720, 0.0051020407
  %v2749 = vmul.f32 %v2723, 0.0051020407
  %v2750 = vmul.f32 %v2726, 0.0051020407
  %v2751 = vmul.f32 %v2729, 0.0051020407
  %v2752 = vmul.f32 %v2732, 0.0051020407
  %v2753 = vmul.f32 %v2735, 0.0051020407
  %v2754 = vmul.f32 %v2738, 0.0051020407
  %v2755 = vmul.f32 %v2739, %v2739
  %v2756 = vmul.f32 %v2740, %v2740
  %v2757 = vmul.f32 %v2741, %v2741
  %v2758 = vmul.f32 %v2742, %v2742
  %v2759 = vmul.f32 %v2743, %v2743
  %v2760 = vmul.f32 %v2744, %v2744
  %v2761 = vmul.f32 %v2745, %v2745
  %v2762 = vmul.f32 %v2746, %v2746
  %v2763 = vsub.f32 %v2747, %v2755
  %v2764 = vsub.f32 %v2748, %v2756
  %v2765 = vsub.f32 %v2749, %v2757
  %v2766 = vsub.f32 %v2750, %v2758
  %v2767 = vsub.f32 %v2751, %v2759
  %v2768 = vsub.f32 %v2752, %v2760
  %v2769 = vsub.f32 %v2753, %v2761
  %v2770 = vsub.f32 %v2754, %v2762
  %v2771 = vsub.f32 %v2643, %v2739
  %v2772 = vsub.f32 %v2644, %v2739
  %v2773 = vsub.f32 %v2645, %v2740
  %v2774 = vsub.f32 %v2646, %v2740
  %v2775 = vsub.f32 %v2647, %v2741
  %v2776 = vsub.f32 %v2648, %v2741
  %v2777 = vsub.f32 %v2649, %v2742
  %v2778 = vsub.f32 %v2650, %v2742
  %v2779 = vsub.f32 %v2651, %v2743
  %v2780 = vsub.f32 %v2652, %v2743
  %v2781 = vsub.f32 %v2653, %v2744
  %v2782 = vsub.f32 %v2654, %v2744
  %v2783 = vsub.f32 %v2655, %v2745
  %v2784 = vsub.f32 %v2656, %v2745
  %v2785 = vsub.f32 %v2657, %v2746
  %v2786 = vsub.f32 %v2658, %v2746
  %v2787 = vadd.f32 %v2763, 1e-05
  %v2788 = vadd.f32 %v2764, 1e-05
  %v2789 = vadd.f32 %v2765, 1e-05
  %v2790 = vadd.f32 %v2766, 1e-05
  %v2791 = vadd.f32 %v2767, 1e-05
  %v2792 = vadd.f32 %v2768, 1e-05
  %v2793 = vadd.f32 %v2769, 1e-05
  %v2794 = vadd.f32 %v2770, 1e-05
  %v2795 = vrsqrt.pop %v2787
  %v2796 = vrsqrt.pop %v2788
  %v2797 = vrsqrt.pop %v2789
  %v2798 = vrsqrt.pop %v2790
  %v2799 = vrsqrt.pop %v2791
  %v2800 = vrsqrt.pop %v2792
  %v2801 = vrsqrt.pop %v2793
  %v2802 = vrsqrt.pop %v2794
  %v2803 = vmul.f32 %v2771, %v2795
  %v2804 = vmul.f32 %v2772, %v2795
  %v2805 = vmul.f32 %v2773, %v2796
  %v2806 = vmul.f32 %v2774, %v2796
  %v2807 = vmul.f32 %v2775, %v2797
  %v2808 = vmul.f32 %v2776, %v2797
  %v2809 = vmul.f32 %v2777, %v2798
  %v2810 = vmul.f32 %v2778, %v2798
  %v2811 = vmul.f32 %v2779, %v2799
  %v2812 = vmul.f32 %v2780, %v2799
  %v2813 = vmul.f32 %v2781, %v2800
  %v2814 = vmul.f32 %v2782, %v2800
  %v2815 = vmul.f32 %v2783, %v2801
  %v2816 = vmul.f32 %v2784, %v2801
  %v2817 = vmul.f32 %v2785, %v2802
  %v2818 = vmul.f32 %v2786, %v2802
  %2820 = vset.pattern.permute.xlu0 0
  %2821 = vperm.xlu0 %2820, %v2659
  %v2822 = vpop.permute.xlu0 %2821
  %2825 = vset.pattern.permute.xlu0 0
  %2826 = vperm.xlu0 %2825, %v2660
  %v2827 = vpop.permute.xlu0 %2826
  %2830 = vset.pattern.permute.xlu0 0
  %2831 = vperm.xlu0 %2830, %v2661
  %v2832 = vpop.permute.xlu0 %2831
  %2835 = vset.pattern.permute.xlu0 0
  %2836 = vperm.xlu0 %2835, %v2662
  %v2837 = vpop.permute.xlu0 %2836
  %2840 = vset.pattern.permute.xlu0 0
  %2841 = vperm.xlu0 %2840, %v2663
  %v2842 = vpop.permute.xlu0 %2841
  %2845 = vset.pattern.permute.xlu0 0
  %2846 = vperm.xlu0 %2845, %v2664
  %v2847 = vpop.permute.xlu0 %2846
  %2850 = vset.pattern.permute.xlu0 0
  %2851 = vperm.xlu0 %2850, %v2665
  %v2852 = vpop.permute.xlu0 %2851
  %2855 = vset.pattern.permute.xlu0 0
  %2856 = vperm.xlu0 %2855, %v2666
  %v2857 = vpop.permute.xlu0 %2856
  %v2859 = vmul.f32 %v2803, %v2822
  %v2860 = vmul.f32 %v2804, %v2822
  %v2861 = vmul.f32 %v2805, %v2827
  %v2862 = vmul.f32 %v2806, %v2827
  %v2863 = vmul.f32 %v2807, %v2832
  %v2864 = vmul.f32 %v2808, %v2832
  %v2865 = vmul.f32 %v2809, %v2837
  %v2866 = vmul.f32 %v2810, %v2837
  %v2867 = vmul.f32 %v2811, %v2842
  %v2868 = vmul.f32 %v2812, %v2842
  %v2869 = vmul.f32 %v2813, %v2847
  %v2870 = vmul.f32 %v2814, %v2847
  %v2871 = vmul.f32 %v2815, %v2852
  %v2872 = vmul.f32 %v2816, %v2852
  %v2873 = vmul.f32 %v2817, %v2857
  %v2874 = vmul.f32 %v2818, %v2857
  %2876 = vset.pattern.permute.xlu0 0
  %2877 = vperm.xlu0 %2876, %v2667
  %v2878 = vpop.permute.xlu0 %2877
  %2881 = vset.pattern.permute.xlu0 0
  %2882 = vperm.xlu0 %2881, %v2668
  %v2883 = vpop.permute.xlu0 %2882
  %2886 = vset.pattern.permute.xlu0 0
  %2887 = vperm.xlu0 %2886, %v2669
  %v2888 = vpop.permute.xlu0 %2887
  %2891 = vset.pattern.permute.xlu0 0
  %2892 = vperm.xlu0 %2891, %v2670
  %v2893 = vpop.permute.xlu0 %2892
  %2896 = vset.pattern.permute.xlu0 0
  %2897 = vperm.xlu0 %2896, %v2671
  %v2898 = vpop.permute.xlu0 %2897
  %2901 = vset.pattern.permute.xlu0 0
  %2902 = vperm.xlu0 %2901, %v2672
  %v2903 = vpop.permute.xlu0 %2902
  %2906 = vset.pattern.permute.xlu0 0
  %2907 = vperm.xlu0 %2906, %v2673
  %v2908 = vpop.permute.xlu0 %2907
  %2911 = vset.pattern.permute.xlu0 0
  %2912 = vperm.xlu0 %2911, %v2674
  %v2913 = vpop.permute.xlu0 %2912
  %v2915 = vadd.f32 %v2859, %v2878
  %v2916 = vadd.f32 %v2860, %v2878
  %v2917 = vadd.f32 %v2861, %v2883
  %v2918 = vadd.f32 %v2862, %v2883
  %v2919 = vadd.f32 %v2863, %v2888
  %v2920 = vadd.f32 %v2864, %v2888
  %v2921 = vadd.f32 %v2865, %v2893
  %v2922 = vadd.f32 %v2866, %v2893
  %v2923 = vadd.f32 %v2867, %v2898
  %v2924 = vadd.f32 %v2868, %v2898
  %v2925 = vadd.f32 %v2869, %v2903
  %v2926 = vadd.f32 %v2870, %v2903
  %v2927 = vadd.f32 %v2871, %v2908
  %v2928 = vadd.f32 %v2872, %v2908
  %v2929 = vadd.f32 %v2873, %v2913
  %v2930 = vadd.f32 %v2874, %v2913
  %2931 = vst [vmem:[%s8] sm:$0xff] %v2915
  %2932 = vst [vmem:[%s8 + $0x8] sm:$0xff] %v2916
  %2933 = vst [vmem:[%s8 + $0x10] sm:$0xff] %v2917
  %2934 = vst [vmem:[%s8 + $0x18] sm:$0xff] %v2918
  %2935 = vst [vmem:[%s8 + $0x20] sm:$0xff] %v2919
  %2936 = vst [vmem:[%s8 + $0x28] sm:$0xff] %v2920
  %2937 = vst [vmem:[%s8 + $0x30] sm:$0xff] %v2921
  %2938 = vst [vmem:[%s8 + $0x38] sm:$0xff] %v2922
  %2939 = vst [vmem:[%s8 + $0x40] sm:$0xff] %v2923
  %2940 = vst [vmem:[%s8 + $0x48] sm:$0xff] %v2924
  %2941 = vst [vmem:[%s8 + $0x50] sm:$0xff] %v2925
  %2942 = vst [vmem:[%s8 + $0x58] sm:$0xff] %v2926
  %2943 = vst [vmem:[%s8 + $0x60] sm:$0xff] %v2927
  %2944 = vst [vmem:[%s8 + $0x68] sm:$0xff] %v2928
  %2945 = vst [vmem:[%s8 + $0x70] sm:$0xff] %v2929
  %2946 = vst [vmem:[%s8 + $0x78] sm:$0xff] %v2930
  // Predicated region
  $region67: #{forward.1} parent=0 // pred_check
    _
  $region68: #{forward.1} parent=0 // pred_check_branch
    %2948 = sbr.rel (0) target = $region70
  $region69: #{forward.1} parent=0 // pred_region
    _
  $region70: #{forward.1} parent=0 // pred_fallthru
    _
  // Predicated region
  $region71: #{forward.1} parent=0 // pred_check
    _
  $region72: #{forward.1} parent=0 // pred_check_branch
    %2950 = sbr.rel (0) target = $region74
  $region73: #{forward.1} parent=0 // pred_region
    _
  $region74: #{forward.1} parent=0 // pred_fallthru
    _
  %2951 = vsyncmov [#allocation5]
  %s2952 = vpop.sfrf %2951
  %p2953 = scmp.eq.s32.totalorder %s2952, 0
  %p2954 = pneg %p2953
  %2956 = shalt.err (%p2954)

</llo_original>
